<compile_context>
chip_gen: v7x
topology: tpu7x:2x2x1
jax: 0.10.0
libtpu: 0.0.40
codegen_flags: <defaults>
</compile_context>

<pallas_src>
import jax
import jax.numpy as jnp
from jax import lax
from jax.experimental import pallas as pl
from jax.experimental.pallas import tpu as pltpu


_VMEM_LIMIT = 32 * 1024 * 1024          # safe scoped-VMEM cap on v5e/v6e/v7x
_REC_VMEM_BUDGET = 12 * 1024 * 1024     # budget for recurrence working set


# ----------------------------------------------------------------------------
# Chunk-size helpers
# ----------------------------------------------------------------------------
def _round_up(x, m):
    return ((x + m - 1) // m) * m


def _row_chunk(rows, target=512):
    """Row-block for the projection matmul: divides `rows`, multiple of 8,
    bounded by `target`.  Never falls back to the whole array (rows is always
    a multiple of 8 because the batch is padded to a multiple of 8)."""
    rb = min(rows, max(8, (target // 8) * 8))
    rb -= rb % 8
    while rb > 8 and rows % rb:
        rb -= 8
    return rb


def _time_chunk(T, B, H, budget_bytes=_REC_VMEM_BUDGET):
    """Time-chunk for the recurrence: divides T and keeps the double-buffered
    working set (~96 * TC * B * H bytes in f32: pre-gates + residual + outputs)
    within the VMEM budget — important on v7x's 64 MiB VMEM."""
    per_t = 96 * B * H
    tc = max(1, min(T, 256, budget_bytes // max(per_t, 1)))
    while T % tc:
        tc -= 1
    return tc


# ----------------------------------------------------------------------------
# Kernel factories
# ----------------------------------------------------------------------------
def _make_proj_kernel(n_inputs, G):
    """Input projection: pre-gates for BOTH directions from one fused matmul.

    The weight is [W_fwd | W_bwd] (D, 8H); the (RB, 8H) result is split along
    lanes (4H boundary) into the two outputs inside the kernel.
    """
    if n_inputs == 1:
        def kernel(x_ref, w_ref, b_ref, pf_ref, pb_ref):
            p = jnp.dot(x_ref[...], w_ref[...],
                        preferred_element_type=jnp.float32) + b_ref[...]
            pf_ref[...] = p[:, :G]
            pb_ref[...] = p[:, G:]
    else:
        # Layer 2: conceptual input is concat([h_fwd, h_bwd], -1); keep the
        # halves separate and split W row-wise so no HBM concat is needed.
        def kernel(xa_ref, xb_ref, wa_ref, wb_ref, b_ref, pf_ref, pb_ref):
            p = (jnp.dot(xa_ref[...], wa_ref[...],
                         preferred_element_type=jnp.float32)
                 + jnp.dot(xb_ref[...], wb_ref[...],
                           preferred_element_type=jnp.float32)
                 + b_ref[...])
            pf_ref[...] = p[:, :G]
            pb_ref[...] = p[:, G:]
    return kernel


def _make_rec_kernel(TC, B, H, has_res):
    """Fused bidirectional LSTM recurrence over one time chunk per grid step.

    Inputs  (all 2-D, time-major rows, row = t*B + b):
      pgf (TC*B, 4H) chunk i       — fwd pre-gates
      pgb (TC*B, 4H) chunk n-1-i   — bwd pre-gates
      wrec (2H, 8H)                — blockdiag(W_hh_f^T, W_hh_b^T)
      [rf (TC*B, H) chunk i, rb (TC*B, H) chunk n-1-i]  — residual
    Outputs: of (TC*B, H) chunk i, ob (TC*B, H) chunk n-1-i
    Scratch: h_sc (B, 2H), cf_sc (B, H), cb_sc (B, H) — state across chunks.
    """
    G = 4 * H

    def kernel(*refs):
        if has_res:
            (pgf_ref, pgb_ref, wrec_ref, rf_ref, rb_ref,
             of_ref, ob_ref, h_sc, cf_sc, cb_sc) = refs
        else:
            (pgf_ref, pgb_ref, wrec_ref,
             of_ref, ob_ref, h_sc, cf_sc, cb_sc) = refs

        @pl.when(pl.program_id(0) == 0)
        def _init():
            h_sc[...] = jnp.zeros(h_sc.shape, h_sc.dtype)
            cf_sc[...] = jnp.zeros(cf_sc.shape, cf_sc.dtype)
            cb_sc[...] = jnp.zeros(cb_sc.shape, cb_sc.dtype)

        wrec = wrec_ref[...]                         # (2H, 8H), block-diagonal

        def step(t, carry):
            h_cat, c_f, c_b = carry                  # (B,2H), (B,H), (B,H)
            rf = pl.multiple_of(t * B, B)            # fwd rows (chunk-local)
            rb = pl.multiple_of((TC - 1 - t) * B, B)  # bwd rows (time reversed)
            pre_f = pgf_ref[pl.ds(rf, B), :]         # (B, 4H)
            pre_b = pgb_ref[pl.ds(rb, B), :]         # (B, 4H)

            # One MXU issue per step drives BOTH directions.
            g = jnp.dot(h_cat, wrec, preferred_element_type=jnp.float32)
            g = g + jnp.concatenate([pre_f, pre_b], axis=-1)   # (B, 8H)

            # Two full-width EUP passes instead of 8 quarter-vreg ones.
            sg = jax.nn.sigmoid(g)
            tg = jnp.tanh(g)
            i_f = sg[:, 0 * H:1 * H]
            f_f = sg[:, 1 * H:2 * H]
            g_f = tg[:, 2 * H:3 * H]
            o_f = sg[:, 3 * H:4 * H]
            i_b = sg[:, G + 0 * H:G + 1 * H]
            f_b = sg[:, G + 1 * H:G + 2 * H]
            g_b = tg[:, G + 2 * H:G + 3 * H]
            o_b = sg[:, G + 3 * H:G + 4 * H]

            c_f = f_f * c_f + i_f * g_f
            c_b = f_b * c_b + i_b * g_b
            h_f = o_f * jnp.tanh(c_f)
            h_b = o_b * jnp.tanh(c_b)

            if has_res:                              # residual fused in store
                of_ref[pl.ds(rf, B), :] = h_f + rf_ref[pl.ds(rf, B), :]
                ob_ref[pl.ds(rb, B), :] = h_b + rb_ref[pl.ds(rb, B), :]
            else:
                of_ref[pl.ds(rf, B), :] = h_f
                ob_ref[pl.ds(rb, B), :] = h_b

            return (jnp.concatenate([h_f, h_b], axis=-1), c_f, c_b)

        carry = (h_sc[...], cf_sc[...], cb_sc[...])
        carry = lax.fori_loop(0, TC, step, carry, unroll=min(TC, 8))
        h_sc[...] = carry[0]
        cf_sc[...] = carry[1]
        cb_sc[...] = carry[2]

    return kernel


# ----------------------------------------------------------------------------
# Layer wrapper
# ----------------------------------------------------------------------------
def _bilstm_layer_fwd(xs, w, T, B, residual=None):
    """One bidirectional LSTM layer on time-major 2-D rows.

    xs       : tuple of (T*B, D_i) arrays (row = t*B + b).
    residual : optional (rf, rb), each (T*B, H), added to the outputs.
    returns  : (h_fwd, h_bwd), each (T*B, H), natural time order.
    """
    H = w["wrec"].shape[0] // 2
    G = 4 * H
    rows = T * B

    # ---- 1) hoisted input projection (both directions, one fused matmul) ---
    RB = _row_chunk(rows)
    n_rb = rows // RB
    w_args = [w["wih"]] if len(xs) == 1 else [w["wih_a"], w["wih_b"]]

    in_specs = [pl.BlockSpec((RB, xi.shape[1]), lambda r: (r, 0)) for xi in xs]
    in_specs += [pl.BlockSpec(wi.shape, lambda r: (0, 0)) for wi in w_args]
    in_specs += [pl.BlockSpec((1, 2 * G), lambda r: (0, 0))]

    pf, pb = pl.pallas_call(
        _make_proj_kernel(len(xs), G),
        out_shape=(jax.ShapeDtypeStruct((rows, G), jnp.float32),
                   jax.ShapeDtypeStruct((rows, G), jnp.float32)),
        grid=(n_rb,),
        in_specs=in_specs,
        out_specs=(pl.BlockSpec((RB, G), lambda r: (r, 0)),
                   pl.BlockSpec((RB, G), lambda r: (r, 0))),
        compiler_params=pltpu.CompilerParams(
            dimension_semantics=("parallel",),
            vmem_limit_bytes=_VMEM_LIMIT),
    )(*xs, *w_args, w["bias"])

    # ---- 2) fused bidirectional recurrence, chunked over time --------------
    TC = _time_chunk(T, B, H)
    n = T // TC
    rec_in_specs = [
        pl.BlockSpec((TC * B, G), lambda i: (i, 0)),           # fwd pre-gates
        pl.BlockSpec((TC * B, G), lambda i: (n - 1 - i, 0)),   # bwd pre-gates
        pl.BlockSpec(w["wrec"].shape, lambda i: (0, 0)),
    ]
    args = [pf, pb, w["wrec"]]
    if residual is not None:
        rec_in_specs += [pl.BlockSpec((TC * B, H), lambda i: (i, 0)),
                         pl.BlockSpec((TC * B, H), lambda i: (n - 1 - i, 0))]
        args += [residual[0], residual[1]]

    of, ob = pl.pallas_call(
        _make_rec_kernel(TC, B, H, residual is not None),
        out_shape=(jax.ShapeDtypeStruct((rows, H), jnp.float32),
                   jax.ShapeDtypeStruct((rows, H), jnp.float32)),
        grid=(n,),
        in_specs=rec_in_specs,
        out_specs=(pl.BlockSpec((TC * B, H), lambda i: (i, 0)),
                   pl.BlockSpec((TC * B, H), lambda i: (n - 1 - i, 0))),
        scratch_shapes=[pltpu.VMEM((B, 2 * H), jnp.float32),   # h_cat
                        pltpu.VMEM((B, H), jnp.float32),       # c_fwd
                        pltpu.VMEM((B, H), jnp.float32)],      # c_bwd
        compiler_params=pltpu.CompilerParams(
            dimension_semantics=("arbitrary",),                # carried state!
            vmem_limit_bytes=_VMEM_LIMIT),
    )(*args)
    return of, ob


def _prep_layer_weights(layer, n_inputs):
    """Fold PyTorch LSTM params into kernel-friendly fused layouts."""
    w_ih_f, w_hh_f, b_ih_f, b_hh_f = layer["fwd"]
    w_ih_b, w_hh_b, b_ih_b, b_hh_b = layer["bwd"]
    H = w_hh_f.shape[1]
    G = 4 * H

    # Block-diagonal recurrent weight: one per-step matmul drives both dirs.
    wrec = jnp.zeros((2 * H, 2 * G), jnp.float32)
    wrec = wrec.at[:H, :G].set(jnp.transpose(w_hh_f))
    wrec = wrec.at[H:, G:].set(jnp.transpose(w_hh_b))

    bias = jnp.concatenate([b_ih_f + b_hh_f, b_ih_b + b_hh_b])[None, :]  # (1,8H)
    out = dict(wrec=wrec, bias=bias)

    wf = jnp.transpose(w_ih_f)   # (D, 4H)
    wb = jnp.transpose(w_ih_b)   # (D, 4H)
    if n_inputs == 1:
        out["wih"] = jnp.concatenate([wf, wb], axis=1)               # (D, 8H)
    else:
        # Layer-2 input is concat([h_fwd, h_bwd]); split W row-wise so the two
        # halves stay separate arrays (no HBM concat of activations needed).
        out["wih_a"] = jnp.concatenate([wf[:H], wb[:H]], axis=1)     # (H, 8H)
        out["wih_b"] = jnp.concatenate([wf[H:], wb[H:]], axis=1)     # (H, 8H)
    return out


def block_bilstm_forward(x, params):
    """BlockBiLSTM forward. x: (B, T, input_channels) -> (B, T, 2*filters)."""
    B, T, C = x.shape
    # Pad the batch to a multiple of 8: full sublane occupancy in the
    # recurrence, 8-aligned per-timestep row slices, dense HBM tiles.
    Bp = _round_up(max(B, 8), 8)
    if Bp != B:
        x = jnp.pad(x, ((0, Bp - B), (0, 0), (0, 0)))
    # Time-major 2-D rows (row = t*Bp + b), kept 2-D end to end.
    x2 = jnp.transpose(x, (1, 0, 2)).reshape(T * Bp, C)

    # Layer 1 (Dropout(0.3) is identity at inference).
    w1 = _prep_layer_weights(params[0], n_inputs=1)
    of1, ob1 = _bilstm_layer_fwd((x2,), w1, T, Bp)

    # Layer 2; residual (y + x1) fused into the recurrence per-step store.
    w2 = _prep_layer_weights(params[1], n_inputs=2)
    of2, ob2 = _bilstm_layer_fwd((of1, ob1), w2, T, Bp, residual=(of1, ob1))

    out = jnp.concatenate([of2, ob2], axis=-1).reshape(T, Bp, -1)
    return jnp.transpose(out, (1, 0, 2))[:B]       # (B, T, 2H)


# ----------------------------------------------------------------------------
# Deterministic parameter init (PyTorch nn.LSTM shapes; U(-1/sqrt(H), 1/sqrt(H)))
# ----------------------------------------------------------------------------
def init_block_bilstm_params(key, input_channels, filters):
    H = filters
    k = 1.0 / (H ** 0.5)
    params = []
    for layer_in in (input_channels, 2 * filters):
        layer = {}
        for direction in ("fwd", "bwd"):
            key, k1, k2, k3, k4 = jax.random.split(key, 5)
            layer[direction] = (
                jax.random.uniform(k1, (4 * H, layer_in), jnp.float32, -k, k),
                jax.random.uniform(k2, (4 * H, H), jnp.float32, -k, k),
                jax.random.uniform(k3, (4 * H,), jnp.float32, -k, k),
                jax.random.uniform(k4, (4 * H,), jnp.float32, -k, k),
            )
        params.append(layer)
    return params


# ----------------------------------------------------------------------------
# Pure-JAX reference (lax.scan) for correctness check
# ----------------------------------------------------------------------------
def _ref_lstm_dir(x_btd, w_ih, w_hh, b_ih, b_hh, reverse):
    H = w_hh.shape[1]
    B = x_btd.shape[0]
    x_tbd = jnp.transpose(x_btd, (1, 0, 2))
    if reverse:
        x_tbd = x_tbd[::-1]

    def step(carry, x_t):
        h, c = carry
        gates = x_t @ w_ih.T + h @ w_hh.T + b_ih + b_hh
        i = jax.nn.sigmoid(gates[:, 0 * H:1 * H])
        f = jax.nn.sigmoid(gates[:, 1 * H:2 * H])
        g = jnp.tanh(gates[:, 2 * H:3 * H])
        o = jax.nn.sigmoid(gates[:, 3 * H:4 * H])
        c = f * c + i * g
        h = o * jnp.tanh(c)
        return (h, c), h

    init = (jnp.zeros((B, H), jnp.float32), jnp.zeros((B, H), jnp.float32))
    _, hs = lax.scan(step, init, x_tbd)
    if reverse:
        hs = hs[::-1]
    return jnp.transpose(hs, (1, 0, 2))


def _ref_bilstm_layer(x_btd, layer_params):
    f = _ref_lstm_dir(x_btd, *layer_params["fwd"], reverse=False)
    b = _ref_lstm_dir(x_btd, *layer_params["bwd"], reverse=True)
    return jnp.concatenate([f, b], axis=-1)


def _ref_forward(x, params):
    x = _ref_bilstm_layer(x, params[0])
    y = _ref_bilstm_layer(x, params[1])
    return y + x


# ----------------------------------------------------------------------------
if __name__ == "__main__":
    batch, seq, input_channels, filters = 2, 8, 16, 32

    key = jax.random.PRNGKey(0)
    key_p, key_x = jax.random.split(key)
    params = init_block_bilstm_params(key_p, input_channels, filters)
    x = jax.random.normal(key_x, (batch, seq, input_channels), jnp.float32)

    fwd = jax.jit(block_bilstm_forward)
    out = jax.block_until_ready(fwd(x, params))

    ref = jax.block_until_ready(_ref_forward(x, params))
    assert out.shape == (batch, seq, 2 * filters), out.shape
    assert jnp.allclose(out, ref, atol=1e-4, rtol=1e-4), float(
        jnp.max(jnp.abs(out - ref))
    )
    print("KERNEL_OK")
</pallas_src>

<mosaic_0001>
module attributes {stable_mosaic.version = 11 : i64} {
  func.func @kernel(%arg0: i32, %arg1: memref<64x128xf32, #tpu.memory_space<vmem>>, %arg2: memref<64x128xf32, #tpu.memory_space<vmem>>, %arg3: memref<64x256xf32, #tpu.memory_space<vmem>>, %arg4: memref<64x32xf32, #tpu.memory_space<vmem>>, %arg5: memref<64x32xf32, #tpu.memory_space<vmem>>, %arg6: memref<64x32xf32, #tpu.memory_space<vmem>>, %arg7: memref<64x32xf32, #tpu.memory_space<vmem>>, %arg8: memref<8x64xf32, #tpu.memory_space<vmem>>, %arg9: memref<8x32xf32, #tpu.memory_space<vmem>>, %arg10: memref<8x32xf32, #tpu.memory_space<vmem>>) attributes {dimension_semantics = [#tpu.dimension_semantics<arbitrary>], iteration_bounds = array<i64: 1>, scalar_prefetch = 0 : i64, scratch_operands = 3 : i64, tpu.core_type = #tpu.core_type<tc>, window_params = [{transform_indices = @transform_0, window_bounds = array<i64: 64, 128>}, {transform_indices = @transform_1, window_bounds = array<i64: 64, 128>}, {pipeline_mode = #tpu.pipeline_mode<synchronous>, transform_indices = @transform_2, window_bounds = array<i64: 64, 256>}, {transform_indices = @transform_3, window_bounds = array<i64: 64, 32>}, {transform_indices = @transform_4, window_bounds = array<i64: 64, 32>}, {transform_indices = @transform_5, window_bounds = array<i64: 64, 32>}, {transform_indices = @transform_6, window_bounds = array<i64: 64, 32>}]} {
    %c0_i32 = arith.constant 0 : i32
    %0 = arith.cmpi eq, %arg0, %c0_i32 : i32
    %1 = arith.extui %0 : i1 to i32
    %c0_i32_0 = arith.constant 0 : i32
    %2 = arith.cmpi ne, %1, %c0_i32_0 : i32
    scf.if %2 {
      %cst_102 = arith.constant 0.000000e+00 : f32
      %386 = vector.broadcast %cst_102 : f32 to vector<8x64xf32>
      %c0_103 = arith.constant 0 : index
      %c0_104 = arith.constant 0 : index
      %387 = vector.load %arg8[%c0_103, %c0_104] : memref<8x64xf32, #tpu.memory_space<vmem>>, vector<8x64xf32>
      tpu.vector_store %arg8[%c0_103, %c0_104], %386 {strides = array<i32>} : memref<8x64xf32, #tpu.memory_space<vmem>>, vector<8x64xf32>,
      %cst_105 = arith.constant 0.000000e+00 : f32
      %388 = vector.broadcast %cst_105 : f32 to vector<8x32xf32>
      %c0_106 = arith.constant 0 : index
      %c0_107 = arith.constant 0 : index
      %389 = vector.load %arg9[%c0_106, %c0_107] : memref<8x32xf32, #tpu.memory_space<vmem>>, vector<8x32xf32>
      tpu.vector_store %arg9[%c0_106, %c0_107], %388 {strides = array<i32>} : memref<8x32xf32, #tpu.memory_space<vmem>>, vector<8x32xf32>,
      %cst_108 = arith.constant 0.000000e+00 : f32
      %390 = vector.broadcast %cst_108 : f32 to vector<8x32xf32>
      %c0_109 = arith.constant 0 : index
      %c0_110 = arith.constant 0 : index
      %391 = vector.load %arg10[%c0_109, %c0_110] : memref<8x32xf32, #tpu.memory_space<vmem>>, vector<8x32xf32>
      tpu.vector_store %arg10[%c0_109, %c0_110], %390 {strides = array<i32>} : memref<8x32xf32, #tpu.memory_space<vmem>>, vector<8x32xf32>,
    } else {
    }
    %c0 = arith.constant 0 : index
    %c0_1 = arith.constant 0 : index
    %3 = vector.load %arg3[%c0, %c0_1] : memref<64x256xf32, #tpu.memory_space<vmem>>, vector<64x256xf32>
    %c0_2 = arith.constant 0 : index
    %c0_3 = arith.constant 0 : index
    %4 = vector.load %arg8[%c0_2, %c0_3] : memref<8x64xf32, #tpu.memory_space<vmem>>, vector<8x64xf32>
    %c0_4 = arith.constant 0 : index
    %c0_5 = arith.constant 0 : index
    %5 = vector.load %arg9[%c0_4, %c0_5] : memref<8x32xf32, #tpu.memory_space<vmem>>, vector<8x32xf32>
    %c0_6 = arith.constant 0 : index
    %c0_7 = arith.constant 0 : index
    %6 = vector.load %arg10[%c0_6, %c0_7] : memref<8x32xf32, #tpu.memory_space<vmem>>, vector<8x32xf32>
    %c0_i32_8 = arith.constant 0 : i32
    %c8_i32 = arith.constant 8 : i32
    %7 = arith.muli %c0_i32_8, %c8_i32 : i32
    %8 = tpu.assume_multiple %7, 8 : i32
    %c7_i32 = arith.constant 7 : i32
    %9 = arith.subi %c7_i32, %c0_i32_8 : i32
    %c8_i32_9 = arith.constant 8 : i32
    %10 = arith.muli %9, %c8_i32_9 : i32
    %11 = tpu.assume_multiple %10, 8 : i32
    %12 = arith.index_cast %8 : i32 to index
    %c0_10 = arith.constant 0 : index
    %13 = vector.load %arg1[%12, %c0_10] : memref<64x128xf32, #tpu.memory_space<vmem>>, vector<8x128xf32>
    %14 = arith.index_cast %11 : i32 to index
    %c0_11 = arith.constant 0 : index
    %15 = vector.load %arg2[%14, %c0_11] : memref<64x128xf32, #tpu.memory_space<vmem>>, vector<8x128xf32>
    %cst = arith.constant dense<0.000000e+00> : vector<8x256xf32>
    %16 = tpu.matmul %4, %3, %cst {dimension_numbers = #tpu.dot_dimension_numbers<[1], [0], [0], [1], [0, 0, 1, 1], [], []>} : vector<8x64xf32>, vector<64x256xf32>, vector<8x256xf32> -> vector<8x256xf32>
    %17 = tpu.concatenate %13, %15 in 1 : vector<8x128xf32>, vector<8x128xf32> -> vector<8x256xf32>
    %18 = arith.addf %16, %17 : vector<8x256xf32>
    %19 = arith.negf %18 : vector<8x256xf32>
    %20 = math.exp %19 : vector<8x256xf32>
    %cst_12 = arith.constant 1.000000e+00 : f32
    %21 = vector.broadcast %cst_12 : f32 to vector<8x256xf32>
    %22 = arith.addf %21, %20 : vector<8x256xf32>
    %23 = arith.divf %21, %22 : vector<8x256xf32>
    %24 = math.tanh %18 : vector<8x256xf32>
    %25 = vector.extract_strided_slice %23 {offsets = [0, 0], sizes = [8, 32], strides = [1, 1]} : vector<8x256xf32> to vector<8x32xf32>
    %26 = vector.extract_strided_slice %23 {offsets = [0, 32], sizes = [8, 32], strides = [1, 1]} : vector<8x256xf32> to vector<8x32xf32>
    %27 = vector.extract_strided_slice %24 {offsets = [0, 64], sizes = [8, 32], strides = [1, 1]} : vector<8x256xf32> to vector<8x32xf32>
    %28 = vector.extract_strided_slice %23 {offsets = [0, 96], sizes = [8, 32], strides = [1, 1]} : vector<8x256xf32> to vector<8x32xf32>
    %29 = vector.extract_strided_slice %23 {offsets = [0, 128], sizes = [8, 32], strides = [1, 1]} : vector<8x256xf32> to vector<8x32xf32>
    %30 = vector.extract_strided_slice %23 {offsets = [0, 160], sizes = [8, 32], strides = [1, 1]} : vector<8x256xf32> to vector<8x32xf32>
    %31 = vector.extract_strided_slice %24 {offsets = [0, 192], sizes = [8, 32], strides = [1, 1]} : vector<8x256xf32> to vector<8x32xf32>
    %32 = vector.extract_strided_slice %23 {offsets = [0, 224], sizes = [8, 32], strides = [1, 1]} : vector<8x256xf32> to vector<8x32xf32>
    %33 = arith.mulf %26, %5 : vector<8x32xf32>
    %34 = arith.mulf %25, %27 : vector<8x32xf32>
    %35 = arith.addf %33, %34 : vector<8x32xf32>
    %36 = arith.mulf %30, %6 : vector<8x32xf32>
    %37 = arith.mulf %29, %31 : vector<8x32xf32>
    %38 = arith.addf %36, %37 : vector<8x32xf32>
    %39 = math.tanh %35 : vector<8x32xf32>
    %40 = arith.mulf %28, %39 : vector<8x32xf32>
    %41 = math.tanh %38 : vector<8x32xf32>
    %42 = arith.mulf %32, %41 : vector<8x32xf32>
    %43 = arith.index_cast %8 : i32 to index
    %c0_13 = arith.constant 0 : index
    %44 = vector.load %arg4[%43, %c0_13] : memref<64x32xf32, #tpu.memory_space<vmem>>, vector<8x32xf32>
    %45 = arith.addf %40, %44 : vector<8x32xf32>
    %46 = arith.index_cast %8 : i32 to index
    %c0_14 = arith.constant 0 : index
    %47 = vector.load %arg6[%46, %c0_14] : memref<64x32xf32, #tpu.memory_space<vmem>>, vector<8x32xf32>
    tpu.vector_store %arg6[%46, %c0_14], %45 {strides = array<i32>} : memref<64x32xf32, #tpu.memory_space<vmem>>, vector<8x32xf32>,
    %48 = arith.index_cast %11 : i32 to index
    %c0_15 = arith.constant 0 : index
    %49 = vector.load %arg5[%48, %c0_15] : memref<64x32xf32, #tpu.memory_space<vmem>>, vector<8x32xf32>
    %50 = arith.addf %42, %49 : vector<8x32xf32>
    %51 = arith.index_cast %11 : i32 to index
    %c0_16 = arith.constant 0 : index
    %52 = vector.load %arg7[%51, %c0_16] : memref<64x32xf32, #tpu.memory_space<vmem>>, vector<8x32xf32>
    tpu.vector_store %arg7[%51, %c0_16], %50 {strides = array<i32>} : memref<64x32xf32, #tpu.memory_space<vmem>>, vector<8x32xf32>,
    %53 = tpu.concatenate %40, %42 in 1 : vector<8x32xf32>, vector<8x32xf32> -> vector<8x64xf32>
    %c1_i32 = arith.constant 1 : i32
    %c8_i32_17 = arith.constant 8 : i32
    %54 = arith.muli %c1_i32, %c8_i32_17 : i32
    %55 = tpu.assume_multiple %54, 8 : i32
    %c7_i32_18 = arith.constant 7 : i32
    %56 = arith.subi %c7_i32_18, %c1_i32 : i32
    %c8_i32_19 = arith.constant 8 : i32
    %57 = arith.muli %56, %c8_i32_19 : i32
    %58 = tpu.assume_multiple %57, 8 : i32
    %59 = arith.index_cast %55 : i32 to index
    %c0_20 = arith.constant 0 : index
    %60 = vector.load %arg1[%59, %c0_20] : memref<64x128xf32, #tpu.memory_space<vmem>>, vector<8x128xf32>
    %61 = arith.index_cast %58 : i32 to index
    %c0_21 = arith.constant 0 : index
    %62 = vector.load %arg2[%61, %c0_21] : memref<64x128xf32, #tpu.memory_space<vmem>>, vector<8x128xf32>
    %cst_22 = arith.constant dense<0.000000e+00> : vector<8x256xf32>
    %63 = tpu.matmul %53, %3, %cst_22 {dimension_numbers = #tpu.dot_dimension_numbers<[1], [0], [0], [1], [0, 0, 1, 1], [], []>} : vector<8x64xf32>, vector<64x256xf32>, vector<8x256xf32> -> vector<8x256xf32>
    %64 = tpu.concatenate %60, %62 in 1 : vector<8x128xf32>, vector<8x128xf32> -> vector<8x256xf32>
    %65 = arith.addf %63, %64 : vector<8x256xf32>
    %66 = arith.negf %65 : vector<8x256xf32>
    %67 = math.exp %66 : vector<8x256xf32>
    %cst_23 = arith.constant 1.000000e+00 : f32
    %68 = vector.broadcast %cst_23 : f32 to vector<8x256xf32>
    %69 = arith.addf %68, %67 : vector<8x256xf32>
    %70 = arith.divf %68, %69 : vector<8x256xf32>
    %71 = math.tanh %65 : vector<8x256xf32>
    %72 = vector.extract_strided_slice %70 {offsets = [0, 0], sizes = [8, 32], strides = [1, 1]} : vector<8x256xf32> to vector<8x32xf32>
    %73 = vector.extract_strided_slice %70 {offsets = [0, 32], sizes = [8, 32], strides = [1, 1]} : vector<8x256xf32> to vector<8x32xf32>
    %74 = vector.extract_strided_slice %71 {offsets = [0, 64], sizes = [8, 32], strides = [1, 1]} : vector<8x256xf32> to vector<8x32xf32>
    %75 = vector.extract_strided_slice %70 {offsets = [0, 96], sizes = [8, 32], strides = [1, 1]} : vector<8x256xf32> to vector<8x32xf32>
    %76 = vector.extract_strided_slice %70 {offsets = [0, 128], sizes = [8, 32], strides = [1, 1]} : vector<8x256xf32> to vector<8x32xf32>
    %77 = vector.extract_strided_slice %70 {offsets = [0, 160], sizes = [8, 32], strides = [1, 1]} : vector<8x256xf32> to vector<8x32xf32>
    %78 = vector.extract_strided_slice %71 {offsets = [0, 192], sizes = [8, 32], strides = [1, 1]} : vector<8x256xf32> to vector<8x32xf32>
    %79 = vector.extract_strided_slice %70 {offsets = [0, 224], sizes = [8, 32], strides = [1, 1]} : vector<8x256xf32> to vector<8x32xf32>
    %80 = arith.mulf %73, %35 : vector<8x32xf32>
    %81 = arith.mulf %72, %74 : vector<8x32xf32>
    %82 = arith.addf %80, %81 : vector<8x32xf32>
    %83 = arith.mulf %77, %38 : vector<8x32xf32>
    %84 = arith.mulf %76, %78 : vector<8x32xf32>
    %85 = arith.addf %83, %84 : vector<8x32xf32>
    %86 = math.tanh %82 : vector<8x32xf32>
    %87 = arith.mulf %75, %86 : vector<8x32xf32>
    %88 = math.tanh %85 : vector<8x32xf32>
    %89 = arith.mulf %79, %88 : vector<8x32xf32>
    %90 = arith.index_cast %55 : i32 to index
    %c0_24 = arith.constant 0 : index
    %91 = vector.load %arg4[%90, %c0_24] : memref<64x32xf32, #tpu.memory_space<vmem>>, vector<8x32xf32>
    %92 = arith.addf %87, %91 : vector<8x32xf32>
    %93 = arith.index_cast %55 : i32 to index
    %c0_25 = arith.constant 0 : index
    %94 = vector.load %arg6[%93, %c0_25] : memref<64x32xf32, #tpu.memory_space<vmem>>, vector<8x32xf32>
    tpu.vector_store %arg6[%93, %c0_25], %92 {strides = array<i32>} : memref<64x32xf32, #tpu.memory_space<vmem>>, vector<8x32xf32>,
    %95 = arith.index_cast %58 : i32 to index
    %c0_26 = arith.constant 0 : index
    %96 = vector.load %arg5[%95, %c0_26] : memref<64x32xf32, #tpu.memory_space<vmem>>, vector<8x32xf32>
    %97 = arith.addf %89, %96 : vector<8x32xf32>
    %98 = arith.index_cast %58 : i32 to index
    %c0_27 = arith.constant 0 : index
    %99 = vector.load %arg7[%98, %c0_27] : memref<64x32xf32, #tpu.memory_space<vmem>>, vector<8x32xf32>
    tpu.vector_store %arg7[%98, %c0_27], %97 {strides = array<i32>} : memref<64x32xf32, #tpu.memory_space<vmem>>, vector<8x32xf32>,
    %100 = tpu.concatenate %87, %89 in 1 : vector<8x32xf32>, vector<8x32xf32> -> vector<8x64xf32>
    %c2_i32 = arith.constant 2 : i32
    %c8_i32_28 = arith.constant 8 : i32
    %101 = arith.muli %c2_i32, %c8_i32_28 : i32
    %102 = tpu.assume_multiple %101, 8 : i32
    %c7_i32_29 = arith.constant 7 : i32
    %103 = arith.subi %c7_i32_29, %c2_i32 : i32
    %c8_i32_30 = arith.constant 8 : i32
    %104 = arith.muli %103, %c8_i32_30 : i32
    %105 = tpu.assume_multiple %104, 8 : i32
    %106 = arith.index_cast %102 : i32 to index
    %c0_31 = arith.constant 0 : index
    %107 = vector.load %arg1[%106, %c0_31] : memref<64x128xf32, #tpu.memory_space<vmem>>, vector<8x128xf32>
    %108 = arith.index_cast %105 : i32 to index
    %c0_32 = arith.constant 0 : index
    %109 = vector.load %arg2[%108, %c0_32] : memref<64x128xf32, #tpu.memory_space<vmem>>, vector<8x128xf32>
    %cst_33 = arith.constant dense<0.000000e+00> : vector<8x256xf32>
    %110 = tpu.matmul %100, %3, %cst_33 {dimension_numbers = #tpu.dot_dimension_numbers<[1], [0], [0], [1], [0, 0, 1, 1], [], []>} : vector<8x64xf32>, vector<64x256xf32>, vector<8x256xf32> -> vector<8x256xf32>
    %111 = tpu.concatenate %107, %109 in 1 : vector<8x128xf32>, vector<8x128xf32> -> vector<8x256xf32>
    %112 = arith.addf %110, %111 : vector<8x256xf32>
    %113 = arith.negf %112 : vector<8x256xf32>
    %114 = math.exp %113 : vector<8x256xf32>
    %cst_34 = arith.constant 1.000000e+00 : f32
    %115 = vector.broadcast %cst_34 : f32 to vector<8x256xf32>
    %116 = arith.addf %115, %114 : vector<8x256xf32>
    %117 = arith.divf %115, %116 : vector<8x256xf32>
    %118 = math.tanh %112 : vector<8x256xf32>
    %119 = vector.extract_strided_slice %117 {offsets = [0, 0], sizes = [8, 32], strides = [1, 1]} : vector<8x256xf32> to vector<8x32xf32>
    %120 = vector.extract_strided_slice %117 {offsets = [0, 32], sizes = [8, 32], strides = [1, 1]} : vector<8x256xf32> to vector<8x32xf32>
    %121 = vector.extract_strided_slice %118 {offsets = [0, 64], sizes = [8, 32], strides = [1, 1]} : vector<8x256xf32> to vector<8x32xf32>
    %122 = vector.extract_strided_slice %117 {offsets = [0, 96], sizes = [8, 32], strides = [1, 1]} : vector<8x256xf32> to vector<8x32xf32>
    %123 = vector.extract_strided_slice %117 {offsets = [0, 128], sizes = [8, 32], strides = [1, 1]} : vector<8x256xf32> to vector<8x32xf32>
    %124 = vector.extract_strided_slice %117 {offsets = [0, 160], sizes = [8, 32], strides = [1, 1]} : vector<8x256xf32> to vector<8x32xf32>
    %125 = vector.extract_strided_slice %118 {offsets = [0, 192], sizes = [8, 32], strides = [1, 1]} : vector<8x256xf32> to vector<8x32xf32>
    %126 = vector.extract_strided_slice %117 {offsets = [0, 224], sizes = [8, 32], strides = [1, 1]} : vector<8x256xf32> to vector<8x32xf32>
    %127 = arith.mulf %120, %82 : vector<8x32xf32>
    %128 = arith.mulf %119, %121 : vector<8x32xf32>
    %129 = arith.addf %127, %128 : vector<8x32xf32>
    %130 = arith.mulf %124, %85 : vector<8x32xf32>
    %131 = arith.mulf %123, %125 : vector<8x32xf32>
    %132 = arith.addf %130, %131 : vector<8x32xf32>
    %133 = math.tanh %129 : vector<8x32xf32>
    %134 = arith.mulf %122, %133 : vector<8x32xf32>
    %135 = math.tanh %132 : vector<8x32xf32>
    %136 = arith.mulf %126, %135 : vector<8x32xf32>
    %137 = arith.index_cast %102 : i32 to index
    %c0_35 = arith.constant 0 : index
    %138 = vector.load %arg4[%137, %c0_35] : memref<64x32xf32, #tpu.memory_space<vmem>>, vector<8x32xf32>
    %139 = arith.addf %134, %138 : vector<8x32xf32>
    %140 = arith.index_cast %102 : i32 to index
    %c0_36 = arith.constant 0 : index
    %141 = vector.load %arg6[%140, %c0_36] : memref<64x32xf32, #tpu.memory_space<vmem>>, vector<8x32xf32>
    tpu.vector_store %arg6[%140, %c0_36], %139 {strides = array<i32>} : memref<64x32xf32, #tpu.memory_space<vmem>>, vector<8x32xf32>,
    %142 = arith.index_cast %105 : i32 to index
    %c0_37 = arith.constant 0 : index
    %143 = vector.load %arg5[%142, %c0_37] : memref<64x32xf32, #tpu.memory_space<vmem>>, vector<8x32xf32>
    %144 = arith.addf %136, %143 : vector<8x32xf32>
    %145 = arith.index_cast %105 : i32 to index
    %c0_38 = arith.constant 0 : index
    %146 = vector.load %arg7[%145, %c0_38] : memref<64x32xf32, #tpu.memory_space<vmem>>, vector<8x32xf32>
    tpu.vector_store %arg7[%145, %c0_38], %144 {strides = array<i32>} : memref<64x32xf32, #tpu.memory_space<vmem>>, vector<8x32xf32>,
    %147 = tpu.concatenate %134, %136 in 1 : vector<8x32xf32>, vector<8x32xf32> -> vector<8x64xf32>
    %c3_i32 = arith.constant 3 : i32
    %c8_i32_39 = arith.constant 8 : i32
    %148 = arith.muli %c3_i32, %c8_i32_39 : i32
    %149 = tpu.assume_multiple %148, 8 : i32
    %c7_i32_40 = arith.constant 7 : i32
    %150 = arith.subi %c7_i32_40, %c3_i32 : i32
    %c8_i32_41 = arith.constant 8 : i32
    %151 = arith.muli %150, %c8_i32_41 : i32
    %152 = tpu.assume_multiple %151, 8 : i32
    %153 = arith.index_cast %149 : i32 to index
    %c0_42 = arith.constant 0 : index
    %154 = vector.load %arg1[%153, %c0_42] : memref<64x128xf32, #tpu.memory_space<vmem>>, vector<8x128xf32>
    %155 = arith.index_cast %152 : i32 to index
    %c0_43 = arith.constant 0 : index
    %156 = vector.load %arg2[%155, %c0_43] : memref<64x128xf32, #tpu.memory_space<vmem>>, vector<8x128xf32>
    %cst_44 = arith.constant dense<0.000000e+00> : vector<8x256xf32>
    %157 = tpu.matmul %147, %3, %cst_44 {dimension_numbers = #tpu.dot_dimension_numbers<[1], [0], [0], [1], [0, 0, 1, 1], [], []>} : vector<8x64xf32>, vector<64x256xf32>, vector<8x256xf32> -> vector<8x256xf32>
    %158 = tpu.concatenate %154, %156 in 1 : vector<8x128xf32>, vector<8x128xf32> -> vector<8x256xf32>
    %159 = arith.addf %157, %158 : vector<8x256xf32>
    %160 = arith.negf %159 : vector<8x256xf32>
    %161 = math.exp %160 : vector<8x256xf32>
    %cst_45 = arith.constant 1.000000e+00 : f32
    %162 = vector.broadcast %cst_45 : f32 to vector<8x256xf32>
    %163 = arith.addf %162, %161 : vector<8x256xf32>
    %164 = arith.divf %162, %163 : vector<8x256xf32>
    %165 = math.tanh %159 : vector<8x256xf32>
    %166 = vector.extract_strided_slice %164 {offsets = [0, 0], sizes = [8, 32], strides = [1, 1]} : vector<8x256xf32> to vector<8x32xf32>
    %167 = vector.extract_strided_slice %164 {offsets = [0, 32], sizes = [8, 32], strides = [1, 1]} : vector<8x256xf32> to vector<8x32xf32>
    %168 = vector.extract_strided_slice %165 {offsets = [0, 64], sizes = [8, 32], strides = [1, 1]} : vector<8x256xf32> to vector<8x32xf32>
    %169 = vector.extract_strided_slice %164 {offsets = [0, 96], sizes = [8, 32], strides = [1, 1]} : vector<8x256xf32> to vector<8x32xf32>
    %170 = vector.extract_strided_slice %164 {offsets = [0, 128], sizes = [8, 32], strides = [1, 1]} : vector<8x256xf32> to vector<8x32xf32>
    %171 = vector.extract_strided_slice %164 {offsets = [0, 160], sizes = [8, 32], strides = [1, 1]} : vector<8x256xf32> to vector<8x32xf32>
    %172 = vector.extract_strided_slice %165 {offsets = [0, 192], sizes = [8, 32], strides = [1, 1]} : vector<8x256xf32> to vector<8x32xf32>
    %173 = vector.extract_strided_slice %164 {offsets = [0, 224], sizes = [8, 32], strides = [1, 1]} : vector<8x256xf32> to vector<8x32xf32>
    %174 = arith.mulf %167, %129 : vector<8x32xf32>
    %175 = arith.mulf %166, %168 : vector<8x32xf32>
    %176 = arith.addf %174, %175 : vector<8x32xf32>
    %177 = arith.mulf %171, %132 : vector<8x32xf32>
    %178 = arith.mulf %170, %172 : vector<8x32xf32>
    %179 = arith.addf %177, %178 : vector<8x32xf32>
    %180 = math.tanh %176 : vector<8x32xf32>
    %181 = arith.mulf %169, %180 : vector<8x32xf32>
    %182 = math.tanh %179 : vector<8x32xf32>
    %183 = arith.mulf %173, %182 : vector<8x32xf32>
    %184 = arith.index_cast %149 : i32 to index
    %c0_46 = arith.constant 0 : index
    %185 = vector.load %arg4[%184, %c0_46] : memref<64x32xf32, #tpu.memory_space<vmem>>, vector<8x32xf32>
    %186 = arith.addf %181, %185 : vector<8x32xf32>
    %187 = arith.index_cast %149 : i32 to index
    %c0_47 = arith.constant 0 : index
    %188 = vector.load %arg6[%187, %c0_47] : memref<64x32xf32, #tpu.memory_space<vmem>>, vector<8x32xf32>
    tpu.vector_store %arg6[%187, %c0_47], %186 {strides = array<i32>} : memref<64x32xf32, #tpu.memory_space<vmem>>, vector<8x32xf32>,
    %189 = arith.index_cast %152 : i32 to index
    %c0_48 = arith.constant 0 : index
    %190 = vector.load %arg5[%189, %c0_48] : memref<64x32xf32, #tpu.memory_space<vmem>>, vector<8x32xf32>
    %191 = arith.addf %183, %190 : vector<8x32xf32>
    %192 = arith.index_cast %152 : i32 to index
    %c0_49 = arith.constant 0 : index
    %193 = vector.load %arg7[%192, %c0_49] : memref<64x32xf32, #tpu.memory_space<vmem>>, vector<8x32xf32>
    tpu.vector_store %arg7[%192, %c0_49], %191 {strides = array<i32>} : memref<64x32xf32, #tpu.memory_space<vmem>>, vector<8x32xf32>,
    %194 = tpu.concatenate %181, %183 in 1 : vector<8x32xf32>, vector<8x32xf32> -> vector<8x64xf32>
    %c4_i32 = arith.constant 4 : i32
    %c8_i32_50 = arith.constant 8 : i32
    %195 = arith.muli %c4_i32, %c8_i32_50 : i32
    %196 = tpu.assume_multiple %195, 8 : i32
    %c7_i32_51 = arith.constant 7 : i32
    %197 = arith.subi %c7_i32_51, %c4_i32 : i32
    %c8_i32_52 = arith.constant 8 : i32
    %198 = arith.muli %197, %c8_i32_52 : i32
    %199 = tpu.assume_multiple %198, 8 : i32
    %200 = arith.index_cast %196 : i32 to index
    %c0_53 = arith.constant 0 : index
    %201 = vector.load %arg1[%200, %c0_53] : memref<64x128xf32, #tpu.memory_space<vmem>>, vector<8x128xf32>
    %202 = arith.index_cast %199 : i32 to index
    %c0_54 = arith.constant 0 : index
    %203 = vector.load %arg2[%202, %c0_54] : memref<64x128xf32, #tpu.memory_space<vmem>>, vector<8x128xf32>
    %cst_55 = arith.constant dense<0.000000e+00> : vector<8x256xf32>
    %204 = tpu.matmul %194, %3, %cst_55 {dimension_numbers = #tpu.dot_dimension_numbers<[1], [0], [0], [1], [0, 0, 1, 1], [], []>} : vector<8x64xf32>, vector<64x256xf32>, vector<8x256xf32> -> vector<8x256xf32>
    %205 = tpu.concatenate %201, %203 in 1 : vector<8x128xf32>, vector<8x128xf32> -> vector<8x256xf32>
    %206 = arith.addf %204, %205 : vector<8x256xf32>
    %207 = arith.negf %206 : vector<8x256xf32>
    %208 = math.exp %207 : vector<8x256xf32>
    %cst_56 = arith.constant 1.000000e+00 : f32
    %209 = vector.broadcast %cst_56 : f32 to vector<8x256xf32>
    %210 = arith.addf %209, %208 : vector<8x256xf32>
    %211 = arith.divf %209, %210 : vector<8x256xf32>
    %212 = math.tanh %206 : vector<8x256xf32>
    %213 = vector.extract_strided_slice %211 {offsets = [0, 0], sizes = [8, 32], strides = [1, 1]} : vector<8x256xf32> to vector<8x32xf32>
    %214 = vector.extract_strided_slice %211 {offsets = [0, 32], sizes = [8, 32], strides = [1, 1]} : vector<8x256xf32> to vector<8x32xf32>
    %215 = vector.extract_strided_slice %212 {offsets = [0, 64], sizes = [8, 32], strides = [1, 1]} : vector<8x256xf32> to vector<8x32xf32>
    %216 = vector.extract_strided_slice %211 {offsets = [0, 96], sizes = [8, 32], strides = [1, 1]} : vector<8x256xf32> to vector<8x32xf32>
    %217 = vector.extract_strided_slice %211 {offsets = [0, 128], sizes = [8, 32], strides = [1, 1]} : vector<8x256xf32> to vector<8x32xf32>
    %218 = vector.extract_strided_slice %211 {offsets = [0, 160], sizes = [8, 32], strides = [1, 1]} : vector<8x256xf32> to vector<8x32xf32>
    %219 = vector.extract_strided_slice %212 {offsets = [0, 192], sizes = [8, 32], strides = [1, 1]} : vector<8x256xf32> to vector<8x32xf32>
    %220 = vector.extract_strided_slice %211 {offsets = [0, 224], sizes = [8, 32], strides = [1, 1]} : vector<8x256xf32> to vector<8x32xf32>
    %221 = arith.mulf %214, %176 : vector<8x32xf32>
    %222 = arith.mulf %213, %215 : vector<8x32xf32>
    %223 = arith.addf %221, %222 : vector<8x32xf32>
    %224 = arith.mulf %218, %179 : vector<8x32xf32>
    %225 = arith.mulf %217, %219 : vector<8x32xf32>
    %226 = arith.addf %224, %225 : vector<8x32xf32>
    %227 = math.tanh %223 : vector<8x32xf32>
    %228 = arith.mulf %216, %227 : vector<8x32xf32>
    %229 = math.tanh %226 : vector<8x32xf32>
    %230 = arith.mulf %220, %229 : vector<8x32xf32>
    %231 = arith.index_cast %196 : i32 to index
    %c0_57 = arith.constant 0 : index
    %232 = vector.load %arg4[%231, %c0_57] : memref<64x32xf32, #tpu.memory_space<vmem>>, vector<8x32xf32>
    %233 = arith.addf %228, %232 : vector<8x32xf32>
    %234 = arith.index_cast %196 : i32 to index
    %c0_58 = arith.constant 0 : index
    %235 = vector.load %arg6[%234, %c0_58] : memref<64x32xf32, #tpu.memory_space<vmem>>, vector<8x32xf32>
    tpu.vector_store %arg6[%234, %c0_58], %233 {strides = array<i32>} : memref<64x32xf32, #tpu.memory_space<vmem>>, vector<8x32xf32>,
    %236 = arith.index_cast %199 : i32 to index
    %c0_59 = arith.constant 0 : index
    %237 = vector.load %arg5[%236, %c0_59] : memref<64x32xf32, #tpu.memory_space<vmem>>, vector<8x32xf32>
    %238 = arith.addf %230, %237 : vector<8x32xf32>
    %239 = arith.index_cast %199 : i32 to index
    %c0_60 = arith.constant 0 : index
    %240 = vector.load %arg7[%239, %c0_60] : memref<64x32xf32, #tpu.memory_space<vmem>>, vector<8x32xf32>
    tpu.vector_store %arg7[%239, %c0_60], %238 {strides = array<i32>} : memref<64x32xf32, #tpu.memory_space<vmem>>, vector<8x32xf32>,
    %241 = tpu.concatenate %228, %230 in 1 : vector<8x32xf32>, vector<8x32xf32> -> vector<8x64xf32>
    %c5_i32 = arith.constant 5 : i32
    %c8_i32_61 = arith.constant 8 : i32
    %242 = arith.muli %c5_i32, %c8_i32_61 : i32
    %243 = tpu.assume_multiple %242, 8 : i32
    %c7_i32_62 = arith.constant 7 : i32
    %244 = arith.subi %c7_i32_62, %c5_i32 : i32
    %c8_i32_63 = arith.constant 8 : i32
    %245 = arith.muli %244, %c8_i32_63 : i32
    %246 = tpu.assume_multiple %245, 8 : i32
    %247 = arith.index_cast %243 : i32 to index
    %c0_64 = arith.constant 0 : index
    %248 = vector.load %arg1[%247, %c0_64] : memref<64x128xf32, #tpu.memory_space<vmem>>, vector<8x128xf32>
    %249 = arith.index_cast %246 : i32 to index
    %c0_65 = arith.constant 0 : index
    %250 = vector.load %arg2[%249, %c0_65] : memref<64x128xf32, #tpu.memory_space<vmem>>, vector<8x128xf32>
    %cst_66 = arith.constant dense<0.000000e+00> : vector<8x256xf32>
    %251 = tpu.matmul %241, %3, %cst_66 {dimension_numbers = #tpu.dot_dimension_numbers<[1], [0], [0], [1], [0, 0, 1, 1], [], []>} : vector<8x64xf32>, vector<64x256xf32>, vector<8x256xf32> -> vector<8x256xf32>
    %252 = tpu.concatenate %248, %250 in 1 : vector<8x128xf32>, vector<8x128xf32> -> vector<8x256xf32>
    %253 = arith.addf %251, %252 : vector<8x256xf32>
    %254 = arith.negf %253 : vector<8x256xf32>
    %255 = math.exp %254 : vector<8x256xf32>
    %cst_67 = arith.constant 1.000000e+00 : f32
    %256 = vector.broadcast %cst_67 : f32 to vector<8x256xf32>
    %257 = arith.addf %256, %255 : vector<8x256xf32>
    %258 = arith.divf %256, %257 : vector<8x256xf32>
    %259 = math.tanh %253 : vector<8x256xf32>
    %260 = vector.extract_strided_slice %258 {offsets = [0, 0], sizes = [8, 32], strides = [1, 1]} : vector<8x256xf32> to vector<8x32xf32>
    %261 = vector.extract_strided_slice %258 {offsets = [0, 32], sizes = [8, 32], strides = [1, 1]} : vector<8x256xf32> to vector<8x32xf32>
    %262 = vector.extract_strided_slice %259 {offsets = [0, 64], sizes = [8, 32], strides = [1, 1]} : vector<8x256xf32> to vector<8x32xf32>
    %263 = vector.extract_strided_slice %258 {offsets = [0, 96], sizes = [8, 32], strides = [1, 1]} : vector<8x256xf32> to vector<8x32xf32>
    %264 = vector.extract_strided_slice %258 {offsets = [0, 128], sizes = [8, 32], strides = [1, 1]} : vector<8x256xf32> to vector<8x32xf32>
    %265 = vector.extract_strided_slice %258 {offsets = [0, 160], sizes = [8, 32], strides = [1, 1]} : vector<8x256xf32> to vector<8x32xf32>
    %266 = vector.extract_strided_slice %259 {offsets = [0, 192], sizes = [8, 32], strides = [1, 1]} : vector<8x256xf32> to vector<8x32xf32>
    %267 = vector.extract_strided_slice %258 {offsets = [0, 224], sizes = [8, 32], strides = [1, 1]} : vector<8x256xf32> to vector<8x32xf32>
    %268 = arith.mulf %261, %223 : vector<8x32xf32>
    %269 = arith.mulf %260, %262 : vector<8x32xf32>
    %270 = arith.addf %268, %269 : vector<8x32xf32>
    %271 = arith.mulf %265, %226 : vector<8x32xf32>
    %272 = arith.mulf %264, %266 : vector<8x32xf32>
    %273 = arith.addf %271, %272 : vector<8x32xf32>
    %274 = math.tanh %270 : vector<8x32xf32>
    %275 = arith.mulf %263, %274 : vector<8x32xf32>
    %276 = math.tanh %273 : vector<8x32xf32>
    %277 = arith.mulf %267, %276 : vector<8x32xf32>
    %278 = arith.index_cast %243 : i32 to index
    %c0_68 = arith.constant 0 : index
    %279 = vector.load %arg4[%278, %c0_68] : memref<64x32xf32, #tpu.memory_space<vmem>>, vector<8x32xf32>
    %280 = arith.addf %275, %279 : vector<8x32xf32>
    %281 = arith.index_cast %243 : i32 to index
    %c0_69 = arith.constant 0 : index
    %282 = vector.load %arg6[%281, %c0_69] : memref<64x32xf32, #tpu.memory_space<vmem>>, vector<8x32xf32>
    tpu.vector_store %arg6[%281, %c0_69], %280 {strides = array<i32>} : memref<64x32xf32, #tpu.memory_space<vmem>>, vector<8x32xf32>,
    %283 = arith.index_cast %246 : i32 to index
    %c0_70 = arith.constant 0 : index
    %284 = vector.load %arg5[%283, %c0_70] : memref<64x32xf32, #tpu.memory_space<vmem>>, vector<8x32xf32>
    %285 = arith.addf %277, %284 : vector<8x32xf32>
    %286 = arith.index_cast %246 : i32 to index
    %c0_71 = arith.constant 0 : index
    %287 = vector.load %arg7[%286, %c0_71] : memref<64x32xf32, #tpu.memory_space<vmem>>, vector<8x32xf32>
    tpu.vector_store %arg7[%286, %c0_71], %285 {strides = array<i32>} : memref<64x32xf32, #tpu.memory_space<vmem>>, vector<8x32xf32>,
    %288 = tpu.concatenate %275, %277 in 1 : vector<8x32xf32>, vector<8x32xf32> -> vector<8x64xf32>
    %c6_i32 = arith.constant 6 : i32
    %c8_i32_72 = arith.constant 8 : i32
    %289 = arith.muli %c6_i32, %c8_i32_72 : i32
    %290 = tpu.assume_multiple %289, 8 : i32
    %c7_i32_73 = arith.constant 7 : i32
    %291 = arith.subi %c7_i32_73, %c6_i32 : i32
    %c8_i32_74 = arith.constant 8 : i32
    %292 = arith.muli %291, %c8_i32_74 : i32
    %293 = tpu.assume_multiple %292, 8 : i32
    %294 = arith.index_cast %290 : i32 to index
    %c0_75 = arith.constant 0 : index
    %295 = vector.load %arg1[%294, %c0_75] : memref<64x128xf32, #tpu.memory_space<vmem>>, vector<8x128xf32>
    %296 = arith.index_cast %293 : i32 to index
    %c0_76 = arith.constant 0 : index
    %297 = vector.load %arg2[%296, %c0_76] : memref<64x128xf32, #tpu.memory_space<vmem>>, vector<8x128xf32>
    %cst_77 = arith.constant dense<0.000000e+00> : vector<8x256xf32>
    %298 = tpu.matmul %288, %3, %cst_77 {dimension_numbers = #tpu.dot_dimension_numbers<[1], [0], [0], [1], [0, 0, 1, 1], [], []>} : vector<8x64xf32>, vector<64x256xf32>, vector<8x256xf32> -> vector<8x256xf32>
    %299 = tpu.concatenate %295, %297 in 1 : vector<8x128xf32>, vector<8x128xf32> -> vector<8x256xf32>
    %300 = arith.addf %298, %299 : vector<8x256xf32>
    %301 = arith.negf %300 : vector<8x256xf32>
    %302 = math.exp %301 : vector<8x256xf32>
    %cst_78 = arith.constant 1.000000e+00 : f32
    %303 = vector.broadcast %cst_78 : f32 to vector<8x256xf32>
    %304 = arith.addf %303, %302 : vector<8x256xf32>
    %305 = arith.divf %303, %304 : vector<8x256xf32>
    %306 = math.tanh %300 : vector<8x256xf32>
    %307 = vector.extract_strided_slice %305 {offsets = [0, 0], sizes = [8, 32], strides = [1, 1]} : vector<8x256xf32> to vector<8x32xf32>
    %308 = vector.extract_strided_slice %305 {offsets = [0, 32], sizes = [8, 32], strides = [1, 1]} : vector<8x256xf32> to vector<8x32xf32>
    %309 = vector.extract_strided_slice %306 {offsets = [0, 64], sizes = [8, 32], strides = [1, 1]} : vector<8x256xf32> to vector<8x32xf32>
    %310 = vector.extract_strided_slice %305 {offsets = [0, 96], sizes = [8, 32], strides = [1, 1]} : vector<8x256xf32> to vector<8x32xf32>
    %311 = vector.extract_strided_slice %305 {offsets = [0, 128], sizes = [8, 32], strides = [1, 1]} : vector<8x256xf32> to vector<8x32xf32>
    %312 = vector.extract_strided_slice %305 {offsets = [0, 160], sizes = [8, 32], strides = [1, 1]} : vector<8x256xf32> to vector<8x32xf32>
    %313 = vector.extract_strided_slice %306 {offsets = [0, 192], sizes = [8, 32], strides = [1, 1]} : vector<8x256xf32> to vector<8x32xf32>
    %314 = vector.extract_strided_slice %305 {offsets = [0, 224], sizes = [8, 32], strides = [1, 1]} : vector<8x256xf32> to vector<8x32xf32>
    %315 = arith.mulf %308, %270 : vector<8x32xf32>
    %316 = arith.mulf %307, %309 : vector<8x32xf32>
    %317 = arith.addf %315, %316 : vector<8x32xf32>
    %318 = arith.mulf %312, %273 : vector<8x32xf32>
    %319 = arith.mulf %311, %313 : vector<8x32xf32>
    %320 = arith.addf %318, %319 : vector<8x32xf32>
    %321 = math.tanh %317 : vector<8x32xf32>
    %322 = arith.mulf %310, %321 : vector<8x32xf32>
    %323 = math.tanh %320 : vector<8x32xf32>
    %324 = arith.mulf %314, %323 : vector<8x32xf32>
    %325 = arith.index_cast %290 : i32 to index
    %c0_79 = arith.constant 0 : index
    %326 = vector.load %arg4[%325, %c0_79] : memref<64x32xf32, #tpu.memory_space<vmem>>, vector<8x32xf32>
    %327 = arith.addf %322, %326 : vector<8x32xf32>
    %328 = arith.index_cast %290 : i32 to index
    %c0_80 = arith.constant 0 : index
    %329 = vector.load %arg6[%328, %c0_80] : memref<64x32xf32, #tpu.memory_space<vmem>>, vector<8x32xf32>
    tpu.vector_store %arg6[%328, %c0_80], %327 {strides = array<i32>} : memref<64x32xf32, #tpu.memory_space<vmem>>, vector<8x32xf32>,
    %330 = arith.index_cast %293 : i32 to index
    %c0_81 = arith.constant 0 : index
    %331 = vector.load %arg5[%330, %c0_81] : memref<64x32xf32, #tpu.memory_space<vmem>>, vector<8x32xf32>
    %332 = arith.addf %324, %331 : vector<8x32xf32>
    %333 = arith.index_cast %293 : i32 to index
    %c0_82 = arith.constant 0 : index
    %334 = vector.load %arg7[%333, %c0_82] : memref<64x32xf32, #tpu.memory_space<vmem>>, vector<8x32xf32>
    tpu.vector_store %arg7[%333, %c0_82], %332 {strides = array<i32>} : memref<64x32xf32, #tpu.memory_space<vmem>>, vector<8x32xf32>,
    %335 = tpu.concatenate %322, %324 in 1 : vector<8x32xf32>, vector<8x32xf32> -> vector<8x64xf32>
    %c7_i32_83 = arith.constant 7 : i32
    %c8_i32_84 = arith.constant 8 : i32
    %336 = arith.muli %c7_i32_83, %c8_i32_84 : i32
    %337 = tpu.assume_multiple %336, 8 : i32
    %c7_i32_85 = arith.constant 7 : i32
    %338 = arith.subi %c7_i32_85, %c7_i32_83 : i32
    %c8_i32_86 = arith.constant 8 : i32
    %339 = arith.muli %338, %c8_i32_86 : i32
    %340 = tpu.assume_multiple %339, 8 : i32
    %341 = arith.index_cast %337 : i32 to index
    %c0_87 = arith.constant 0 : index
    %342 = vector.load %arg1[%341, %c0_87] : memref<64x128xf32, #tpu.memory_space<vmem>>, vector<8x128xf32>
    %343 = arith.index_cast %340 : i32 to index
    %c0_88 = arith.constant 0 : index
    %344 = vector.load %arg2[%343, %c0_88] : memref<64x128xf32, #tpu.memory_space<vmem>>, vector<8x128xf32>
    %cst_89 = arith.constant dense<0.000000e+00> : vector<8x256xf32>
    %345 = tpu.matmul %335, %3, %cst_89 {dimension_numbers = #tpu.dot_dimension_numbers<[1], [0], [0], [1], [0, 0, 1, 1], [], []>} : vector<8x64xf32>, vector<64x256xf32>, vector<8x256xf32> -> vector<8x256xf32>
    %346 = tpu.concatenate %342, %344 in 1 : vector<8x128xf32>, vector<8x128xf32> -> vector<8x256xf32>
    %347 = arith.addf %345, %346 : vector<8x256xf32>
    %348 = arith.negf %347 : vector<8x256xf32>
    %349 = math.exp %348 : vector<8x256xf32>
    %cst_90 = arith.constant 1.000000e+00 : f32
    %350 = vector.broadcast %cst_90 : f32 to vector<8x256xf32>
    %351 = arith.addf %350, %349 : vector<8x256xf32>
    %352 = arith.divf %350, %351 : vector<8x256xf32>
    %353 = math.tanh %347 : vector<8x256xf32>
    %354 = vector.extract_strided_slice %352 {offsets = [0, 0], sizes = [8, 32], strides = [1, 1]} : vector<8x256xf32> to vector<8x32xf32>
    %355 = vector.extract_strided_slice %352 {offsets = [0, 32], sizes = [8, 32], strides = [1, 1]} : vector<8x256xf32> to vector<8x32xf32>
    %356 = vector.extract_strided_slice %353 {offsets = [0, 64], sizes = [8, 32], strides = [1, 1]} : vector<8x256xf32> to vector<8x32xf32>
    %357 = vector.extract_strided_slice %352 {offsets = [0, 96], sizes = [8, 32], strides = [1, 1]} : vector<8x256xf32> to vector<8x32xf32>
    %358 = vector.extract_strided_slice %352 {offsets = [0, 128], sizes = [8, 32], strides = [1, 1]} : vector<8x256xf32> to vector<8x32xf32>
    %359 = vector.extract_strided_slice %352 {offsets = [0, 160], sizes = [8, 32], strides = [1, 1]} : vector<8x256xf32> to vector<8x32xf32>
    %360 = vector.extract_strided_slice %353 {offsets = [0, 192], sizes = [8, 32], strides = [1, 1]} : vector<8x256xf32> to vector<8x32xf32>
    %361 = vector.extract_strided_slice %352 {offsets = [0, 224], sizes = [8, 32], strides = [1, 1]} : vector<8x256xf32> to vector<8x32xf32>
    %362 = arith.mulf %355, %317 : vector<8x32xf32>
    %363 = arith.mulf %354, %356 : vector<8x32xf32>
    %364 = arith.addf %362, %363 : vector<8x32xf32>
    %365 = arith.mulf %359, %320 : vector<8x32xf32>
    %366 = arith.mulf %358, %360 : vector<8x32xf32>
    %367 = arith.addf %365, %366 : vector<8x32xf32>
    %368 = math.tanh %364 : vector<8x32xf32>
    %369 = arith.mulf %357, %368 : vector<8x32xf32>
    %370 = math.tanh %367 : vector<8x32xf32>
    %371 = arith.mulf %361, %370 : vector<8x32xf32>
    %372 = arith.index_cast %337 : i32 to index
    %c0_91 = arith.constant 0 : index
    %373 = vector.load %arg4[%372, %c0_91] : memref<64x32xf32, #tpu.memory_space<vmem>>, vector<8x32xf32>
    %374 = arith.addf %369, %373 : vector<8x32xf32>
    %375 = arith.index_cast %337 : i32 to index
    %c0_92 = arith.constant 0 : index
    %376 = vector.load %arg6[%375, %c0_92] : memref<64x32xf32, #tpu.memory_space<vmem>>, vector<8x32xf32>
    tpu.vector_store %arg6[%375, %c0_92], %374 {strides = array<i32>} : memref<64x32xf32, #tpu.memory_space<vmem>>, vector<8x32xf32>,
    %377 = arith.index_cast %340 : i32 to index
    %c0_93 = arith.constant 0 : index
    %378 = vector.load %arg5[%377, %c0_93] : memref<64x32xf32, #tpu.memory_space<vmem>>, vector<8x32xf32>
    %379 = arith.addf %371, %378 : vector<8x32xf32>
    %380 = arith.index_cast %340 : i32 to index
    %c0_94 = arith.constant 0 : index
    %381 = vector.load %arg7[%380, %c0_94] : memref<64x32xf32, #tpu.memory_space<vmem>>, vector<8x32xf32>
    tpu.vector_store %arg7[%380, %c0_94], %379 {strides = array<i32>} : memref<64x32xf32, #tpu.memory_space<vmem>>, vector<8x32xf32>,
    %382 = tpu.concatenate %369, %371 in 1 : vector<8x32xf32>, vector<8x32xf32> -> vector<8x64xf32>
    %c8_i32_95 = arith.constant 8 : i32
    %c0_96 = arith.constant 0 : index
    %c0_97 = arith.constant 0 : index
    %383 = vector.load %arg8[%c0_96, %c0_97] : memref<8x64xf32, #tpu.memory_space<vmem>>, vector<8x64xf32>
    tpu.vector_store %arg8[%c0_96, %c0_97], %382 {strides = array<i32>} : memref<8x64xf32, #tpu.memory_space<vmem>>, vector<8x64xf32>,
    %c0_98 = arith.constant 0 : index
    %c0_99 = arith.constant 0 : index
    %384 = vector.load %arg9[%c0_98, %c0_99] : memref<8x32xf32, #tpu.memory_space<vmem>>, vector<8x32xf32>
    tpu.vector_store %arg9[%c0_98, %c0_99], %364 {strides = array<i32>} : memref<8x32xf32, #tpu.memory_space<vmem>>, vector<8x32xf32>,
    %c0_100 = arith.constant 0 : index
    %c0_101 = arith.constant 0 : index
    %385 = vector.load %arg10[%c0_100, %c0_101] : memref<8x32xf32, #tpu.memory_space<vmem>>, vector<8x32xf32>
    tpu.vector_store %arg10[%c0_100, %c0_101], %367 {strides = array<i32>} : memref<8x32xf32, #tpu.memory_space<vmem>>, vector<8x32xf32>,
    return
  }
  func.func @transform_0(%arg0: i32) -> (i32, i32) {
    %c0_i32 = arith.constant 0 : i32
    %c0_i32_0 = arith.constant 0 : i32
    return %arg0, %c0_i32 : i32, i32
  }
  func.func @transform_1(%arg0: i32) -> (i32, i32) {
    %c0_i32 = arith.constant 0 : i32
    %0 = arith.subi %c0_i32, %arg0 : i32
    %c0_i32_0 = arith.constant 0 : i32
    %c0_i32_1 = arith.constant 0 : i32
    return %0, %c0_i32_0 : i32, i32
  }
  func.func @transform_2(%arg0: i32) -> (i32, i32) {
    %c0_i32 = arith.constant 0 : i32
    %c0_i32_0 = arith.constant 0 : i32
    %c0_i32_1 = arith.constant 0 : i32
    return %c0_i32, %c0_i32_0 : i32, i32
  }
  func.func @transform_3(%arg0: i32) -> (i32, i32) {
    %c0_i32 = arith.constant 0 : i32
    %c0_i32_0 = arith.constant 0 : i32
    return %arg0, %c0_i32 : i32, i32
  }
  func.func @transform_4(%arg0: i32) -> (i32, i32) {
    %c0_i32 = arith.constant 0 : i32
    %0 = arith.subi %c0_i32, %arg0 : i32
    %c0_i32_0 = arith.constant 0 : i32
    %c0_i32_1 = arith.constant 0 : i32
    return %0, %c0_i32_0 : i32, i32
  }
  func.func @transform_5(%arg0: i32) -> (i32, i32) {
    %c0_i32 = arith.constant 0 : i32
    %c0_i32_0 = arith.constant 0 : i32
    return %arg0, %c0_i32 : i32, i32
  }
  func.func @transform_6(%arg0: i32) -> (i32, i32) {
    %c0_i32 = arith.constant 0 : i32
    %0 = arith.subi %c0_i32, %arg0 : i32
    %c0_i32_0 = arith.constant 0 : i32
    %c0_i32_1 = arith.constant 0 : i32
    return %0, %c0_i32_0 : i32, i32
  }
}

module attributes {stable_mosaic.version = 11 : i64} {
  func.func @kernel(%arg0: i32, %arg1: memref<64x16xf32, #tpu.memory_space<vmem>>, %arg2: memref<16x256xf32, #tpu.memory_space<vmem>>, %arg3: memref<1x256xf32, #tpu.memory_space<vmem>>, %arg4: memref<64x128xf32, #tpu.memory_space<vmem>>, %arg5: memref<64x128xf32, #tpu.memory_space<vmem>>) attributes {dimension_semantics = [#tpu.dimension_semantics<parallel>], iteration_bounds = array<i64: 1>, scalar_prefetch = 0 : i64, scratch_operands = 0 : i64, tpu.core_type = #tpu.core_type<tc>, window_params = [{transform_indices = @transform_0, window_bounds = array<i64: 64, 16>}, {pipeline_mode = #tpu.pipeline_mode<synchronous>, transform_indices = @transform_1, window_bounds = array<i64: 16, 256>}, {pipeline_mode = #tpu.pipeline_mode<synchronous>, transform_indices = @transform_2, window_bounds = array<i64: 1, 256>}, {transform_indices = @transform_3, window_bounds = array<i64: 64, 128>}, {transform_indices = @transform_4, window_bounds = array<i64: 64, 128>}]} {
    %c0 = arith.constant 0 : index
    %c0_0 = arith.constant 0 : index
    %0 = vector.load %arg1[%c0, %c0_0] : memref<64x16xf32, #tpu.memory_space<vmem>>, vector<64x16xf32>
    %c0_1 = arith.constant 0 : index
    %c0_2 = arith.constant 0 : index
    %1 = vector.load %arg2[%c0_1, %c0_2] : memref<16x256xf32, #tpu.memory_space<vmem>>, vector<16x256xf32>
    %cst = arith.constant dense<0.000000e+00> : vector<64x256xf32>
    %2 = tpu.matmul %0, %1, %cst {dimension_numbers = #tpu.dot_dimension_numbers<[1], [0], [0], [1], [0, 0, 1, 1], [], []>} : vector<64x16xf32>, vector<16x256xf32>, vector<64x256xf32> -> vector<64x256xf32>
    %c0_3 = arith.constant 0 : index
    %c0_4 = arith.constant 0 : index
    %3 = vector.load %arg3[%c0_3, %c0_4] : memref<1x256xf32, #tpu.memory_space<vmem>>, vector<1x256xf32>
    %4 = vector.broadcast %3 : vector<1x256xf32> to vector<64x256xf32>
    %5 = arith.addf %2, %4 : vector<64x256xf32>
    %6 = vector.extract_strided_slice %5 {offsets = [0, 0], sizes = [64, 128], strides = [1, 1]} : vector<64x256xf32> to vector<64x128xf32>
    %c0_5 = arith.constant 0 : index
    %c0_6 = arith.constant 0 : index
    %7 = vector.load %arg4[%c0_5, %c0_6] : memref<64x128xf32, #tpu.memory_space<vmem>>, vector<64x128xf32>
    tpu.vector_store %arg4[%c0_5, %c0_6], %6 {strides = array<i32>} : memref<64x128xf32, #tpu.memory_space<vmem>>, vector<64x128xf32>,
    %8 = vector.extract_strided_slice %5 {offsets = [0, 128], sizes = [64, 128], strides = [1, 1]} : vector<64x256xf32> to vector<64x128xf32>
    %c0_7 = arith.constant 0 : index
    %c0_8 = arith.constant 0 : index
    %9 = vector.load %arg5[%c0_7, %c0_8] : memref<64x128xf32, #tpu.memory_space<vmem>>, vector<64x128xf32>
    tpu.vector_store %arg5[%c0_7, %c0_8], %8 {strides = array<i32>} : memref<64x128xf32, #tpu.memory_space<vmem>>, vector<64x128xf32>,
    return
  }
  func.func @transform_0(%arg0: i32) -> (i32, i32) {
    %c0_i32 = arith.constant 0 : i32
    %c0_i32_0 = arith.constant 0 : i32
    return %arg0, %c0_i32 : i32, i32
  }
  func.func @transform_1(%arg0: i32) -> (i32, i32) {
    %c0_i32 = arith.constant 0 : i32
    %c0_i32_0 = arith.constant 0 : i32
    %c0_i32_1 = arith.constant 0 : i32
    return %c0_i32, %c0_i32_0 : i32, i32
  }
  func.func @transform_2(%arg0: i32) -> (i32, i32) {
    %c0_i32 = arith.constant 0 : i32
    %c0_i32_0 = arith.constant 0 : i32
    %c0_i32_1 = arith.constant 0 : i32
    return %c0_i32, %c0_i32_0 : i32, i32
  }
  func.func @transform_3(%arg0: i32) -> (i32, i32) {
    %c0_i32 = arith.constant 0 : i32
    %c0_i32_0 = arith.constant 0 : i32
    return %arg0, %c0_i32 : i32, i32
  }
  func.func @transform_4(%arg0: i32) -> (i32, i32) {
    %c0_i32 = arith.constant 0 : i32
    %c0_i32_0 = arith.constant 0 : i32
    return %arg0, %c0_i32 : i32, i32
  }
}

module attributes {stable_mosaic.version = 11 : i64} {
  func.func @kernel(%arg0: i32, %arg1: memref<64x32xf32, #tpu.memory_space<vmem>>, %arg2: memref<64x32xf32, #tpu.memory_space<vmem>>, %arg3: memref<32x256xf32, #tpu.memory_space<vmem>>, %arg4: memref<32x256xf32, #tpu.memory_space<vmem>>, %arg5: memref<1x256xf32, #tpu.memory_space<vmem>>, %arg6: memref<64x128xf32, #tpu.memory_space<vmem>>, %arg7: memref<64x128xf32, #tpu.memory_space<vmem>>) attributes {dimension_semantics = [#tpu.dimension_semantics<parallel>], iteration_bounds = array<i64: 1>, scalar_prefetch = 0 : i64, scratch_operands = 0 : i64, tpu.core_type = #tpu.core_type<tc>, window_params = [{transform_indices = @transform_0, window_bounds = array<i64: 64, 32>}, {transform_indices = @transform_1, window_bounds = array<i64: 64, 32>}, {pipeline_mode = #tpu.pipeline_mode<synchronous>, transform_indices = @transform_2, window_bounds = array<i64: 32, 256>}, {pipeline_mode = #tpu.pipeline_mode<synchronous>, transform_indices = @transform_3, window_bounds = array<i64: 32, 256>}, {pipeline_mode = #tpu.pipeline_mode<synchronous>, transform_indices = @transform_4, window_bounds = array<i64: 1, 256>}, {transform_indices = @transform_5, window_bounds = array<i64: 64, 128>}, {transform_indices = @transform_6, window_bounds = array<i64: 64, 128>}]} {
    %c0 = arith.constant 0 : index
    %c0_0 = arith.constant 0 : index
    %0 = vector.load %arg1[%c0, %c0_0] : memref<64x32xf32, #tpu.memory_space<vmem>>, vector<64x32xf32>
    %c0_1 = arith.constant 0 : index
    %c0_2 = arith.constant 0 : index
    %1 = vector.load %arg3[%c0_1, %c0_2] : memref<32x256xf32, #tpu.memory_space<vmem>>, vector<32x256xf32>
    %cst = arith.constant dense<0.000000e+00> : vector<64x256xf32>
    %2 = tpu.matmul %0, %1, %cst {dimension_numbers = #tpu.dot_dimension_numbers<[1], [0], [0], [1], [0, 0, 1, 1], [], []>} : vector<64x32xf32>, vector<32x256xf32>, vector<64x256xf32> -> vector<64x256xf32>
    %c0_3 = arith.constant 0 : index
    %c0_4 = arith.constant 0 : index
    %3 = vector.load %arg2[%c0_3, %c0_4] : memref<64x32xf32, #tpu.memory_space<vmem>>, vector<64x32xf32>
    %c0_5 = arith.constant 0 : index
    %c0_6 = arith.constant 0 : index
    %4 = vector.load %arg4[%c0_5, %c0_6] : memref<32x256xf32, #tpu.memory_space<vmem>>, vector<32x256xf32>
    %cst_7 = arith.constant dense<0.000000e+00> : vector<64x256xf32>
    %5 = tpu.matmul %3, %4, %cst_7 {dimension_numbers = #tpu.dot_dimension_numbers<[1], [0], [0], [1], [0, 0, 1, 1], [], []>} : vector<64x32xf32>, vector<32x256xf32>, vector<64x256xf32> -> vector<64x256xf32>
    %6 = arith.addf %2, %5 : vector<64x256xf32>
    %c0_8 = arith.constant 0 : index
    %c0_9 = arith.constant 0 : index
    %7 = vector.load %arg5[%c0_8, %c0_9] : memref<1x256xf32, #tpu.memory_space<vmem>>, vector<1x256xf32>
    %8 = vector.broadcast %7 : vector<1x256xf32> to vector<64x256xf32>
    %9 = arith.addf %6, %8 : vector<64x256xf32>
    %10 = vector.extract_strided_slice %9 {offsets = [0, 0], sizes = [64, 128], strides = [1, 1]} : vector<64x256xf32> to vector<64x128xf32>
    %c0_10 = arith.constant 0 : index
    %c0_11 = arith.constant 0 : index
    %11 = vector.load %arg6[%c0_10, %c0_11] : memref<64x128xf32, #tpu.memory_space<vmem>>, vector<64x128xf32>
    tpu.vector_store %arg6[%c0_10, %c0_11], %10 {strides = array<i32>} : memref<64x128xf32, #tpu.memory_space<vmem>>, vector<64x128xf32>,
    %12 = vector.extract_strided_slice %9 {offsets = [0, 128], sizes = [64, 128], strides = [1, 1]} : vector<64x256xf32> to vector<64x128xf32>
    %c0_12 = arith.constant 0 : index
    %c0_13 = arith.constant 0 : index
    %13 = vector.load %arg7[%c0_12, %c0_13] : memref<64x128xf32, #tpu.memory_space<vmem>>, vector<64x128xf32>
    tpu.vector_store %arg7[%c0_12, %c0_13], %12 {strides = array<i32>} : memref<64x128xf32, #tpu.memory_space<vmem>>, vector<64x128xf32>,
    return
  }
  func.func @transform_0(%arg0: i32) -> (i32, i32) {
    %c0_i32 = arith.constant 0 : i32
    %c0_i32_0 = arith.constant 0 : i32
    return %arg0, %c0_i32 : i32, i32
  }
  func.func @transform_1(%arg0: i32) -> (i32, i32) {
    %c0_i32 = arith.constant 0 : i32
    %c0_i32_0 = arith.constant 0 : i32
    return %arg0, %c0_i32 : i32, i32
  }
  func.func @transform_2(%arg0: i32) -> (i32, i32) {
    %c0_i32 = arith.constant 0 : i32
    %c0_i32_0 = arith.constant 0 : i32
    %c0_i32_1 = arith.constant 0 : i32
    return %c0_i32, %c0_i32_0 : i32, i32
  }
  func.func @transform_3(%arg0: i32) -> (i32, i32) {
    %c0_i32 = arith.constant 0 : i32
    %c0_i32_0 = arith.constant 0 : i32
    %c0_i32_1 = arith.constant 0 : i32
    return %c0_i32, %c0_i32_0 : i32, i32
  }
  func.func @transform_4(%arg0: i32) -> (i32, i32) {
    %c0_i32 = arith.constant 0 : i32
    %c0_i32_0 = arith.constant 0 : i32
    %c0_i32_1 = arith.constant 0 : i32
    return %c0_i32, %c0_i32_0 : i32, i32
  }
  func.func @transform_5(%arg0: i32) -> (i32, i32) {
    %c0_i32 = arith.constant 0 : i32
    %c0_i32_0 = arith.constant 0 : i32
    return %arg0, %c0_i32 : i32, i32
  }
  func.func @transform_6(%arg0: i32) -> (i32, i32) {
    %c0_i32 = arith.constant 0 : i32
    %c0_i32_0 = arith.constant 0 : i32
    return %arg0, %c0_i32 : i32, i32
  }
}

module attributes {stable_mosaic.version = 11 : i64} {
  func.func @kernel(%arg0: i32, %arg1: memref<64x128xf32, #tpu.memory_space<vmem>>, %arg2: memref<64x128xf32, #tpu.memory_space<vmem>>, %arg3: memref<64x256xf32, #tpu.memory_space<vmem>>, %arg4: memref<64x32xf32, #tpu.memory_space<vmem>>, %arg5: memref<64x32xf32, #tpu.memory_space<vmem>>, %arg6: memref<8x64xf32, #tpu.memory_space<vmem>>, %arg7: memref<8x32xf32, #tpu.memory_space<vmem>>, %arg8: memref<8x32xf32, #tpu.memory_space<vmem>>) attributes {dimension_semantics = [#tpu.dimension_semantics<arbitrary>], iteration_bounds = array<i64: 1>, scalar_prefetch = 0 : i64, scratch_operands = 3 : i64, tpu.core_type = #tpu.core_type<tc>, window_params = [{transform_indices = @transform_0, window_bounds = array<i64: 64, 128>}, {transform_indices = @transform_1, window_bounds = array<i64: 64, 128>}, {pipeline_mode = #tpu.pipeline_mode<synchronous>, transform_indices = @transform_2, window_bounds = array<i64: 64, 256>}, {transform_indices = @transform_3, window_bounds = array<i64: 64, 32>}, {transform_indices = @transform_4, window_bounds = array<i64: 64, 32>}]} {
    %c0_i32 = arith.constant 0 : i32
    %0 = arith.cmpi eq, %arg0, %c0_i32 : i32
    %1 = arith.extui %0 : i1 to i32
    %c0_i32_0 = arith.constant 0 : i32
    %2 = arith.cmpi ne, %1, %c0_i32_0 : i32
    scf.if %2 {
      %cst_86 = arith.constant 0.000000e+00 : f32
      %338 = vector.broadcast %cst_86 : f32 to vector<8x64xf32>
      %c0_87 = arith.constant 0 : index
      %c0_88 = arith.constant 0 : index
      %339 = vector.load %arg6[%c0_87, %c0_88] : memref<8x64xf32, #tpu.memory_space<vmem>>, vector<8x64xf32>
      tpu.vector_store %arg6[%c0_87, %c0_88], %338 {strides = array<i32>} : memref<8x64xf32, #tpu.memory_space<vmem>>, vector<8x64xf32>,
      %cst_89 = arith.constant 0.000000e+00 : f32
      %340 = vector.broadcast %cst_89 : f32 to vector<8x32xf32>
      %c0_90 = arith.constant 0 : index
      %c0_91 = arith.constant 0 : index
      %341 = vector.load %arg7[%c0_90, %c0_91] : memref<8x32xf32, #tpu.memory_space<vmem>>, vector<8x32xf32>
      tpu.vector_store %arg7[%c0_90, %c0_91], %340 {strides = array<i32>} : memref<8x32xf32, #tpu.memory_space<vmem>>, vector<8x32xf32>,
      %cst_92 = arith.constant 0.000000e+00 : f32
      %342 = vector.broadcast %cst_92 : f32 to vector<8x32xf32>
      %c0_93 = arith.constant 0 : index
      %c0_94 = arith.constant 0 : index
      %343 = vector.load %arg8[%c0_93, %c0_94] : memref<8x32xf32, #tpu.memory_space<vmem>>, vector<8x32xf32>
      tpu.vector_store %arg8[%c0_93, %c0_94], %342 {strides = array<i32>} : memref<8x32xf32, #tpu.memory_space<vmem>>, vector<8x32xf32>,
    } else {
    }
    %c0 = arith.constant 0 : index
    %c0_1 = arith.constant 0 : index
    %3 = vector.load %arg3[%c0, %c0_1] : memref<64x256xf32, #tpu.memory_space<vmem>>, vector<64x256xf32>
    %c0_2 = arith.constant 0 : index
    %c0_3 = arith.constant 0 : index
    %4 = vector.load %arg6[%c0_2, %c0_3] : memref<8x64xf32, #tpu.memory_space<vmem>>, vector<8x64xf32>
    %c0_4 = arith.constant 0 : index
    %c0_5 = arith.constant 0 : index
    %5 = vector.load %arg7[%c0_4, %c0_5] : memref<8x32xf32, #tpu.memory_space<vmem>>, vector<8x32xf32>
    %c0_6 = arith.constant 0 : index
    %c0_7 = arith.constant 0 : index
    %6 = vector.load %arg8[%c0_6, %c0_7] : memref<8x32xf32, #tpu.memory_space<vmem>>, vector<8x32xf32>
    %c0_i32_8 = arith.constant 0 : i32
    %c8_i32 = arith.constant 8 : i32
    %7 = arith.muli %c0_i32_8, %c8_i32 : i32
    %8 = tpu.assume_multiple %7, 8 : i32
    %c7_i32 = arith.constant 7 : i32
    %9 = arith.subi %c7_i32, %c0_i32_8 : i32
    %c8_i32_9 = arith.constant 8 : i32
    %10 = arith.muli %9, %c8_i32_9 : i32
    %11 = tpu.assume_multiple %10, 8 : i32
    %12 = arith.index_cast %8 : i32 to index
    %c0_10 = arith.constant 0 : index
    %13 = vector.load %arg1[%12, %c0_10] : memref<64x128xf32, #tpu.memory_space<vmem>>, vector<8x128xf32>
    %14 = arith.index_cast %11 : i32 to index
    %c0_11 = arith.constant 0 : index
    %15 = vector.load %arg2[%14, %c0_11] : memref<64x128xf32, #tpu.memory_space<vmem>>, vector<8x128xf32>
    %cst = arith.constant dense<0.000000e+00> : vector<8x256xf32>
    %16 = tpu.matmul %4, %3, %cst {dimension_numbers = #tpu.dot_dimension_numbers<[1], [0], [0], [1], [0, 0, 1, 1], [], []>} : vector<8x64xf32>, vector<64x256xf32>, vector<8x256xf32> -> vector<8x256xf32>
    %17 = tpu.concatenate %13, %15 in 1 : vector<8x128xf32>, vector<8x128xf32> -> vector<8x256xf32>
    %18 = arith.addf %16, %17 : vector<8x256xf32>
    %19 = arith.negf %18 : vector<8x256xf32>
    %20 = math.exp %19 : vector<8x256xf32>
    %cst_12 = arith.constant 1.000000e+00 : f32
    %21 = vector.broadcast %cst_12 : f32 to vector<8x256xf32>
    %22 = arith.addf %21, %20 : vector<8x256xf32>
    %23 = arith.divf %21, %22 : vector<8x256xf32>
    %24 = math.tanh %18 : vector<8x256xf32>
    %25 = vector.extract_strided_slice %23 {offsets = [0, 0], sizes = [8, 32], strides = [1, 1]} : vector<8x256xf32> to vector<8x32xf32>
    %26 = vector.extract_strided_slice %23 {offsets = [0, 32], sizes = [8, 32], strides = [1, 1]} : vector<8x256xf32> to vector<8x32xf32>
    %27 = vector.extract_strided_slice %24 {offsets = [0, 64], sizes = [8, 32], strides = [1, 1]} : vector<8x256xf32> to vector<8x32xf32>
    %28 = vector.extract_strided_slice %23 {offsets = [0, 96], sizes = [8, 32], strides = [1, 1]} : vector<8x256xf32> to vector<8x32xf32>
    %29 = vector.extract_strided_slice %23 {offsets = [0, 128], sizes = [8, 32], strides = [1, 1]} : vector<8x256xf32> to vector<8x32xf32>
    %30 = vector.extract_strided_slice %23 {offsets = [0, 160], sizes = [8, 32], strides = [1, 1]} : vector<8x256xf32> to vector<8x32xf32>
    %31 = vector.extract_strided_slice %24 {offsets = [0, 192], sizes = [8, 32], strides = [1, 1]} : vector<8x256xf32> to vector<8x32xf32>
    %32 = vector.extract_strided_slice %23 {offsets = [0, 224], sizes = [8, 32], strides = [1, 1]} : vector<8x256xf32> to vector<8x32xf32>
    %33 = arith.mulf %26, %5 : vector<8x32xf32>
    %34 = arith.mulf %25, %27 : vector<8x32xf32>
    %35 = arith.addf %33, %34 : vector<8x32xf32>
    %36 = arith.mulf %30, %6 : vector<8x32xf32>
    %37 = arith.mulf %29, %31 : vector<8x32xf32>
    %38 = arith.addf %36, %37 : vector<8x32xf32>
    %39 = math.tanh %35 : vector<8x32xf32>
    %40 = arith.mulf %28, %39 : vector<8x32xf32>
    %41 = math.tanh %38 : vector<8x32xf32>
    %42 = arith.mulf %32, %41 : vector<8x32xf32>
    %43 = arith.index_cast %8 : i32 to index
    %c0_13 = arith.constant 0 : index
    %44 = vector.load %arg4[%43, %c0_13] : memref<64x32xf32, #tpu.memory_space<vmem>>, vector<8x32xf32>
    tpu.vector_store %arg4[%43, %c0_13], %40 {strides = array<i32>} : memref<64x32xf32, #tpu.memory_space<vmem>>, vector<8x32xf32>,
    %45 = arith.index_cast %11 : i32 to index
    %c0_14 = arith.constant 0 : index
    %46 = vector.load %arg5[%45, %c0_14] : memref<64x32xf32, #tpu.memory_space<vmem>>, vector<8x32xf32>
    tpu.vector_store %arg5[%45, %c0_14], %42 {strides = array<i32>} : memref<64x32xf32, #tpu.memory_space<vmem>>, vector<8x32xf32>,
    %47 = tpu.concatenate %40, %42 in 1 : vector<8x32xf32>, vector<8x32xf32> -> vector<8x64xf32>
    %c1_i32 = arith.constant 1 : i32
    %c8_i32_15 = arith.constant 8 : i32
    %48 = arith.muli %c1_i32, %c8_i32_15 : i32
    %49 = tpu.assume_multiple %48, 8 : i32
    %c7_i32_16 = arith.constant 7 : i32
    %50 = arith.subi %c7_i32_16, %c1_i32 : i32
    %c8_i32_17 = arith.constant 8 : i32
    %51 = arith.muli %50, %c8_i32_17 : i32
    %52 = tpu.assume_multiple %51, 8 : i32
    %53 = arith.index_cast %49 : i32 to index
    %c0_18 = arith.constant 0 : index
    %54 = vector.load %arg1[%53, %c0_18] : memref<64x128xf32, #tpu.memory_space<vmem>>, vector<8x128xf32>
    %55 = arith.index_cast %52 : i32 to index
    %c0_19 = arith.constant 0 : index
    %56 = vector.load %arg2[%55, %c0_19] : memref<64x128xf32, #tpu.memory_space<vmem>>, vector<8x128xf32>
    %cst_20 = arith.constant dense<0.000000e+00> : vector<8x256xf32>
    %57 = tpu.matmul %47, %3, %cst_20 {dimension_numbers = #tpu.dot_dimension_numbers<[1], [0], [0], [1], [0, 0, 1, 1], [], []>} : vector<8x64xf32>, vector<64x256xf32>, vector<8x256xf32> -> vector<8x256xf32>
    %58 = tpu.concatenate %54, %56 in 1 : vector<8x128xf32>, vector<8x128xf32> -> vector<8x256xf32>
    %59 = arith.addf %57, %58 : vector<8x256xf32>
    %60 = arith.negf %59 : vector<8x256xf32>
    %61 = math.exp %60 : vector<8x256xf32>
    %cst_21 = arith.constant 1.000000e+00 : f32
    %62 = vector.broadcast %cst_21 : f32 to vector<8x256xf32>
    %63 = arith.addf %62, %61 : vector<8x256xf32>
    %64 = arith.divf %62, %63 : vector<8x256xf32>
    %65 = math.tanh %59 : vector<8x256xf32>
    %66 = vector.extract_strided_slice %64 {offsets = [0, 0], sizes = [8, 32], strides = [1, 1]} : vector<8x256xf32> to vector<8x32xf32>
    %67 = vector.extract_strided_slice %64 {offsets = [0, 32], sizes = [8, 32], strides = [1, 1]} : vector<8x256xf32> to vector<8x32xf32>
    %68 = vector.extract_strided_slice %65 {offsets = [0, 64], sizes = [8, 32], strides = [1, 1]} : vector<8x256xf32> to vector<8x32xf32>
    %69 = vector.extract_strided_slice %64 {offsets = [0, 96], sizes = [8, 32], strides = [1, 1]} : vector<8x256xf32> to vector<8x32xf32>
    %70 = vector.extract_strided_slice %64 {offsets = [0, 128], sizes = [8, 32], strides = [1, 1]} : vector<8x256xf32> to vector<8x32xf32>
    %71 = vector.extract_strided_slice %64 {offsets = [0, 160], sizes = [8, 32], strides = [1, 1]} : vector<8x256xf32> to vector<8x32xf32>
    %72 = vector.extract_strided_slice %65 {offsets = [0, 192], sizes = [8, 32], strides = [1, 1]} : vector<8x256xf32> to vector<8x32xf32>
    %73 = vector.extract_strided_slice %64 {offsets = [0, 224], sizes = [8, 32], strides = [1, 1]} : vector<8x256xf32> to vector<8x32xf32>
    %74 = arith.mulf %67, %35 : vector<8x32xf32>
    %75 = arith.mulf %66, %68 : vector<8x32xf32>
    %76 = arith.addf %74, %75 : vector<8x32xf32>
    %77 = arith.mulf %71, %38 : vector<8x32xf32>
    %78 = arith.mulf %70, %72 : vector<8x32xf32>
    %79 = arith.addf %77, %78 : vector<8x32xf32>
    %80 = math.tanh %76 : vector<8x32xf32>
    %81 = arith.mulf %69, %80 : vector<8x32xf32>
    %82 = math.tanh %79 : vector<8x32xf32>
    %83 = arith.mulf %73, %82 : vector<8x32xf32>
    %84 = arith.index_cast %49 : i32 to index
    %c0_22 = arith.constant 0 : index
    %85 = vector.load %arg4[%84, %c0_22] : memref<64x32xf32, #tpu.memory_space<vmem>>, vector<8x32xf32>
    tpu.vector_store %arg4[%84, %c0_22], %81 {strides = array<i32>} : memref<64x32xf32, #tpu.memory_space<vmem>>, vector<8x32xf32>,
    %86 = arith.index_cast %52 : i32 to index
    %c0_23 = arith.constant 0 : index
    %87 = vector.load %arg5[%86, %c0_23] : memref<64x32xf32, #tpu.memory_space<vmem>>, vector<8x32xf32>
    tpu.vector_store %arg5[%86, %c0_23], %83 {strides = array<i32>} : memref<64x32xf32, #tpu.memory_space<vmem>>, vector<8x32xf32>,
    %88 = tpu.concatenate %81, %83 in 1 : vector<8x32xf32>, vector<8x32xf32> -> vector<8x64xf32>
    %c2_i32 = arith.constant 2 : i32
    %c8_i32_24 = arith.constant 8 : i32
    %89 = arith.muli %c2_i32, %c8_i32_24 : i32
    %90 = tpu.assume_multiple %89, 8 : i32
    %c7_i32_25 = arith.constant 7 : i32
    %91 = arith.subi %c7_i32_25, %c2_i32 : i32
    %c8_i32_26 = arith.constant 8 : i32
    %92 = arith.muli %91, %c8_i32_26 : i32
    %93 = tpu.assume_multiple %92, 8 : i32
    %94 = arith.index_cast %90 : i32 to index
    %c0_27 = arith.constant 0 : index
    %95 = vector.load %arg1[%94, %c0_27] : memref<64x128xf32, #tpu.memory_space<vmem>>, vector<8x128xf32>
    %96 = arith.index_cast %93 : i32 to index
    %c0_28 = arith.constant 0 : index
    %97 = vector.load %arg2[%96, %c0_28] : memref<64x128xf32, #tpu.memory_space<vmem>>, vector<8x128xf32>
    %cst_29 = arith.constant dense<0.000000e+00> : vector<8x256xf32>
    %98 = tpu.matmul %88, %3, %cst_29 {dimension_numbers = #tpu.dot_dimension_numbers<[1], [0], [0], [1], [0, 0, 1, 1], [], []>} : vector<8x64xf32>, vector<64x256xf32>, vector<8x256xf32> -> vector<8x256xf32>
    %99 = tpu.concatenate %95, %97 in 1 : vector<8x128xf32>, vector<8x128xf32> -> vector<8x256xf32>
    %100 = arith.addf %98, %99 : vector<8x256xf32>
    %101 = arith.negf %100 : vector<8x256xf32>
    %102 = math.exp %101 : vector<8x256xf32>
    %cst_30 = arith.constant 1.000000e+00 : f32
    %103 = vector.broadcast %cst_30 : f32 to vector<8x256xf32>
    %104 = arith.addf %103, %102 : vector<8x256xf32>
    %105 = arith.divf %103, %104 : vector<8x256xf32>
    %106 = math.tanh %100 : vector<8x256xf32>
    %107 = vector.extract_strided_slice %105 {offsets = [0, 0], sizes = [8, 32], strides = [1, 1]} : vector<8x256xf32> to vector<8x32xf32>
    %108 = vector.extract_strided_slice %105 {offsets = [0, 32], sizes = [8, 32], strides = [1, 1]} : vector<8x256xf32> to vector<8x32xf32>
    %109 = vector.extract_strided_slice %106 {offsets = [0, 64], sizes = [8, 32], strides = [1, 1]} : vector<8x256xf32> to vector<8x32xf32>
    %110 = vector.extract_strided_slice %105 {offsets = [0, 96], sizes = [8, 32], strides = [1, 1]} : vector<8x256xf32> to vector<8x32xf32>
    %111 = vector.extract_strided_slice %105 {offsets = [0, 128], sizes = [8, 32], strides = [1, 1]} : vector<8x256xf32> to vector<8x32xf32>
    %112 = vector.extract_strided_slice %105 {offsets = [0, 160], sizes = [8, 32], strides = [1, 1]} : vector<8x256xf32> to vector<8x32xf32>
    %113 = vector.extract_strided_slice %106 {offsets = [0, 192], sizes = [8, 32], strides = [1, 1]} : vector<8x256xf32> to vector<8x32xf32>
    %114 = vector.extract_strided_slice %105 {offsets = [0, 224], sizes = [8, 32], strides = [1, 1]} : vector<8x256xf32> to vector<8x32xf32>
    %115 = arith.mulf %108, %76 : vector<8x32xf32>
    %116 = arith.mulf %107, %109 : vector<8x32xf32>
    %117 = arith.addf %115, %116 : vector<8x32xf32>
    %118 = arith.mulf %112, %79 : vector<8x32xf32>
    %119 = arith.mulf %111, %113 : vector<8x32xf32>
    %120 = arith.addf %118, %119 : vector<8x32xf32>
    %121 = math.tanh %117 : vector<8x32xf32>
    %122 = arith.mulf %110, %121 : vector<8x32xf32>
    %123 = math.tanh %120 : vector<8x32xf32>
    %124 = arith.mulf %114, %123 : vector<8x32xf32>
    %125 = arith.index_cast %90 : i32 to index
    %c0_31 = arith.constant 0 : index
    %126 = vector.load %arg4[%125, %c0_31] : memref<64x32xf32, #tpu.memory_space<vmem>>, vector<8x32xf32>
    tpu.vector_store %arg4[%125, %c0_31], %122 {strides = array<i32>} : memref<64x32xf32, #tpu.memory_space<vmem>>, vector<8x32xf32>,
    %127 = arith.index_cast %93 : i32 to index
    %c0_32 = arith.constant 0 : index
    %128 = vector.load %arg5[%127, %c0_32] : memref<64x32xf32, #tpu.memory_space<vmem>>, vector<8x32xf32>
    tpu.vector_store %arg5[%127, %c0_32], %124 {strides = array<i32>} : memref<64x32xf32, #tpu.memory_space<vmem>>, vector<8x32xf32>,
    %129 = tpu.concatenate %122, %124 in 1 : vector<8x32xf32>, vector<8x32xf32> -> vector<8x64xf32>
    %c3_i32 = arith.constant 3 : i32
    %c8_i32_33 = arith.constant 8 : i32
    %130 = arith.muli %c3_i32, %c8_i32_33 : i32
    %131 = tpu.assume_multiple %130, 8 : i32
    %c7_i32_34 = arith.constant 7 : i32
    %132 = arith.subi %c7_i32_34, %c3_i32 : i32
    %c8_i32_35 = arith.constant 8 : i32
    %133 = arith.muli %132, %c8_i32_35 : i32
    %134 = tpu.assume_multiple %133, 8 : i32
    %135 = arith.index_cast %131 : i32 to index
    %c0_36 = arith.constant 0 : index
    %136 = vector.load %arg1[%135, %c0_36] : memref<64x128xf32, #tpu.memory_space<vmem>>, vector<8x128xf32>
    %137 = arith.index_cast %134 : i32 to index
    %c0_37 = arith.constant 0 : index
    %138 = vector.load %arg2[%137, %c0_37] : memref<64x128xf32, #tpu.memory_space<vmem>>, vector<8x128xf32>
    %cst_38 = arith.constant dense<0.000000e+00> : vector<8x256xf32>
    %139 = tpu.matmul %129, %3, %cst_38 {dimension_numbers = #tpu.dot_dimension_numbers<[1], [0], [0], [1], [0, 0, 1, 1], [], []>} : vector<8x64xf32>, vector<64x256xf32>, vector<8x256xf32> -> vector<8x256xf32>
    %140 = tpu.concatenate %136, %138 in 1 : vector<8x128xf32>, vector<8x128xf32> -> vector<8x256xf32>
    %141 = arith.addf %139, %140 : vector<8x256xf32>
    %142 = arith.negf %141 : vector<8x256xf32>
    %143 = math.exp %142 : vector<8x256xf32>
    %cst_39 = arith.constant 1.000000e+00 : f32
    %144 = vector.broadcast %cst_39 : f32 to vector<8x256xf32>
    %145 = arith.addf %144, %143 : vector<8x256xf32>
    %146 = arith.divf %144, %145 : vector<8x256xf32>
    %147 = math.tanh %141 : vector<8x256xf32>
    %148 = vector.extract_strided_slice %146 {offsets = [0, 0], sizes = [8, 32], strides = [1, 1]} : vector<8x256xf32> to vector<8x32xf32>
    %149 = vector.extract_strided_slice %146 {offsets = [0, 32], sizes = [8, 32], strides = [1, 1]} : vector<8x256xf32> to vector<8x32xf32>
    %150 = vector.extract_strided_slice %147 {offsets = [0, 64], sizes = [8, 32], strides = [1, 1]} : vector<8x256xf32> to vector<8x32xf32>
    %151 = vector.extract_strided_slice %146 {offsets = [0, 96], sizes = [8, 32], strides = [1, 1]} : vector<8x256xf32> to vector<8x32xf32>
    %152 = vector.extract_strided_slice %146 {offsets = [0, 128], sizes = [8, 32], strides = [1, 1]} : vector<8x256xf32> to vector<8x32xf32>
    %153 = vector.extract_strided_slice %146 {offsets = [0, 160], sizes = [8, 32], strides = [1, 1]} : vector<8x256xf32> to vector<8x32xf32>
    %154 = vector.extract_strided_slice %147 {offsets = [0, 192], sizes = [8, 32], strides = [1, 1]} : vector<8x256xf32> to vector<8x32xf32>
    %155 = vector.extract_strided_slice %146 {offsets = [0, 224], sizes = [8, 32], strides = [1, 1]} : vector<8x256xf32> to vector<8x32xf32>
    %156 = arith.mulf %149, %117 : vector<8x32xf32>
    %157 = arith.mulf %148, %150 : vector<8x32xf32>
    %158 = arith.addf %156, %157 : vector<8x32xf32>
    %159 = arith.mulf %153, %120 : vector<8x32xf32>
    %160 = arith.mulf %152, %154 : vector<8x32xf32>
    %161 = arith.addf %159, %160 : vector<8x32xf32>
    %162 = math.tanh %158 : vector<8x32xf32>
    %163 = arith.mulf %151, %162 : vector<8x32xf32>
    %164 = math.tanh %161 : vector<8x32xf32>
    %165 = arith.mulf %155, %164 : vector<8x32xf32>
    %166 = arith.index_cast %131 : i32 to index
    %c0_40 = arith.constant 0 : index
    %167 = vector.load %arg4[%166, %c0_40] : memref<64x32xf32, #tpu.memory_space<vmem>>, vector<8x32xf32>
    tpu.vector_store %arg4[%166, %c0_40], %163 {strides = array<i32>} : memref<64x32xf32, #tpu.memory_space<vmem>>, vector<8x32xf32>,
    %168 = arith.index_cast %134 : i32 to index
    %c0_41 = arith.constant 0 : index
    %169 = vector.load %arg5[%168, %c0_41] : memref<64x32xf32, #tpu.memory_space<vmem>>, vector<8x32xf32>
    tpu.vector_store %arg5[%168, %c0_41], %165 {strides = array<i32>} : memref<64x32xf32, #tpu.memory_space<vmem>>, vector<8x32xf32>,
    %170 = tpu.concatenate %163, %165 in 1 : vector<8x32xf32>, vector<8x32xf32> -> vector<8x64xf32>
    %c4_i32 = arith.constant 4 : i32
    %c8_i32_42 = arith.constant 8 : i32
    %171 = arith.muli %c4_i32, %c8_i32_42 : i32
    %172 = tpu.assume_multiple %171, 8 : i32
    %c7_i32_43 = arith.constant 7 : i32
    %173 = arith.subi %c7_i32_43, %c4_i32 : i32
    %c8_i32_44 = arith.constant 8 : i32
    %174 = arith.muli %173, %c8_i32_44 : i32
    %175 = tpu.assume_multiple %174, 8 : i32
    %176 = arith.index_cast %172 : i32 to index
    %c0_45 = arith.constant 0 : index
    %177 = vector.load %arg1[%176, %c0_45] : memref<64x128xf32, #tpu.memory_space<vmem>>, vector<8x128xf32>
    %178 = arith.index_cast %175 : i32 to index
    %c0_46 = arith.constant 0 : index
    %179 = vector.load %arg2[%178, %c0_46] : memref<64x128xf32, #tpu.memory_space<vmem>>, vector<8x128xf32>
    %cst_47 = arith.constant dense<0.000000e+00> : vector<8x256xf32>
    %180 = tpu.matmul %170, %3, %cst_47 {dimension_numbers = #tpu.dot_dimension_numbers<[1], [0], [0], [1], [0, 0, 1, 1], [], []>} : vector<8x64xf32>, vector<64x256xf32>, vector<8x256xf32> -> vector<8x256xf32>
    %181 = tpu.concatenate %177, %179 in 1 : vector<8x128xf32>, vector<8x128xf32> -> vector<8x256xf32>
    %182 = arith.addf %180, %181 : vector<8x256xf32>
    %183 = arith.negf %182 : vector<8x256xf32>
    %184 = math.exp %183 : vector<8x256xf32>
    %cst_48 = arith.constant 1.000000e+00 : f32
    %185 = vector.broadcast %cst_48 : f32 to vector<8x256xf32>
    %186 = arith.addf %185, %184 : vector<8x256xf32>
    %187 = arith.divf %185, %186 : vector<8x256xf32>
    %188 = math.tanh %182 : vector<8x256xf32>
    %189 = vector.extract_strided_slice %187 {offsets = [0, 0], sizes = [8, 32], strides = [1, 1]} : vector<8x256xf32> to vector<8x32xf32>
    %190 = vector.extract_strided_slice %187 {offsets = [0, 32], sizes = [8, 32], strides = [1, 1]} : vector<8x256xf32> to vector<8x32xf32>
    %191 = vector.extract_strided_slice %188 {offsets = [0, 64], sizes = [8, 32], strides = [1, 1]} : vector<8x256xf32> to vector<8x32xf32>
    %192 = vector.extract_strided_slice %187 {offsets = [0, 96], sizes = [8, 32], strides = [1, 1]} : vector<8x256xf32> to vector<8x32xf32>
    %193 = vector.extract_strided_slice %187 {offsets = [0, 128], sizes = [8, 32], strides = [1, 1]} : vector<8x256xf32> to vector<8x32xf32>
    %194 = vector.extract_strided_slice %187 {offsets = [0, 160], sizes = [8, 32], strides = [1, 1]} : vector<8x256xf32> to vector<8x32xf32>
    %195 = vector.extract_strided_slice %188 {offsets = [0, 192], sizes = [8, 32], strides = [1, 1]} : vector<8x256xf32> to vector<8x32xf32>
    %196 = vector.extract_strided_slice %187 {offsets = [0, 224], sizes = [8, 32], strides = [1, 1]} : vector<8x256xf32> to vector<8x32xf32>
    %197 = arith.mulf %190, %158 : vector<8x32xf32>
    %198 = arith.mulf %189, %191 : vector<8x32xf32>
    %199 = arith.addf %197, %198 : vector<8x32xf32>
    %200 = arith.mulf %194, %161 : vector<8x32xf32>
    %201 = arith.mulf %193, %195 : vector<8x32xf32>
    %202 = arith.addf %200, %201 : vector<8x32xf32>
    %203 = math.tanh %199 : vector<8x32xf32>
    %204 = arith.mulf %192, %203 : vector<8x32xf32>
    %205 = math.tanh %202 : vector<8x32xf32>
    %206 = arith.mulf %196, %205 : vector<8x32xf32>
    %207 = arith.index_cast %172 : i32 to index
    %c0_49 = arith.constant 0 : index
    %208 = vector.load %arg4[%207, %c0_49] : memref<64x32xf32, #tpu.memory_space<vmem>>, vector<8x32xf32>
    tpu.vector_store %arg4[%207, %c0_49], %204 {strides = array<i32>} : memref<64x32xf32, #tpu.memory_space<vmem>>, vector<8x32xf32>,
    %209 = arith.index_cast %175 : i32 to index
    %c0_50 = arith.constant 0 : index
    %210 = vector.load %arg5[%209, %c0_50] : memref<64x32xf32, #tpu.memory_space<vmem>>, vector<8x32xf32>
    tpu.vector_store %arg5[%209, %c0_50], %206 {strides = array<i32>} : memref<64x32xf32, #tpu.memory_space<vmem>>, vector<8x32xf32>,
    %211 = tpu.concatenate %204, %206 in 1 : vector<8x32xf32>, vector<8x32xf32> -> vector<8x64xf32>
    %c5_i32 = arith.constant 5 : i32
    %c8_i32_51 = arith.constant 8 : i32
    %212 = arith.muli %c5_i32, %c8_i32_51 : i32
    %213 = tpu.assume_multiple %212, 8 : i32
    %c7_i32_52 = arith.constant 7 : i32
    %214 = arith.subi %c7_i32_52, %c5_i32 : i32
    %c8_i32_53 = arith.constant 8 : i32
    %215 = arith.muli %214, %c8_i32_53 : i32
    %216 = tpu.assume_multiple %215, 8 : i32
    %217 = arith.index_cast %213 : i32 to index
    %c0_54 = arith.constant 0 : index
    %218 = vector.load %arg1[%217, %c0_54] : memref<64x128xf32, #tpu.memory_space<vmem>>, vector<8x128xf32>
    %219 = arith.index_cast %216 : i32 to index
    %c0_55 = arith.constant 0 : index
    %220 = vector.load %arg2[%219, %c0_55] : memref<64x128xf32, #tpu.memory_space<vmem>>, vector<8x128xf32>
    %cst_56 = arith.constant dense<0.000000e+00> : vector<8x256xf32>
    %221 = tpu.matmul %211, %3, %cst_56 {dimension_numbers = #tpu.dot_dimension_numbers<[1], [0], [0], [1], [0, 0, 1, 1], [], []>} : vector<8x64xf32>, vector<64x256xf32>, vector<8x256xf32> -> vector<8x256xf32>
    %222 = tpu.concatenate %218, %220 in 1 : vector<8x128xf32>, vector<8x128xf32> -> vector<8x256xf32>
    %223 = arith.addf %221, %222 : vector<8x256xf32>
    %224 = arith.negf %223 : vector<8x256xf32>
    %225 = math.exp %224 : vector<8x256xf32>
    %cst_57 = arith.constant 1.000000e+00 : f32
    %226 = vector.broadcast %cst_57 : f32 to vector<8x256xf32>
    %227 = arith.addf %226, %225 : vector<8x256xf32>
    %228 = arith.divf %226, %227 : vector<8x256xf32>
    %229 = math.tanh %223 : vector<8x256xf32>
    %230 = vector.extract_strided_slice %228 {offsets = [0, 0], sizes = [8, 32], strides = [1, 1]} : vector<8x256xf32> to vector<8x32xf32>
    %231 = vector.extract_strided_slice %228 {offsets = [0, 32], sizes = [8, 32], strides = [1, 1]} : vector<8x256xf32> to vector<8x32xf32>
    %232 = vector.extract_strided_slice %229 {offsets = [0, 64], sizes = [8, 32], strides = [1, 1]} : vector<8x256xf32> to vector<8x32xf32>
    %233 = vector.extract_strided_slice %228 {offsets = [0, 96], sizes = [8, 32], strides = [1, 1]} : vector<8x256xf32> to vector<8x32xf32>
    %234 = vector.extract_strided_slice %228 {offsets = [0, 128], sizes = [8, 32], strides = [1, 1]} : vector<8x256xf32> to vector<8x32xf32>
    %235 = vector.extract_strided_slice %228 {offsets = [0, 160], sizes = [8, 32], strides = [1, 1]} : vector<8x256xf32> to vector<8x32xf32>
    %236 = vector.extract_strided_slice %229 {offsets = [0, 192], sizes = [8, 32], strides = [1, 1]} : vector<8x256xf32> to vector<8x32xf32>
    %237 = vector.extract_strided_slice %228 {offsets = [0, 224], sizes = [8, 32], strides = [1, 1]} : vector<8x256xf32> to vector<8x32xf32>
    %238 = arith.mulf %231, %199 : vector<8x32xf32>
    %239 = arith.mulf %230, %232 : vector<8x32xf32>
    %240 = arith.addf %238, %239 : vector<8x32xf32>
    %241 = arith.mulf %235, %202 : vector<8x32xf32>
    %242 = arith.mulf %234, %236 : vector<8x32xf32>
    %243 = arith.addf %241, %242 : vector<8x32xf32>
    %244 = math.tanh %240 : vector<8x32xf32>
    %245 = arith.mulf %233, %244 : vector<8x32xf32>
    %246 = math.tanh %243 : vector<8x32xf32>
    %247 = arith.mulf %237, %246 : vector<8x32xf32>
    %248 = arith.index_cast %213 : i32 to index
    %c0_58 = arith.constant 0 : index
    %249 = vector.load %arg4[%248, %c0_58] : memref<64x32xf32, #tpu.memory_space<vmem>>, vector<8x32xf32>
    tpu.vector_store %arg4[%248, %c0_58], %245 {strides = array<i32>} : memref<64x32xf32, #tpu.memory_space<vmem>>, vector<8x32xf32>,
    %250 = arith.index_cast %216 : i32 to index
    %c0_59 = arith.constant 0 : index
    %251 = vector.load %arg5[%250, %c0_59] : memref<64x32xf32, #tpu.memory_space<vmem>>, vector<8x32xf32>
    tpu.vector_store %arg5[%250, %c0_59], %247 {strides = array<i32>} : memref<64x32xf32, #tpu.memory_space<vmem>>, vector<8x32xf32>,
    %252 = tpu.concatenate %245, %247 in 1 : vector<8x32xf32>, vector<8x32xf32> -> vector<8x64xf32>
    %c6_i32 = arith.constant 6 : i32
    %c8_i32_60 = arith.constant 8 : i32
    %253 = arith.muli %c6_i32, %c8_i32_60 : i32
    %254 = tpu.assume_multiple %253, 8 : i32
    %c7_i32_61 = arith.constant 7 : i32
    %255 = arith.subi %c7_i32_61, %c6_i32 : i32
    %c8_i32_62 = arith.constant 8 : i32
    %256 = arith.muli %255, %c8_i32_62 : i32
    %257 = tpu.assume_multiple %256, 8 : i32
    %258 = arith.index_cast %254 : i32 to index
    %c0_63 = arith.constant 0 : index
    %259 = vector.load %arg1[%258, %c0_63] : memref<64x128xf32, #tpu.memory_space<vmem>>, vector<8x128xf32>
    %260 = arith.index_cast %257 : i32 to index
    %c0_64 = arith.constant 0 : index
    %261 = vector.load %arg2[%260, %c0_64] : memref<64x128xf32, #tpu.memory_space<vmem>>, vector<8x128xf32>
    %cst_65 = arith.constant dense<0.000000e+00> : vector<8x256xf32>
    %262 = tpu.matmul %252, %3, %cst_65 {dimension_numbers = #tpu.dot_dimension_numbers<[1], [0], [0], [1], [0, 0, 1, 1], [], []>} : vector<8x64xf32>, vector<64x256xf32>, vector<8x256xf32> -> vector<8x256xf32>
    %263 = tpu.concatenate %259, %261 in 1 : vector<8x128xf32>, vector<8x128xf32> -> vector<8x256xf32>
    %264 = arith.addf %262, %263 : vector<8x256xf32>
    %265 = arith.negf %264 : vector<8x256xf32>
    %266 = math.exp %265 : vector<8x256xf32>
    %cst_66 = arith.constant 1.000000e+00 : f32
    %267 = vector.broadcast %cst_66 : f32 to vector<8x256xf32>
    %268 = arith.addf %267, %266 : vector<8x256xf32>
    %269 = arith.divf %267, %268 : vector<8x256xf32>
    %270 = math.tanh %264 : vector<8x256xf32>
    %271 = vector.extract_strided_slice %269 {offsets = [0, 0], sizes = [8, 32], strides = [1, 1]} : vector<8x256xf32> to vector<8x32xf32>
    %272 = vector.extract_strided_slice %269 {offsets = [0, 32], sizes = [8, 32], strides = [1, 1]} : vector<8x256xf32> to vector<8x32xf32>
    %273 = vector.extract_strided_slice %270 {offsets = [0, 64], sizes = [8, 32], strides = [1, 1]} : vector<8x256xf32> to vector<8x32xf32>
    %274 = vector.extract_strided_slice %269 {offsets = [0, 96], sizes = [8, 32], strides = [1, 1]} : vector<8x256xf32> to vector<8x32xf32>
    %275 = vector.extract_strided_slice %269 {offsets = [0, 128], sizes = [8, 32], strides = [1, 1]} : vector<8x256xf32> to vector<8x32xf32>
    %276 = vector.extract_strided_slice %269 {offsets = [0, 160], sizes = [8, 32], strides = [1, 1]} : vector<8x256xf32> to vector<8x32xf32>
    %277 = vector.extract_strided_slice %270 {offsets = [0, 192], sizes = [8, 32], strides = [1, 1]} : vector<8x256xf32> to vector<8x32xf32>
    %278 = vector.extract_strided_slice %269 {offsets = [0, 224], sizes = [8, 32], strides = [1, 1]} : vector<8x256xf32> to vector<8x32xf32>
    %279 = arith.mulf %272, %240 : vector<8x32xf32>
    %280 = arith.mulf %271, %273 : vector<8x32xf32>
    %281 = arith.addf %279, %280 : vector<8x32xf32>
    %282 = arith.mulf %276, %243 : vector<8x32xf32>
    %283 = arith.mulf %275, %277 : vector<8x32xf32>
    %284 = arith.addf %282, %283 : vector<8x32xf32>
    %285 = math.tanh %281 : vector<8x32xf32>
    %286 = arith.mulf %274, %285 : vector<8x32xf32>
    %287 = math.tanh %284 : vector<8x32xf32>
    %288 = arith.mulf %278, %287 : vector<8x32xf32>
    %289 = arith.index_cast %254 : i32 to index
    %c0_67 = arith.constant 0 : index
    %290 = vector.load %arg4[%289, %c0_67] : memref<64x32xf32, #tpu.memory_space<vmem>>, vector<8x32xf32>
    tpu.vector_store %arg4[%289, %c0_67], %286 {strides = array<i32>} : memref<64x32xf32, #tpu.memory_space<vmem>>, vector<8x32xf32>,
    %291 = arith.index_cast %257 : i32 to index
    %c0_68 = arith.constant 0 : index
    %292 = vector.load %arg5[%291, %c0_68] : memref<64x32xf32, #tpu.memory_space<vmem>>, vector<8x32xf32>
    tpu.vector_store %arg5[%291, %c0_68], %288 {strides = array<i32>} : memref<64x32xf32, #tpu.memory_space<vmem>>, vector<8x32xf32>,
    %293 = tpu.concatenate %286, %288 in 1 : vector<8x32xf32>, vector<8x32xf32> -> vector<8x64xf32>
    %c7_i32_69 = arith.constant 7 : i32
    %c8_i32_70 = arith.constant 8 : i32
    %294 = arith.muli %c7_i32_69, %c8_i32_70 : i32
    %295 = tpu.assume_multiple %294, 8 : i32
    %c7_i32_71 = arith.constant 7 : i32
    %296 = arith.subi %c7_i32_71, %c7_i32_69 : i32
    %c8_i32_72 = arith.constant 8 : i32
    %297 = arith.muli %296, %c8_i32_72 : i32
    %298 = tpu.assume_multiple %297, 8 : i32
    %299 = arith.index_cast %295 : i32 to index
    %c0_73 = arith.constant 0 : index
    %300 = vector.load %arg1[%299, %c0_73] : memref<64x128xf32, #tpu.memory_space<vmem>>, vector<8x128xf32>
    %301 = arith.index_cast %298 : i32 to index
    %c0_74 = arith.constant 0 : index
    %302 = vector.load %arg2[%301, %c0_74] : memref<64x128xf32, #tpu.memory_space<vmem>>, vector<8x128xf32>
    %cst_75 = arith.constant dense<0.000000e+00> : vector<8x256xf32>
    %303 = tpu.matmul %293, %3, %cst_75 {dimension_numbers = #tpu.dot_dimension_numbers<[1], [0], [0], [1], [0, 0, 1, 1], [], []>} : vector<8x64xf32>, vector<64x256xf32>, vector<8x256xf32> -> vector<8x256xf32>
    %304 = tpu.concatenate %300, %302 in 1 : vector<8x128xf32>, vector<8x128xf32> -> vector<8x256xf32>
    %305 = arith.addf %303, %304 : vector<8x256xf32>
    %306 = arith.negf %305 : vector<8x256xf32>
    %307 = math.exp %306 : vector<8x256xf32>
    %cst_76 = arith.constant 1.000000e+00 : f32
    %308 = vector.broadcast %cst_76 : f32 to vector<8x256xf32>
    %309 = arith.addf %308, %307 : vector<8x256xf32>
    %310 = arith.divf %308, %309 : vector<8x256xf32>
    %311 = math.tanh %305 : vector<8x256xf32>
    %312 = vector.extract_strided_slice %310 {offsets = [0, 0], sizes = [8, 32], strides = [1, 1]} : vector<8x256xf32> to vector<8x32xf32>
    %313 = vector.extract_strided_slice %310 {offsets = [0, 32], sizes = [8, 32], strides = [1, 1]} : vector<8x256xf32> to vector<8x32xf32>
    %314 = vector.extract_strided_slice %311 {offsets = [0, 64], sizes = [8, 32], strides = [1, 1]} : vector<8x256xf32> to vector<8x32xf32>
    %315 = vector.extract_strided_slice %310 {offsets = [0, 96], sizes = [8, 32], strides = [1, 1]} : vector<8x256xf32> to vector<8x32xf32>
    %316 = vector.extract_strided_slice %310 {offsets = [0, 128], sizes = [8, 32], strides = [1, 1]} : vector<8x256xf32> to vector<8x32xf32>
    %317 = vector.extract_strided_slice %310 {offsets = [0, 160], sizes = [8, 32], strides = [1, 1]} : vector<8x256xf32> to vector<8x32xf32>
    %318 = vector.extract_strided_slice %311 {offsets = [0, 192], sizes = [8, 32], strides = [1, 1]} : vector<8x256xf32> to vector<8x32xf32>
    %319 = vector.extract_strided_slice %310 {offsets = [0, 224], sizes = [8, 32], strides = [1, 1]} : vector<8x256xf32> to vector<8x32xf32>
    %320 = arith.mulf %313, %281 : vector<8x32xf32>
    %321 = arith.mulf %312, %314 : vector<8x32xf32>
    %322 = arith.addf %320, %321 : vector<8x32xf32>
    %323 = arith.mulf %317, %284 : vector<8x32xf32>
    %324 = arith.mulf %316, %318 : vector<8x32xf32>
    %325 = arith.addf %323, %324 : vector<8x32xf32>
    %326 = math.tanh %322 : vector<8x32xf32>
    %327 = arith.mulf %315, %326 : vector<8x32xf32>
    %328 = math.tanh %325 : vector<8x32xf32>
    %329 = arith.mulf %319, %328 : vector<8x32xf32>
    %330 = arith.index_cast %295 : i32 to index
    %c0_77 = arith.constant 0 : index
    %331 = vector.load %arg4[%330, %c0_77] : memref<64x32xf32, #tpu.memory_space<vmem>>, vector<8x32xf32>
    tpu.vector_store %arg4[%330, %c0_77], %327 {strides = array<i32>} : memref<64x32xf32, #tpu.memory_space<vmem>>, vector<8x32xf32>,
    %332 = arith.index_cast %298 : i32 to index
    %c0_78 = arith.constant 0 : index
    %333 = vector.load %arg5[%332, %c0_78] : memref<64x32xf32, #tpu.memory_space<vmem>>, vector<8x32xf32>
    tpu.vector_store %arg5[%332, %c0_78], %329 {strides = array<i32>} : memref<64x32xf32, #tpu.memory_space<vmem>>, vector<8x32xf32>,
    %334 = tpu.concatenate %327, %329 in 1 : vector<8x32xf32>, vector<8x32xf32> -> vector<8x64xf32>
    %c8_i32_79 = arith.constant 8 : i32
    %c0_80 = arith.constant 0 : index
    %c0_81 = arith.constant 0 : index
    %335 = vector.load %arg6[%c0_80, %c0_81] : memref<8x64xf32, #tpu.memory_space<vmem>>, vector<8x64xf32>
    tpu.vector_store %arg6[%c0_80, %c0_81], %334 {strides = array<i32>} : memref<8x64xf32, #tpu.memory_space<vmem>>, vector<8x64xf32>,
    %c0_82 = arith.constant 0 : index
    %c0_83 = arith.constant 0 : index
    %336 = vector.load %arg7[%c0_82, %c0_83] : memref<8x32xf32, #tpu.memory_space<vmem>>, vector<8x32xf32>
    tpu.vector_store %arg7[%c0_82, %c0_83], %322 {strides = array<i32>} : memref<8x32xf32, #tpu.memory_space<vmem>>, vector<8x32xf32>,
    %c0_84 = arith.constant 0 : index
    %c0_85 = arith.constant 0 : index
    %337 = vector.load %arg8[%c0_84, %c0_85] : memref<8x32xf32, #tpu.memory_space<vmem>>, vector<8x32xf32>
    tpu.vector_store %arg8[%c0_84, %c0_85], %325 {strides = array<i32>} : memref<8x32xf32, #tpu.memory_space<vmem>>, vector<8x32xf32>,
    return
  }
  func.func @transform_0(%arg0: i32) -> (i32, i32) {
    %c0_i32 = arith.constant 0 : i32
    %c0_i32_0 = arith.constant 0 : i32
    return %arg0, %c0_i32 : i32, i32
  }
  func.func @transform_1(%arg0: i32) -> (i32, i32) {
    %c0_i32 = arith.constant 0 : i32
    %0 = arith.subi %c0_i32, %arg0 : i32
    %c0_i32_0 = arith.constant 0 : i32
    %c0_i32_1 = arith.constant 0 : i32
    return %0, %c0_i32_0 : i32, i32
  }
  func.func @transform_2(%arg0: i32) -> (i32, i32) {
    %c0_i32 = arith.constant 0 : i32
    %c0_i32_0 = arith.constant 0 : i32
    %c0_i32_1 = arith.constant 0 : i32
    return %c0_i32, %c0_i32_0 : i32, i32
  }
  func.func @transform_3(%arg0: i32) -> (i32, i32) {
    %c0_i32 = arith.constant 0 : i32
    %c0_i32_0 = arith.constant 0 : i32
    return %arg0, %c0_i32 : i32, i32
  }
  func.func @transform_4(%arg0: i32) -> (i32, i32) {
    %c0_i32 = arith.constant 0 : i32
    %0 = arith.subi %c0_i32, %arg0 : i32
    %c0_i32_0 = arith.constant 0 : i32
    %c0_i32_1 = arith.constant 0 : i32
    return %0, %c0_i32_0 : i32, i32
  }
}

</mosaic_0001>

<llo_original>
// kernel: block_bilstm_forward.6
$region0: #{block_bilstm_forward.6}
  #allocation0 [shape = 'u32[]', space=smem, size = 0x4, offset = 0x4, fixed_abs, tag = 'smem constant byte address 0x4 - core index']
  #allocation1 [shape = 'u32[144,128]{1,0:T(1,128)}', space=vmem, size = 0x12000, scoped, tag = 'internal scratch']
  %s0 = inlined_call_operand.vmem [shape: f32[64,32], index: 0, kind: input, shape index: {}]
  %s1 = inlined_call_operand.vmem [shape: f32[64,32], index: 1, kind: input, shape index: {}]
  %s2 = inlined_call_operand.vmem [shape: f32[32,256], index: 2, kind: input, shape index: {}]
  %s3 = inlined_call_operand.vmem [shape: f32[32,256], index: 3, kind: input, shape index: {}]
  %s4 = inlined_call_operand.vmem [shape: f32[1,256], index: 4, kind: input, shape index: {}]
  %s5 = inlined_call_operand.vmem [shape: f32[64,128], index: 5, kind: output, shape index: {0}]
  %s6 = inlined_call_operand.vmem [shape: f32[64,128], index: 6, kind: output, shape index: {1}]
  %7 = xla_tuple %s5, %s6
  %s8 = sld [smem:[#allocation0]]
  $region38: #{block_bilstm_forward.6} parent=0
    _
  %s10 = ssub.s32 1, %s8
  %s11 = scalar_select 0, %s10, %s8
  // Predicated region
  $region2: #{block_bilstm_forward.6} parent=0 // pred_check
    _
  $region3: #{block_bilstm_forward.6} parent=0 // pred_check_branch
    %13 = sbr.rel (0) target = $region5
  $region4: #{block_bilstm_forward.6} parent=0 // pred_region
    _
  $region5: #{block_bilstm_forward.6} parent=0 // pred_fallthru
    _
  // Predicated region
  $region6: #{block_bilstm_forward.6} parent=0 // pred_check
    _
  $region7: #{block_bilstm_forward.6} parent=0 // pred_check_branch
    %15 = sbr.rel (0) target = $region9
  $region8: #{block_bilstm_forward.6} parent=0 // pred_region
    _
  $region9: #{block_bilstm_forward.6} parent=0 // pred_fallthru
    _
  // Predicated region
  $region10: #{block_bilstm_forward.6} parent=0 // pred_check
    _
  $region11: #{block_bilstm_forward.6} parent=0 // pred_check_branch
    %17 = sbr.rel (0) target = $region13
  $region12: #{block_bilstm_forward.6} parent=0 // pred_region
    _
  $region13: #{block_bilstm_forward.6} parent=0 // pred_fallthru
    _
  // Predicated region
  $region14: #{block_bilstm_forward.6} parent=0 // pred_check
    _
  $region15: #{block_bilstm_forward.6} parent=0 // pred_check_branch
    %19 = sbr.rel (0) target = $region17
  $region16: #{block_bilstm_forward.6} parent=0 // pred_region
    _
  $region17: #{block_bilstm_forward.6} parent=0 // pred_fallthru
    _
  // Predicated region
  $region18: #{block_bilstm_forward.6} parent=0 // pred_check
    _
  $region19: #{block_bilstm_forward.6} parent=0 // pred_check_branch
    %21 = sbr.rel (0) target = $region21
  $region20: #{block_bilstm_forward.6} parent=0 // pred_region
    _
  $region21: #{block_bilstm_forward.6} parent=0 // pred_fallthru
    _
  %v22 = vld [vmem:[%s0] sm:$0xff]
  %v23 = vld [vmem:[%s0 + $0x8] sm:$0xff]
  %v24 = vld [vmem:[%s0 + $0x10] sm:$0xff]
  %v25 = vld [vmem:[%s0 + $0x18] sm:$0xff]
  %v26 = vld [vmem:[%s0 + $0x20] sm:$0xff]
  %v27 = vld [vmem:[%s0 + $0x28] sm:$0xff]
  %v28 = vld [vmem:[%s0 + $0x30] sm:$0xff]
  %v29 = vld [vmem:[%s0 + $0x38] sm:$0xff]
  %v30 = vld [vmem:[%s2] sm:$0xff]
  %v31 = vld [vmem:[%s2 + $0x8] sm:$0xff]
  %v32 = vld [vmem:[%s2 + $0x10] sm:$0xff]
  %v33 = vld [vmem:[%s2 + $0x18] sm:$0xff]
  %v34 = vld [vmem:[%s2 + $0x20] sm:$0xff]
  %v35 = vld [vmem:[%s2 + $0x28] sm:$0xff]
  %v36 = vld [vmem:[%s2 + $0x30] sm:$0xff]
  %v37 = vld [vmem:[%s2 + $0x38] sm:$0xff]
  %v38 = vld [vmem:[%s1] sm:$0xff]
  %v39 = vld [vmem:[%s1 + $0x8] sm:$0xff]
  %v40 = vld [vmem:[%s1 + $0x10] sm:$0xff]
  %v41 = vld [vmem:[%s1 + $0x18] sm:$0xff]
  %v42 = vld [vmem:[%s1 + $0x20] sm:$0xff]
  %v43 = vld [vmem:[%s1 + $0x28] sm:$0xff]
  %v44 = vld [vmem:[%s1 + $0x30] sm:$0xff]
  %v45 = vld [vmem:[%s1 + $0x38] sm:$0xff]
  %v46 = vld [vmem:[%s3] sm:$0xff]
  %v47 = vld [vmem:[%s3 + $0x8] sm:$0xff]
  %v48 = vld [vmem:[%s3 + $0x10] sm:$0xff]
  %v49 = vld [vmem:[%s3 + $0x18] sm:$0xff]
  %v50 = vld [vmem:[%s3 + $0x20] sm:$0xff]
  %v51 = vld [vmem:[%s3 + $0x28] sm:$0xff]
  %v52 = vld [vmem:[%s3 + $0x30] sm:$0xff]
  %v53 = vld [vmem:[%s3 + $0x38] sm:$0xff]
  %vm54 = vcmask 261120
  %v56 = vsel %vm54, %v38, 0
  %v59 = vsel %vm54, %v39, 0
  %v62 = vsel %vm54, %v40, 0
  %v65 = vsel %vm54, %v41, 0
  %v68 = vsel %vm54, %v42, 0
  %v71 = vsel %vm54, %v43, 0
  %v74 = vsel %vm54, %v44, 0
  %v77 = vsel %vm54, %v45, 0
  %79 = vmatprep.subr.mxu0 %v47
  %80 = vmatpush1.msra.mxu0 %v46
  %81 = vmatprep.subr.mxu0 %v49
  %82 = vmatpush1.msra.mxu0 %v48
  %83 = vmatprep.subr.mxu0 %v51
  %84 = vmatpush1.msra.mxu0 %v50
  %85 = vmatprep.subr.mxu0 %v53
  %86 = vmatpush1.msra.mxu0 %v52
  %87 = vmatprep.subr.mxu0 0.0
  %88 = vmatpush1.msra.mxu0 0.0
  %89 = vmatprep.subr.mxu0 0.0
  %90 = vmatpush1.msra.mxu0 0.0
  %91 = vmatprep.subr.mxu0 0.0
  %92 = vmatpush1.msra.mxu0 0.0
  %93 = vmatprep.subr.mxu0 0.0
  %94 = vmatpush1.msra.mxu0 0.0
  %95 = vmatprep.subr.mxu0 0.0
  %96 = vmatpush1.msra.mxu0 0.0
  %97 = vmatprep.subr.mxu0 0.0
  %98 = vmatpush1.msra.mxu0 0.0
  %99 = vmatprep.subr.mxu0 0.0
  %100 = vmatpush1.msra.mxu0 0.0
  %101 = vmatprep.subr.mxu0 0.0
  %102 = vmatpush1.msra.mxu0 0.0
  %103 = vmatprep.subr.mxu0 0.0
  %104 = vmatpush1.msra.mxu0 0.0
  %105 = vmatprep.subr.mxu0 0.0
  %106 = vmatpush1.msra.mxu0 0.0
  %107 = vmatprep.subr.mxu0 0.0
  %108 = vmatpush1.msra.mxu0 0.0
  %109 = vmatprep.subr.mxu0 0.0
  %110 = vmatpush1.msra.mxu0 0.0
  %111 = vmatprep.subr.mxu0 0.0
  %112 = vmatpush1.msra.mxu0 0.0
  %113 = vmatprep.subr.mxu0 0.0
  %114 = vmatpush1.msra.mxu0 0.0
  %115 = vmatprep.subr.mxu0 0.0
  %116 = vmatpush1.msra.mxu0 0.0
  %117 = vmatprep.subr.mxu0 0.0
  %118 = vmatpush1.msra.mxu0 0.0
  %119 = vmatprep.subr.mxu0 0.0
  %120 = vmatpush1.msra.mxu0 0.0
  %121 = vmatprep.subr.mxu0 0.0
  %122 = vmatpush1.msra.mxu0 0.0
  %123 = vmatprep.subr.mxu0 0.0
  %124 = vmatpush1.msra.mxu0 0.0
  %125 = vmatprep.subr.mxu0 0.0
  %126 = vmatpush1.msra.mxu0 0.0
  %127 = vmatprep.subr.mxu0 0.0
  %128 = vmatpush1.msra.mxu0 0.0
  %129 = vmatprep.subr.mxu0 0.0
  %130 = vmatpush1.msra.mxu0 0.0
  %131 = vmatprep.subr.mxu0 0.0
  %132 = vmatpush1.msra.mxu0 0.0
  %133 = vmatprep.subr.mxu0 0.0
  %134 = vmatpush1.msra.mxu0 0.0
  %135 = vmatprep.subr.mxu0 0.0
  %136 = vmatpush1.msra.mxu0 0.0
  %137 = vmatprep.subr.mxu0 0.0
  %138 = vmatpush1.msra.mxu0 0.0
  %139 = vmatprep.subr.mxu0 0.0
  %140 = vmatpush1.msra.mxu0 0.0
  %141 = vmatprep.subr.mxu0 0.0
  %142 = vmatpush1.msra.mxu0 0.0
  %143 = vmatprep.mubr.f32.mxu0 0.0
  %144 = vmatmul.mubr.f32.gmra.mrb[0].mxu0 %v56
  %v145 = vpop.f32.mrb[0].mxu0
  %v146 = vadd.f32 0.0, %v145
  %v147 = vpop.f32.mrb[0].mxu0
  %v148 = vadd.f32 0.0, %v147
  %149 = vmatprep.mubr.f32.mxu0 0.0
  %150 = vmatmul.mubr.f32.gmra.mrb[0].mxu0 %v59
  %v151 = vpop.f32.mrb[0].mxu0
  %v152 = vadd.f32 0.0, %v151
  %v153 = vpop.f32.mrb[0].mxu0
  %v154 = vadd.f32 0.0, %v153
  %155 = vmatprep.mubr.f32.mxu0 0.0
  %156 = vmatmul.mubr.f32.gmra.mrb[0].mxu0 %v62
  %v157 = vpop.f32.mrb[0].mxu0
  %v158 = vadd.f32 0.0, %v157
  %v159 = vpop.f32.mrb[0].mxu0
  %v160 = vadd.f32 0.0, %v159
  %161 = vmatprep.mubr.f32.mxu0 0.0
  %162 = vmatmul.mubr.f32.gmra.mrb[0].mxu0 %v65
  %v163 = vpop.f32.mrb[0].mxu0
  %v164 = vadd.f32 0.0, %v163
  %v165 = vpop.f32.mrb[0].mxu0
  %v166 = vadd.f32 0.0, %v165
  %167 = vmatprep.mubr.f32.mxu0 0.0
  %168 = vmatmul.mubr.f32.gmra.mrb[0].mxu0 %v68
  %v169 = vpop.f32.mrb[0].mxu0
  %v170 = vadd.f32 0.0, %v169
  %v171 = vpop.f32.mrb[0].mxu0
  %v172 = vadd.f32 0.0, %v171
  %173 = vmatprep.mubr.f32.mxu0 0.0
  %174 = vmatmul.mubr.f32.gmra.mrb[0].mxu0 %v71
  %v175 = vpop.f32.mrb[0].mxu0
  %v176 = vadd.f32 0.0, %v175
  %v177 = vpop.f32.mrb[0].mxu0
  %v178 = vadd.f32 0.0, %v177
  %179 = vmatprep.mubr.f32.mxu0 0.0
  %180 = vmatmul.mubr.f32.gmra.mrb[0].mxu0 %v74
  %v181 = vpop.f32.mrb[0].mxu0
  %v182 = vadd.f32 0.0, %v181
  %v183 = vpop.f32.mrb[0].mxu0
  %v184 = vadd.f32 0.0, %v183
  %185 = vmatprep.mubr.f32.mxu0 0.0
  %186 = vmatmul.mubr.f32.gmra.mrb[0].mxu0 %v77
  %v187 = vpop.f32.mrb[0].mxu0
  %v188 = vadd.f32 0.0, %v187
  %v189 = vpop.f32.mrb[0].mxu0
  %v190 = vadd.f32 0.0, %v189
  %191 = vdwg.mxu0
  %v193 = vsel %vm54, %v22, 0
  %v196 = vsel %vm54, %v23, 0
  %v199 = vsel %vm54, %v24, 0
  %v202 = vsel %vm54, %v25, 0
  %v205 = vsel %vm54, %v26, 0
  %v208 = vsel %vm54, %v27, 0
  %v211 = vsel %vm54, %v28, 0
  %v214 = vsel %vm54, %v29, 0
  %216 = vmatprep.subr.mxu0 %v31
  %217 = vmatpush1.msra.mxu0 %v30
  %218 = vmatprep.subr.mxu0 %v33
  %219 = vmatpush1.msra.mxu0 %v32
  %220 = vmatprep.subr.mxu0 %v35
  %221 = vmatpush1.msra.mxu0 %v34
  %222 = vmatprep.subr.mxu0 %v37
  %223 = vmatpush1.msra.mxu0 %v36
  %224 = vmatprep.subr.mxu0 0.0
  %225 = vmatpush1.msra.mxu0 0.0
  %226 = vmatprep.subr.mxu0 0.0
  %227 = vmatpush1.msra.mxu0 0.0
  %228 = vmatprep.subr.mxu0 0.0
  %229 = vmatpush1.msra.mxu0 0.0
  %230 = vmatprep.subr.mxu0 0.0
  %231 = vmatpush1.msra.mxu0 0.0
  %232 = vmatprep.subr.mxu0 0.0
  %233 = vmatpush1.msra.mxu0 0.0
  %234 = vmatprep.subr.mxu0 0.0
  %235 = vmatpush1.msra.mxu0 0.0
  %236 = vmatprep.subr.mxu0 0.0
  %237 = vmatpush1.msra.mxu0 0.0
  %238 = vmatprep.subr.mxu0 0.0
  %239 = vmatpush1.msra.mxu0 0.0
  %240 = vmatprep.subr.mxu0 0.0
  %241 = vmatpush1.msra.mxu0 0.0
  %242 = vmatprep.subr.mxu0 0.0
  %243 = vmatpush1.msra.mxu0 0.0
  %244 = vmatprep.subr.mxu0 0.0
  %245 = vmatpush1.msra.mxu0 0.0
  %246 = vmatprep.subr.mxu0 0.0
  %247 = vmatpush1.msra.mxu0 0.0
  %248 = vmatprep.subr.mxu0 0.0
  %249 = vmatpush1.msra.mxu0 0.0
  %250 = vmatprep.subr.mxu0 0.0
  %251 = vmatpush1.msra.mxu0 0.0
  %252 = vmatprep.subr.mxu0 0.0
  %253 = vmatpush1.msra.mxu0 0.0
  %254 = vmatprep.subr.mxu0 0.0
  %255 = vmatpush1.msra.mxu0 0.0
  %256 = vmatprep.subr.mxu0 0.0
  %257 = vmatpush1.msra.mxu0 0.0
  %258 = vmatprep.subr.mxu0 0.0
  %259 = vmatpush1.msra.mxu0 0.0
  %260 = vmatprep.subr.mxu0 0.0
  %261 = vmatpush1.msra.mxu0 0.0
  %262 = vmatprep.subr.mxu0 0.0
  %263 = vmatpush1.msra.mxu0 0.0
  %264 = vmatprep.subr.mxu0 0.0
  %265 = vmatpush1.msra.mxu0 0.0
  %266 = vmatprep.subr.mxu0 0.0
  %267 = vmatpush1.msra.mxu0 0.0
  %268 = vmatprep.subr.mxu0 0.0
  %269 = vmatpush1.msra.mxu0 0.0
  %270 = vmatprep.subr.mxu0 0.0
  %271 = vmatpush1.msra.mxu0 0.0
  %272 = vmatprep.subr.mxu0 0.0
  %273 = vmatpush1.msra.mxu0 0.0
  %274 = vmatprep.subr.mxu0 0.0
  %275 = vmatpush1.msra.mxu0 0.0
  %276 = vmatprep.subr.mxu0 0.0
  %277 = vmatpush1.msra.mxu0 0.0
  %278 = vmatprep.subr.mxu0 0.0
  %279 = vmatpush1.msra.mxu0 0.0
  %280 = vmatprep.mubr.f32.mxu0 0.0
  %281 = vmatmul.mubr.f32.gmra.mrb[0].mxu0 %v193
  %v282 = vpop.f32.mrb[0].mxu0
  %v283 = vadd.f32 %v146, %v282
  %v284 = vpop.f32.mrb[0].mxu0
  %v285 = vadd.f32 %v148, %v284
  %286 = vmatprep.mubr.f32.mxu0 0.0
  %287 = vmatmul.mubr.f32.gmra.mrb[0].mxu0 %v196
  %v288 = vpop.f32.mrb[0].mxu0
  %v289 = vadd.f32 %v152, %v288
  %v290 = vpop.f32.mrb[0].mxu0
  %v291 = vadd.f32 %v154, %v290
  %292 = vmatprep.mubr.f32.mxu0 0.0
  %293 = vmatmul.mubr.f32.gmra.mrb[0].mxu0 %v199
  %v294 = vpop.f32.mrb[0].mxu0
  %v295 = vadd.f32 %v158, %v294
  %v296 = vpop.f32.mrb[0].mxu0
  %v297 = vadd.f32 %v160, %v296
  %298 = vmatprep.mubr.f32.mxu0 0.0
  %299 = vmatmul.mubr.f32.gmra.mrb[0].mxu0 %v202
  %v300 = vpop.f32.mrb[0].mxu0
  %v301 = vadd.f32 %v164, %v300
  %v302 = vpop.f32.mrb[0].mxu0
  %v303 = vadd.f32 %v166, %v302
  %304 = vmatprep.mubr.f32.mxu0 0.0
  %305 = vmatmul.mubr.f32.gmra.mrb[0].mxu0 %v205
  %v306 = vpop.f32.mrb[0].mxu0
  %v307 = vadd.f32 %v170, %v306
  %v308 = vpop.f32.mrb[0].mxu0
  %v309 = vadd.f32 %v172, %v308
  %310 = vmatprep.mubr.f32.mxu0 0.0
  %311 = vmatmul.mubr.f32.gmra.mrb[0].mxu0 %v208
  %v312 = vpop.f32.mrb[0].mxu0
  %v313 = vadd.f32 %v176, %v312
  %v314 = vpop.f32.mrb[0].mxu0
  %v315 = vadd.f32 %v178, %v314
  %316 = vmatprep.mubr.f32.mxu0 0.0
  %317 = vmatmul.mubr.f32.gmra.mrb[0].mxu0 %v211
  %v318 = vpop.f32.mrb[0].mxu0
  %v319 = vadd.f32 %v182, %v318
  %v320 = vpop.f32.mrb[0].mxu0
  %v321 = vadd.f32 %v184, %v320
  %322 = vmatprep.mubr.f32.mxu0 0.0
  %323 = vmatmul.mubr.f32.gmra.mrb[0].mxu0 %v214
  %v324 = vpop.f32.mrb[0].mxu0
  %v325 = vadd.f32 %v188, %v324
  %v326 = vpop.f32.mrb[0].mxu0
  %v327 = vadd.f32 %v190, %v326
  %328 = vdwg.mxu0
  %v329 = vld [vmem:[%s4] sm:$0x3]
  %v331 = vlaneseq
  %v332 = vshrl.u32 %v331, 7
  %v333 = vsub.s32 0, %v332
  %v334 = vrot.slane %v329, %v333
  %v335 = vlaneseq
  %v336 = vshrl.u32 %v335, 7
  %v337 = vsub.s32 1, %v336
  %v338 = vrot.slane %v329, %v337
  %v341 = vadd.f32 %v283, %v334
  %v342 = vadd.f32 %v285, %v338
  %v343 = vadd.f32 %v289, %v334
  %v344 = vadd.f32 %v291, %v338
  %v345 = vadd.f32 %v295, %v334
  %v346 = vadd.f32 %v297, %v338
  %v347 = vadd.f32 %v301, %v334
  %v348 = vadd.f32 %v303, %v338
  %v349 = vadd.f32 %v307, %v334
  %v350 = vadd.f32 %v309, %v338
  %v351 = vadd.f32 %v313, %v334
  %v352 = vadd.f32 %v315, %v338
  %v353 = vadd.f32 %v319, %v334
  %v354 = vadd.f32 %v321, %v338
  %v355 = vadd.f32 %v325, %v334
  %v356 = vadd.f32 %v327, %v338
  %357 = vst [vmem:[%s5] sm:$0xff] %v341
  %358 = vst [vmem:[%s5 + $0x8] sm:$0xff] %v343
  %359 = vst [vmem:[%s5 + $0x10] sm:$0xff] %v345
  %360 = vst [vmem:[%s5 + $0x18] sm:$0xff] %v347
  %361 = vst [vmem:[%s5 + $0x20] sm:$0xff] %v349
  %362 = vst [vmem:[%s5 + $0x28] sm:$0xff] %v351
  %363 = vst [vmem:[%s5 + $0x30] sm:$0xff] %v353
  %364 = vst [vmem:[%s5 + $0x38] sm:$0xff] %v355
  %365 = vst [vmem:[%s6] sm:$0xff] %v342
  %366 = vst [vmem:[%s6 + $0x8] sm:$0xff] %v344
  %367 = vst [vmem:[%s6 + $0x10] sm:$0xff] %v346
  %368 = vst [vmem:[%s6 + $0x18] sm:$0xff] %v348
  %369 = vst [vmem:[%s6 + $0x20] sm:$0xff] %v350
  %370 = vst [vmem:[%s6 + $0x28] sm:$0xff] %v352
  %371 = vst [vmem:[%s6 + $0x30] sm:$0xff] %v354
  %372 = vst [vmem:[%s6 + $0x38] sm:$0xff] %v356
  // Predicated region
  $region22: #{block_bilstm_forward.6} parent=0 // pred_check
    _
  $region23: #{block_bilstm_forward.6} parent=0 // pred_check_branch
    %374 = sbr.rel (0) target = $region25
  $region24: #{block_bilstm_forward.6} parent=0 // pred_region
    _
  $region25: #{block_bilstm_forward.6} parent=0 // pred_fallthru
    _
  // Predicated region
  $region26: #{block_bilstm_forward.6} parent=0 // pred_check
    _
  $region27: #{block_bilstm_forward.6} parent=0 // pred_check_branch
    %376 = sbr.rel (0) target = $region29
  $region28: #{block_bilstm_forward.6} parent=0 // pred_region
    _
  $region29: #{block_bilstm_forward.6} parent=0 // pred_fallthru
    _
  // Predicated region
  $region30: #{block_bilstm_forward.6} parent=0 // pred_check
    _
  $region31: #{block_bilstm_forward.6} parent=0 // pred_check_branch
    %378 = sbr.rel (0) target = $region33
  $region32: #{block_bilstm_forward.6} parent=0 // pred_region
    _
  $region33: #{block_bilstm_forward.6} parent=0 // pred_fallthru
    _
  // Predicated region
  $region34: #{block_bilstm_forward.6} parent=0 // pred_check
    _
  $region35: #{block_bilstm_forward.6} parent=0 // pred_check_branch
    %380 = sbr.rel (0) target = $region37
  $region36: #{block_bilstm_forward.6} parent=0 // pred_region
    _
  $region37: #{block_bilstm_forward.6} parent=0 // pred_fallthru
    _

// kernel: block_bilstm_forward.4
$region0: #{block_bilstm_forward.4}
  #allocation0 [shape = 'u32[]', space=smem, size = 0x4, offset = 0x4, fixed_abs, tag = 'smem constant byte address 0x4 - core index']
  #allocation1 [shape = 'u32[144,128]{1,0:T(1,128)}', space=vmem, size = 0x12000, scoped, tag = 'internal scratch']
  %s0 = inlined_call_operand.vmem [shape: f32[64,16], index: 0, kind: input, shape index: {}]
  %s1 = inlined_call_operand.vmem [shape: f32[16,256], index: 1, kind: input, shape index: {}]
  %s2 = inlined_call_operand.vmem [shape: f32[1,256], index: 2, kind: input, shape index: {}]
  %s3 = inlined_call_operand.vmem [shape: f32[64,128], index: 3, kind: output, shape index: {0}]
  %s4 = inlined_call_operand.vmem [shape: f32[64,128], index: 4, kind: output, shape index: {1}]
  %5 = xla_tuple %s3, %s4
  %s6 = sld [smem:[#allocation0]]
  $region30: #{block_bilstm_forward.4} parent=0
    _
  %s8 = ssub.s32 1, %s6
  %s9 = scalar_select 0, %s8, %s6
  // Predicated region
  $region2: #{block_bilstm_forward.4} parent=0 // pred_check
    _
  $region3: #{block_bilstm_forward.4} parent=0 // pred_check_branch
    %11 = sbr.rel (0) target = $region5
  $region4: #{block_bilstm_forward.4} parent=0 // pred_region
    _
  $region5: #{block_bilstm_forward.4} parent=0 // pred_fallthru
    _
  // Predicated region
  $region6: #{block_bilstm_forward.4} parent=0 // pred_check
    _
  $region7: #{block_bilstm_forward.4} parent=0 // pred_check_branch
    %13 = sbr.rel (0) target = $region9
  $region8: #{block_bilstm_forward.4} parent=0 // pred_region
    _
  $region9: #{block_bilstm_forward.4} parent=0 // pred_fallthru
    _
  // Predicated region
  $region10: #{block_bilstm_forward.4} parent=0 // pred_check
    _
  $region11: #{block_bilstm_forward.4} parent=0 // pred_check_branch
    %15 = sbr.rel (0) target = $region13
  $region12: #{block_bilstm_forward.4} parent=0 // pred_region
    _
  $region13: #{block_bilstm_forward.4} parent=0 // pred_fallthru
    _
  %v16 = vld [vmem:[%s0] sm:$0xff]
  %v17 = vld [vmem:[%s0 + $0x8] sm:$0xff]
  %v18 = vld [vmem:[%s0 + $0x10] sm:$0xff]
  %v19 = vld [vmem:[%s0 + $0x18] sm:$0xff]
  %v20 = vld [vmem:[%s0 + $0x20] sm:$0xff]
  %v21 = vld [vmem:[%s0 + $0x28] sm:$0xff]
  %v22 = vld [vmem:[%s0 + $0x30] sm:$0xff]
  %v23 = vld [vmem:[%s0 + $0x38] sm:$0xff]
  %v24 = vld [vmem:[%s1] sm:$0xff]
  %v25 = vld [vmem:[%s1 + $0x8] sm:$0xff]
  %v26 = vld [vmem:[%s1 + $0x10] sm:$0xff]
  %v27 = vld [vmem:[%s1 + $0x18] sm:$0xff]
  %v28 = vld [vmem:[%s2] sm:$0x3]
  %v30 = vlaneseq
  %v31 = vshrl.u32 %v30, 7
  %v32 = vsub.s32 0, %v31
  %v33 = vrot.slane %v28, %v32
  %v34 = vlaneseq
  %v35 = vshrl.u32 %v34, 7
  %v36 = vsub.s32 1, %v35
  %v37 = vrot.slane %v28, %v36
  %vm40 = vcmask 130048
  %v42 = vsel %vm40, %v16, 0
  %v45 = vsel %vm40, %v17, 0
  %v48 = vsel %vm40, %v18, 0
  %v51 = vsel %vm40, %v19, 0
  %v54 = vsel %vm40, %v20, 0
  %v57 = vsel %vm40, %v21, 0
  %v60 = vsel %vm40, %v22, 0
  %v63 = vsel %vm40, %v23, 0
  %65 = vmatprep.subr.mxu0 %v25
  %66 = vmatpush1.msra.mxu0 %v24
  %67 = vmatprep.subr.mxu0 %v27
  %68 = vmatpush1.msra.mxu0 %v26
  %69 = vmatprep.subr.mxu0 0.0
  %70 = vmatpush1.msra.mxu0 0.0
  %71 = vmatprep.subr.mxu0 0.0
  %72 = vmatpush1.msra.mxu0 0.0
  %73 = vmatprep.subr.mxu0 0.0
  %74 = vmatpush1.msra.mxu0 0.0
  %75 = vmatprep.subr.mxu0 0.0
  %76 = vmatpush1.msra.mxu0 0.0
  %77 = vmatprep.subr.mxu0 0.0
  %78 = vmatpush1.msra.mxu0 0.0
  %79 = vmatprep.subr.mxu0 0.0
  %80 = vmatpush1.msra.mxu0 0.0
  %81 = vmatprep.subr.mxu0 0.0
  %82 = vmatpush1.msra.mxu0 0.0
  %83 = vmatprep.subr.mxu0 0.0
  %84 = vmatpush1.msra.mxu0 0.0
  %85 = vmatprep.subr.mxu0 0.0
  %86 = vmatpush1.msra.mxu0 0.0
  %87 = vmatprep.subr.mxu0 0.0
  %88 = vmatpush1.msra.mxu0 0.0
  %89 = vmatprep.subr.mxu0 0.0
  %90 = vmatpush1.msra.mxu0 0.0
  %91 = vmatprep.subr.mxu0 0.0
  %92 = vmatpush1.msra.mxu0 0.0
  %93 = vmatprep.subr.mxu0 0.0
  %94 = vmatpush1.msra.mxu0 0.0
  %95 = vmatprep.subr.mxu0 0.0
  %96 = vmatpush1.msra.mxu0 0.0
  %97 = vmatprep.subr.mxu0 0.0
  %98 = vmatpush1.msra.mxu0 0.0
  %99 = vmatprep.subr.mxu0 0.0
  %100 = vmatpush1.msra.mxu0 0.0
  %101 = vmatprep.subr.mxu0 0.0
  %102 = vmatpush1.msra.mxu0 0.0
  %103 = vmatprep.subr.mxu0 0.0
  %104 = vmatpush1.msra.mxu0 0.0
  %105 = vmatprep.subr.mxu0 0.0
  %106 = vmatpush1.msra.mxu0 0.0
  %107 = vmatprep.subr.mxu0 0.0
  %108 = vmatpush1.msra.mxu0 0.0
  %109 = vmatprep.subr.mxu0 0.0
  %110 = vmatpush1.msra.mxu0 0.0
  %111 = vmatprep.subr.mxu0 0.0
  %112 = vmatpush1.msra.mxu0 0.0
  %113 = vmatprep.subr.mxu0 0.0
  %114 = vmatpush1.msra.mxu0 0.0
  %115 = vmatprep.subr.mxu0 0.0
  %116 = vmatpush1.msra.mxu0 0.0
  %117 = vmatprep.subr.mxu0 0.0
  %118 = vmatpush1.msra.mxu0 0.0
  %119 = vmatprep.subr.mxu0 0.0
  %120 = vmatpush1.msra.mxu0 0.0
  %121 = vmatprep.subr.mxu0 0.0
  %122 = vmatpush1.msra.mxu0 0.0
  %123 = vmatprep.subr.mxu0 0.0
  %124 = vmatpush1.msra.mxu0 0.0
  %125 = vmatprep.subr.mxu0 0.0
  %126 = vmatpush1.msra.mxu0 0.0
  %127 = vmatprep.subr.mxu0 0.0
  %128 = vmatpush1.msra.mxu0 0.0
  %129 = vmatprep.mubr.f32.mxu0 0.0
  %130 = vmatmul.mubr.f32.gmra.mrb[0].mxu0 %v42
  %v131 = vpop.f32.mrb[0].mxu0
  %v132 = vadd.f32 %v33, %v131
  %v133 = vpop.f32.mrb[0].mxu0
  %v134 = vadd.f32 %v37, %v133
  %135 = vmatprep.mubr.f32.mxu0 0.0
  %136 = vmatmul.mubr.f32.gmra.mrb[0].mxu0 %v45
  %v137 = vpop.f32.mrb[0].mxu0
  %v138 = vadd.f32 %v33, %v137
  %v139 = vpop.f32.mrb[0].mxu0
  %v140 = vadd.f32 %v37, %v139
  %141 = vmatprep.mubr.f32.mxu0 0.0
  %142 = vmatmul.mubr.f32.gmra.mrb[0].mxu0 %v48
  %v143 = vpop.f32.mrb[0].mxu0
  %v144 = vadd.f32 %v33, %v143
  %v145 = vpop.f32.mrb[0].mxu0
  %v146 = vadd.f32 %v37, %v145
  %147 = vmatprep.mubr.f32.mxu0 0.0
  %148 = vmatmul.mubr.f32.gmra.mrb[0].mxu0 %v51
  %v149 = vpop.f32.mrb[0].mxu0
  %v150 = vadd.f32 %v33, %v149
  %v151 = vpop.f32.mrb[0].mxu0
  %v152 = vadd.f32 %v37, %v151
  %153 = vmatprep.mubr.f32.mxu0 0.0
  %154 = vmatmul.mubr.f32.gmra.mrb[0].mxu0 %v54
  %v155 = vpop.f32.mrb[0].mxu0
  %v156 = vadd.f32 %v33, %v155
  %v157 = vpop.f32.mrb[0].mxu0
  %v158 = vadd.f32 %v37, %v157
  %159 = vmatprep.mubr.f32.mxu0 0.0
  %160 = vmatmul.mubr.f32.gmra.mrb[0].mxu0 %v57
  %v161 = vpop.f32.mrb[0].mxu0
  %v162 = vadd.f32 %v33, %v161
  %v163 = vpop.f32.mrb[0].mxu0
  %v164 = vadd.f32 %v37, %v163
  %165 = vmatprep.mubr.f32.mxu0 0.0
  %166 = vmatmul.mubr.f32.gmra.mrb[0].mxu0 %v60
  %v167 = vpop.f32.mrb[0].mxu0
  %v168 = vadd.f32 %v33, %v167
  %v169 = vpop.f32.mrb[0].mxu0
  %v170 = vadd.f32 %v37, %v169
  %171 = vmatprep.mubr.f32.mxu0 0.0
  %172 = vmatmul.mubr.f32.gmra.mrb[0].mxu0 %v63
  %v173 = vpop.f32.mrb[0].mxu0
  %v174 = vadd.f32 %v33, %v173
  %v175 = vpop.f32.mrb[0].mxu0
  %v176 = vadd.f32 %v37, %v175
  %177 = vdwg.mxu0
  %178 = vst [vmem:[%s3] sm:$0xff] %v132
  %179 = vst [vmem:[%s3 + $0x8] sm:$0xff] %v138
  %180 = vst [vmem:[%s3 + $0x10] sm:$0xff] %v144
  %181 = vst [vmem:[%s3 + $0x18] sm:$0xff] %v150
  %182 = vst [vmem:[%s3 + $0x20] sm:$0xff] %v156
  %183 = vst [vmem:[%s3 + $0x28] sm:$0xff] %v162
  %184 = vst [vmem:[%s3 + $0x30] sm:$0xff] %v168
  %185 = vst [vmem:[%s3 + $0x38] sm:$0xff] %v174
  %186 = vst [vmem:[%s4] sm:$0xff] %v134
  %187 = vst [vmem:[%s4 + $0x8] sm:$0xff] %v140
  %188 = vst [vmem:[%s4 + $0x10] sm:$0xff] %v146
  %189 = vst [vmem:[%s4 + $0x18] sm:$0xff] %v152
  %190 = vst [vmem:[%s4 + $0x20] sm:$0xff] %v158
  %191 = vst [vmem:[%s4 + $0x28] sm:$0xff] %v164
  %192 = vst [vmem:[%s4 + $0x30] sm:$0xff] %v170
  %193 = vst [vmem:[%s4 + $0x38] sm:$0xff] %v176
  // Predicated region
  $region14: #{block_bilstm_forward.4} parent=0 // pred_check
    _
  $region15: #{block_bilstm_forward.4} parent=0 // pred_check_branch
    %195 = sbr.rel (0) target = $region17
  $region16: #{block_bilstm_forward.4} parent=0 // pred_region
    _
  $region17: #{block_bilstm_forward.4} parent=0 // pred_fallthru
    _
  // Predicated region
  $region18: #{block_bilstm_forward.4} parent=0 // pred_check
    _
  $region19: #{block_bilstm_forward.4} parent=0 // pred_check_branch
    %197 = sbr.rel (0) target = $region21
  $region20: #{block_bilstm_forward.4} parent=0 // pred_region
    _
  $region21: #{block_bilstm_forward.4} parent=0 // pred_fallthru
    _
  // Predicated region
  $region22: #{block_bilstm_forward.4} parent=0 // pred_check
    _
  $region23: #{block_bilstm_forward.4} parent=0 // pred_check_branch
    %199 = sbr.rel (0) target = $region25
  $region24: #{block_bilstm_forward.4} parent=0 // pred_region
    _
  $region25: #{block_bilstm_forward.4} parent=0 // pred_fallthru
    _
  // Predicated region
  $region26: #{block_bilstm_forward.4} parent=0 // pred_check
    _
  $region27: #{block_bilstm_forward.4} parent=0 // pred_check_branch
    %201 = sbr.rel (0) target = $region29
  $region28: #{block_bilstm_forward.4} parent=0 // pred_region
    _
  $region29: #{block_bilstm_forward.4} parent=0 // pred_fallthru
    _

// kernel: block_bilstm_forward.5
$region0: #{block_bilstm_forward.5}
  #allocation0 [shape = 'u32[]', space=smem, size = 0x4, offset = 0x4, fixed_abs, tag = 'smem constant byte address 0x4 - core index']
  #allocation1 [shape = 'u32[144,128]{1,0:T(1,128)}', space=vmem, size = 0x12000, scoped, tag = 'internal scratch']
  #allocation2 [shape = 'f32[8,64]{1,0:T(8,128)}', space=vmem, size = 0x1000, scoped, tag = 'scratch operand']
  #allocation3 [shape = 'f32[8,32]{1,0:T(8,128)}', space=vmem, size = 0x1000, scoped, tag = 'scratch operand']
  #allocation4 [shape = 'f32[8,32]{1,0:T(8,128)}', space=vmem, size = 0x1000, scoped, tag = 'scratch operand']
  %s0 = inlined_call_operand.vmem [shape: f32[64,128], index: 0, kind: input, shape index: {}]
  %s1 = inlined_call_operand.vmem [shape: f32[64,128], index: 1, kind: input, shape index: {}]
  %s2 = inlined_call_operand.vmem [shape: f32[64,256], index: 2, kind: input, shape index: {}]
  %s3 = inlined_call_operand.vmem [shape: f32[64,32], index: 3, kind: output, shape index: {0}]
  %s4 = inlined_call_operand.vmem [shape: f32[64,32], index: 4, kind: output, shape index: {1}]
  %5 = xla_tuple %s3, %s4
  %s6 = sld [smem:[#allocation0]]
  $region34: #{block_bilstm_forward.5} parent=0
    _
  %s8 = ssub.s32 1, %s6
  %s9 = scalar_select 0, %s8, %s6
  // Predicated region
  $region2: #{block_bilstm_forward.5} parent=0 // pred_check
    _
  $region3: #{block_bilstm_forward.5} parent=0 // pred_check_branch
    %11 = sbr.rel (0) target = $region5
  $region4: #{block_bilstm_forward.5} parent=0 // pred_region
    _
  $region5: #{block_bilstm_forward.5} parent=0 // pred_fallthru
    _
  // Predicated region
  $region6: #{block_bilstm_forward.5} parent=0 // pred_check
    _
  $region7: #{block_bilstm_forward.5} parent=0 // pred_check_branch
    %13 = sbr.rel (0) target = $region9
  $region8: #{block_bilstm_forward.5} parent=0 // pred_region
    %s14 = ssub.s32 0, 0
    %s15 = smul.u32 8, %s14
    %p16 = scmp.lt.s32.totalorder %s15, 7
    %s17 = scalar_select %p16, %s15, 7
    %s18 = smul.addr %s17, 8
    %s19 = scalar_lea.vmem %s1, %s18
    %s20 = ssub.s32 0, 0
    %s21 = smul.u32 8, %s20
  $region9: #{block_bilstm_forward.5} parent=0 // pred_fallthru
    _
  // Predicated region
  $region10: #{block_bilstm_forward.5} parent=0 // pred_check
    _
  $region11: #{block_bilstm_forward.5} parent=0 // pred_check_branch
    %23 = sbr.rel (0) target = $region13
  $region12: #{block_bilstm_forward.5} parent=0 // pred_region
    _
  $region13: #{block_bilstm_forward.5} parent=0 // pred_fallthru
    _
  %s24 = ssub.s32 0, 0
  %s25 = smul.u32 8, %s24
  %p26 = scmp.lt.s32.totalorder %s25, 7
  %s27 = scalar_select %p26, %s25, 7
  %s28 = smul.addr %s27, 8
  %s29 = scalar_lea.vmem %s1, %s28
  %s30 = ssub.s32 0, 0
  %s31 = smul.u32 8, %s30
  %p32 = scmp.lt.s32.totalorder %s31, 7
  %s33 = scalar_select %p32, %s31, 7
  %s34 = smul.addr %s33, 8
  %s35 = scalar_lea.vmem %s4, %s34
  %s36 = ssub.s32 0, 0
  %s37 = smul.u32 8, %s36
  %p38 = scmp.lt.s32.totalorder %s37, 7
  %s39 = scalar_select %p38, %s37, 7
  %s40 = smul.addr %s39, 8
  %s41 = scalar_lea.vmem %s1, %s40
  %s42 = ssub.s32 0, 0
  %s43 = smul.u32 8, %s42
  %s44 = ssub.s32 0, 0
  %s45 = smul.u32 8, %s44
  %p46 = scmp.lt.s32.totalorder %s45, 7
  %s47 = scalar_select %p46, %s45, 7
  %s48 = smul.addr %s47, 8
  %s49 = scalar_lea.vmem %s4, %s48
  %s50 = ssub.s32 0, 0
  %s51 = smul.u32 8, %s50
  %p52 = scmp.eq.s32.totalorder 0, 0
  // Predicated region
  $region14: #{block_bilstm_forward.5} parent=0 // pred_check
    %p53 = pneg %p52
  $region15: #{block_bilstm_forward.5} parent=0 // pred_check_branch
    %55 = sbr.rel (%p53) target = $region17
  $region16: #{block_bilstm_forward.5} parent=0 // pred_region
    %vm56 = vcmask 523264
    %57 = vst.msk [vmem:[#allocation2] sm:$0xff] %vm56, 0.0
    %vm58 = vcmask 261120
    %59 = vst.msk [vmem:[#allocation3] sm:$0xff] %vm58, 0.0
    %60 = vst.msk [vmem:[#allocation4] sm:$0xff] %vm58, 0.0
  $region17: #{block_bilstm_forward.5} parent=0 // pred_fallthru
    _
  %v61 = vld [vmem:[%s2] sm:$0xff]
  %v62 = vld [vmem:[%s2 + $0x8] sm:$0xff]
  %v63 = vld [vmem:[%s2 + $0x10] sm:$0xff]
  %v64 = vld [vmem:[%s2 + $0x18] sm:$0xff]
  %v65 = vld [vmem:[%s2 + $0x20] sm:$0xff]
  %v66 = vld [vmem:[%s2 + $0x28] sm:$0xff]
  %v67 = vld [vmem:[%s2 + $0x30] sm:$0xff]
  %v68 = vld [vmem:[%s2 + $0x38] sm:$0xff]
  %v69 = vld [vmem:[%s2 + $0x40] sm:$0xff]
  %v70 = vld [vmem:[%s2 + $0x48] sm:$0xff]
  %v71 = vld [vmem:[%s2 + $0x50] sm:$0xff]
  %v72 = vld [vmem:[%s2 + $0x58] sm:$0xff]
  %v73 = vld [vmem:[%s2 + $0x60] sm:$0xff]
  %v74 = vld [vmem:[%s2 + $0x68] sm:$0xff]
  %v75 = vld [vmem:[%s2 + $0x70] sm:$0xff]
  %v76 = vld [vmem:[%s2 + $0x78] sm:$0xff]
  %v77 = vld [vmem:[#allocation2] sm:$0xff]
  %v78 = vld [vmem:[#allocation3] sm:$0xff]
  %v79 = vld [vmem:[#allocation4] sm:$0xff]
  %v80 = vld [vmem:[%s0] sm:$0xff]
  %s81 = scalar_lea.vmem %s41, 56
  %v82 = vld [vmem:[%s81] sm:$0xff]
  %vm83 = vcmask 523264
  %v85 = vsel %vm83, %v77, 0
  %87 = vmatprep.subr.mxu0 %v62
  %88 = vmatpush1.msra.mxu0 %v61
  %89 = vmatprep.subr.mxu0 %v64
  %90 = vmatpush1.msra.mxu0 %v63
  %91 = vmatprep.subr.mxu0 %v66
  %92 = vmatpush1.msra.mxu0 %v65
  %93 = vmatprep.subr.mxu0 %v68
  %94 = vmatpush1.msra.mxu0 %v67
  %95 = vmatprep.subr.mxu0 %v70
  %96 = vmatpush1.msra.mxu0 %v69
  %97 = vmatprep.subr.mxu0 %v72
  %98 = vmatpush1.msra.mxu0 %v71
  %99 = vmatprep.subr.mxu0 %v74
  %100 = vmatpush1.msra.mxu0 %v73
  %101 = vmatprep.subr.mxu0 %v76
  %102 = vmatpush1.msra.mxu0 %v75
  %103 = vmatprep.subr.mxu0 0.0
  %104 = vmatpush1.msra.mxu0 0.0
  %105 = vmatprep.subr.mxu0 0.0
  %106 = vmatpush1.msra.mxu0 0.0
  %107 = vmatprep.subr.mxu0 0.0
  %108 = vmatpush1.msra.mxu0 0.0
  %109 = vmatprep.subr.mxu0 0.0
  %110 = vmatpush1.msra.mxu0 0.0
  %111 = vmatprep.subr.mxu0 0.0
  %112 = vmatpush1.msra.mxu0 0.0
  %113 = vmatprep.subr.mxu0 0.0
  %114 = vmatpush1.msra.mxu0 0.0
  %115 = vmatprep.subr.mxu0 0.0
  %116 = vmatpush1.msra.mxu0 0.0
  %117 = vmatprep.subr.mxu0 0.0
  %118 = vmatpush1.msra.mxu0 0.0
  %119 = vmatprep.subr.mxu0 0.0
  %120 = vmatpush1.msra.mxu0 0.0
  %121 = vmatprep.subr.mxu0 0.0
  %122 = vmatpush1.msra.mxu0 0.0
  %123 = vmatprep.subr.mxu0 0.0
  %124 = vmatpush1.msra.mxu0 0.0
  %125 = vmatprep.subr.mxu0 0.0
  %126 = vmatpush1.msra.mxu0 0.0
  %127 = vmatprep.subr.mxu0 0.0
  %128 = vmatpush1.msra.mxu0 0.0
  %129 = vmatprep.subr.mxu0 0.0
  %130 = vmatpush1.msra.mxu0 0.0
  %131 = vmatprep.subr.mxu0 0.0
  %132 = vmatpush1.msra.mxu0 0.0
  %133 = vmatprep.subr.mxu0 0.0
  %134 = vmatpush1.msra.mxu0 0.0
  %135 = vmatprep.subr.mxu0 0.0
  %136 = vmatpush1.msra.mxu0 0.0
  %137 = vmatprep.subr.mxu0 0.0
  %138 = vmatpush1.msra.mxu0 0.0
  %139 = vmatprep.subr.mxu0 0.0
  %140 = vmatpush1.msra.mxu0 0.0
  %141 = vmatprep.subr.mxu0 0.0
  %142 = vmatpush1.msra.mxu0 0.0
  %143 = vmatprep.subr.mxu0 0.0
  %144 = vmatpush1.msra.mxu0 0.0
  %145 = vmatprep.subr.mxu0 0.0
  %146 = vmatpush1.msra.mxu0 0.0
  %147 = vmatprep.subr.mxu0 0.0
  %148 = vmatpush1.msra.mxu0 0.0
  %149 = vmatprep.subr.mxu0 0.0
  %150 = vmatpush1.msra.mxu0 0.0
  %151 = vmatprep.mubr.f32.mxu0 0.0
  %152 = vmatmul.mubr.f32.gmra.mrb[0].mxu0 %v85
  %v153 = vpop.f32.mrb[0].mxu0
  %v154 = vadd.f32 %v80, %v153
  %v155 = vpop.f32.mrb[0].mxu0
  %v156 = vadd.f32 %v82, %v155
  %157 = vdwg.mxu0
  %v158 = vxor.u32 %v154, 2147483648
  %v159 = vxor.u32 %v156, 2147483648
  %v160 = vmul.f32 %v158, 1.442695
  %v161 = vpow.pop %v160
  %v162 = vmul.f32 %v159, 1.442695
  %v163 = vpow.pop %v162
  %v164 = vadd.f32 %v161, 1.0
  %v165 = vadd.f32 %v163, 1.0
  %v166 = vrcp.pop %v164
  %v167 = vmul.f32 1.0, %v166
  %v168 = vrcp.pop %v165
  %v169 = vmul.f32 1.0, %v168
  %v170 = vtanh.pop %v154
  %v171 = vtanh.pop %v156
  %173 = vrot.lane.b32.xlu0 %v78, 32
  %v174 = vpop.permute.xlu0 %173
  %v176 = vmul.f32 %v167, %v174
  %178 = vrot.lane.b32.xlu0 %v170, 64
  %v179 = vpop.permute.xlu0 %178
  %v181 = vmul.f32 %v167, %v179
  %183 = vrot.lane.b32.xlu0 %v181, 32
  %v184 = vpop.permute.xlu0 %183
  %v186 = vadd.f32 %v176, %v184
  %188 = vrot.lane.b32.xlu0 %v79, 32
  %v189 = vpop.permute.xlu0 %188
  %v191 = vmul.f32 %v169, %v189
  %193 = vrot.lane.b32.xlu0 %v171, 64
  %v194 = vpop.permute.xlu0 %193
  %v196 = vmul.f32 %v169, %v194
  %198 = vrot.lane.b32.xlu0 %v196, 32
  %v199 = vpop.permute.xlu0 %198
  %v201 = vadd.f32 %v191, %v199
  %v202 = vtanh.pop %v186
  %204 = vrot.lane.b32.xlu0 %v202, 64
  %v205 = vpop.permute.xlu0 %204
  %v207 = vmul.f32 %v167, %v205
  %v208 = vtanh.pop %v201
  %210 = vrot.lane.b32.xlu0 %v208, 64
  %v211 = vpop.permute.xlu0 %210
  %v213 = vmul.f32 %v169, %v211
  %215 = vrot.lane.b32.xlu0 %v207, 32
  %v216 = vpop.permute.xlu0 %215
  %vm218 = vcmask 261120
  %219 = vst.msk [vmem:[%s3] sm:$0xff] %vm218, %v216
  %221 = vrot.lane.b32.xlu0 %v213, 32
  %v222 = vpop.permute.xlu0 %221
  %s224 = scalar_lea.vmem %s49, 56
  %225 = vst.msk [vmem:[%s224] sm:$0xff] %vm218, %v222
  %226 = vrot.lane.b32.xlu0 %v213, 64
  %v227 = vpop.permute.xlu0 %226
  %v229 = vsel %vm218, %v216, %v227
  %s230 = scalar_lea.vmem %s0, 8
  %v231 = vld [vmem:[%s230] sm:$0xff]
  %s232 = scalar_lea.vmem %s41, 48
  %v233 = vld [vmem:[%s232] sm:$0xff]
  %v235 = vsel %vm83, %v229, 0
  %237 = vmatprep.subr.mxu0 %v62
  %238 = vmatpush1.msra.mxu0 %v61
  %239 = vmatprep.subr.mxu0 %v64
  %240 = vmatpush1.msra.mxu0 %v63
  %241 = vmatprep.subr.mxu0 %v66
  %242 = vmatpush1.msra.mxu0 %v65
  %243 = vmatprep.subr.mxu0 %v68
  %244 = vmatpush1.msra.mxu0 %v67
  %245 = vmatprep.subr.mxu0 %v70
  %246 = vmatpush1.msra.mxu0 %v69
  %247 = vmatprep.subr.mxu0 %v72
  %248 = vmatpush1.msra.mxu0 %v71
  %249 = vmatprep.subr.mxu0 %v74
  %250 = vmatpush1.msra.mxu0 %v73
  %251 = vmatprep.subr.mxu0 %v76
  %252 = vmatpush1.msra.mxu0 %v75
  %253 = vmatprep.subr.mxu0 0.0
  %254 = vmatpush1.msra.mxu0 0.0
  %255 = vmatprep.subr.mxu0 0.0
  %256 = vmatpush1.msra.mxu0 0.0
  %257 = vmatprep.subr.mxu0 0.0
  %258 = vmatpush1.msra.mxu0 0.0
  %259 = vmatprep.subr.mxu0 0.0
  %260 = vmatpush1.msra.mxu0 0.0
  %261 = vmatprep.subr.mxu0 0.0
  %262 = vmatpush1.msra.mxu0 0.0
  %263 = vmatprep.subr.mxu0 0.0
  %264 = vmatpush1.msra.mxu0 0.0
  %265 = vmatprep.subr.mxu0 0.0
  %266 = vmatpush1.msra.mxu0 0.0
  %267 = vmatprep.subr.mxu0 0.0
  %268 = vmatpush1.msra.mxu0 0.0
  %269 = vmatprep.subr.mxu0 0.0
  %270 = vmatpush1.msra.mxu0 0.0
  %271 = vmatprep.subr.mxu0 0.0
  %272 = vmatpush1.msra.mxu0 0.0
  %273 = vmatprep.subr.mxu0 0.0
  %274 = vmatpush1.msra.mxu0 0.0
  %275 = vmatprep.subr.mxu0 0.0
  %276 = vmatpush1.msra.mxu0 0.0
  %277 = vmatprep.subr.mxu0 0.0
  %278 = vmatpush1.msra.mxu0 0.0
  %279 = vmatprep.subr.mxu0 0.0
  %280 = vmatpush1.msra.mxu0 0.0
  %281 = vmatprep.subr.mxu0 0.0
  %282 = vmatpush1.msra.mxu0 0.0
  %283 = vmatprep.subr.mxu0 0.0
  %284 = vmatpush1.msra.mxu0 0.0
  %285 = vmatprep.subr.mxu0 0.0
  %286 = vmatpush1.msra.mxu0 0.0
  %287 = vmatprep.subr.mxu0 0.0
  %288 = vmatpush1.msra.mxu0 0.0
  %289 = vmatprep.subr.mxu0 0.0
  %290 = vmatpush1.msra.mxu0 0.0
  %291 = vmatprep.subr.mxu0 0.0
  %292 = vmatpush1.msra.mxu0 0.0
  %293 = vmatprep.subr.mxu0 0.0
  %294 = vmatpush1.msra.mxu0 0.0
  %295 = vmatprep.subr.mxu0 0.0
  %296 = vmatpush1.msra.mxu0 0.0
  %297 = vmatprep.subr.mxu0 0.0
  %298 = vmatpush1.msra.mxu0 0.0
  %299 = vmatprep.subr.mxu0 0.0
  %300 = vmatpush1.msra.mxu0 0.0
  %301 = vmatprep.mubr.f32.mxu0 0.0
  %302 = vmatmul.mubr.f32.gmra.mrb[0].mxu0 %v235
  %v303 = vpop.f32.mrb[0].mxu0
  %v304 = vadd.f32 %v231, %v303
  %v305 = vpop.f32.mrb[0].mxu0
  %v306 = vadd.f32 %v233, %v305
  %307 = vdwg.mxu0
  %v308 = vxor.u32 %v304, 2147483648
  %v309 = vxor.u32 %v306, 2147483648
  %v310 = vmul.f32 %v308, 1.442695
  %v311 = vpow.pop %v310
  %v312 = vmul.f32 %v309, 1.442695
  %v313 = vpow.pop %v312
  %v314 = vadd.f32 %v311, 1.0
  %v315 = vadd.f32 %v313, 1.0
  %v316 = vrcp.pop %v314
  %v317 = vmul.f32 1.0, %v316
  %v318 = vrcp.pop %v315
  %v319 = vmul.f32 1.0, %v318
  %v320 = vtanh.pop %v304
  %v321 = vtanh.pop %v306
  %v322 = vmul.f32 %v317, %v186
  %324 = vrot.lane.b32.xlu0 %v320, 64
  %v325 = vpop.permute.xlu0 %324
  %v327 = vmul.f32 %v317, %v325
  %329 = vrot.lane.b32.xlu0 %v327, 32
  %v330 = vpop.permute.xlu0 %329
  %v332 = vadd.f32 %v322, %v330
  %v333 = vmul.f32 %v319, %v201
  %335 = vrot.lane.b32.xlu0 %v321, 64
  %v336 = vpop.permute.xlu0 %335
  %v338 = vmul.f32 %v319, %v336
  %340 = vrot.lane.b32.xlu0 %v338, 32
  %v341 = vpop.permute.xlu0 %340
  %v343 = vadd.f32 %v333, %v341
  %v344 = vtanh.pop %v332
  %346 = vrot.lane.b32.xlu0 %v344, 64
  %v347 = vpop.permute.xlu0 %346
  %v349 = vmul.f32 %v317, %v347
  %v350 = vtanh.pop %v343
  %352 = vrot.lane.b32.xlu0 %v350, 64
  %v353 = vpop.permute.xlu0 %352
  %v355 = vmul.f32 %v319, %v353
  %357 = vrot.lane.b32.xlu0 %v349, 32
  %v358 = vpop.permute.xlu0 %357
  %s360 = scalar_lea.vmem %s3, 8
  %361 = vst.msk [vmem:[%s360] sm:$0xff] %vm218, %v358
  %363 = vrot.lane.b32.xlu0 %v355, 32
  %v364 = vpop.permute.xlu0 %363
  %s366 = scalar_lea.vmem %s49, 48
  %367 = vst.msk [vmem:[%s366] sm:$0xff] %vm218, %v364
  %368 = vrot.lane.b32.xlu0 %v355, 64
  %v369 = vpop.permute.xlu0 %368
  %v371 = vsel %vm218, %v358, %v369
  %s372 = scalar_lea.vmem %s0, 16
  %v373 = vld [vmem:[%s372] sm:$0xff]
  %s374 = scalar_lea.vmem %s41, 40
  %v375 = vld [vmem:[%s374] sm:$0xff]
  %v377 = vsel %vm83, %v371, 0
  %379 = vmatprep.subr.mxu0 %v62
  %380 = vmatpush1.msra.mxu0 %v61
  %381 = vmatprep.subr.mxu0 %v64
  %382 = vmatpush1.msra.mxu0 %v63
  %383 = vmatprep.subr.mxu0 %v66
  %384 = vmatpush1.msra.mxu0 %v65
  %385 = vmatprep.subr.mxu0 %v68
  %386 = vmatpush1.msra.mxu0 %v67
  %387 = vmatprep.subr.mxu0 %v70
  %388 = vmatpush1.msra.mxu0 %v69
  %389 = vmatprep.subr.mxu0 %v72
  %390 = vmatpush1.msra.mxu0 %v71
  %391 = vmatprep.subr.mxu0 %v74
  %392 = vmatpush1.msra.mxu0 %v73
  %393 = vmatprep.subr.mxu0 %v76
  %394 = vmatpush1.msra.mxu0 %v75
  %395 = vmatprep.subr.mxu0 0.0
  %396 = vmatpush1.msra.mxu0 0.0
  %397 = vmatprep.subr.mxu0 0.0
  %398 = vmatpush1.msra.mxu0 0.0
  %399 = vmatprep.subr.mxu0 0.0
  %400 = vmatpush1.msra.mxu0 0.0
  %401 = vmatprep.subr.mxu0 0.0
  %402 = vmatpush1.msra.mxu0 0.0
  %403 = vmatprep.subr.mxu0 0.0
  %404 = vmatpush1.msra.mxu0 0.0
  %405 = vmatprep.subr.mxu0 0.0
  %406 = vmatpush1.msra.mxu0 0.0
  %407 = vmatprep.subr.mxu0 0.0
  %408 = vmatpush1.msra.mxu0 0.0
  %409 = vmatprep.subr.mxu0 0.0
  %410 = vmatpush1.msra.mxu0 0.0
  %411 = vmatprep.subr.mxu0 0.0
  %412 = vmatpush1.msra.mxu0 0.0
  %413 = vmatprep.subr.mxu0 0.0
  %414 = vmatpush1.msra.mxu0 0.0
  %415 = vmatprep.subr.mxu0 0.0
  %416 = vmatpush1.msra.mxu0 0.0
  %417 = vmatprep.subr.mxu0 0.0
  %418 = vmatpush1.msra.mxu0 0.0
  %419 = vmatprep.subr.mxu0 0.0
  %420 = vmatpush1.msra.mxu0 0.0
  %421 = vmatprep.subr.mxu0 0.0
  %422 = vmatpush1.msra.mxu0 0.0
  %423 = vmatprep.subr.mxu0 0.0
  %424 = vmatpush1.msra.mxu0 0.0
  %425 = vmatprep.subr.mxu0 0.0
  %426 = vmatpush1.msra.mxu0 0.0
  %427 = vmatprep.subr.mxu0 0.0
  %428 = vmatpush1.msra.mxu0 0.0
  %429 = vmatprep.subr.mxu0 0.0
  %430 = vmatpush1.msra.mxu0 0.0
  %431 = vmatprep.subr.mxu0 0.0
  %432 = vmatpush1.msra.mxu0 0.0
  %433 = vmatprep.subr.mxu0 0.0
  %434 = vmatpush1.msra.mxu0 0.0
  %435 = vmatprep.subr.mxu0 0.0
  %436 = vmatpush1.msra.mxu0 0.0
  %437 = vmatprep.subr.mxu0 0.0
  %438 = vmatpush1.msra.mxu0 0.0
  %439 = vmatprep.subr.mxu0 0.0
  %440 = vmatpush1.msra.mxu0 0.0
  %441 = vmatprep.subr.mxu0 0.0
  %442 = vmatpush1.msra.mxu0 0.0
  %443 = vmatprep.mubr.f32.mxu0 0.0
  %444 = vmatmul.mubr.f32.gmra.mrb[0].mxu0 %v377
  %v445 = vpop.f32.mrb[0].mxu0
  %v446 = vadd.f32 %v373, %v445
  %v447 = vpop.f32.mrb[0].mxu0
  %v448 = vadd.f32 %v375, %v447
  %449 = vdwg.mxu0
  %v450 = vxor.u32 %v446, 2147483648
  %v451 = vxor.u32 %v448, 2147483648
  %v452 = vmul.f32 %v450, 1.442695
  %v453 = vpow.pop %v452
  %v454 = vmul.f32 %v451, 1.442695
  %v455 = vpow.pop %v454
  %v456 = vadd.f32 %v453, 1.0
  %v457 = vadd.f32 %v455, 1.0
  %v458 = vrcp.pop %v456
  %v459 = vmul.f32 1.0, %v458
  %v460 = vrcp.pop %v457
  %v461 = vmul.f32 1.0, %v460
  %v462 = vtanh.pop %v446
  %v463 = vtanh.pop %v448
  %v464 = vmul.f32 %v459, %v332
  %466 = vrot.lane.b32.xlu0 %v462, 64
  %v467 = vpop.permute.xlu0 %466
  %v469 = vmul.f32 %v459, %v467
  %471 = vrot.lane.b32.xlu0 %v469, 32
  %v472 = vpop.permute.xlu0 %471
  %v474 = vadd.f32 %v464, %v472
  %v475 = vmul.f32 %v461, %v343
  %477 = vrot.lane.b32.xlu0 %v463, 64
  %v478 = vpop.permute.xlu0 %477
  %v480 = vmul.f32 %v461, %v478
  %482 = vrot.lane.b32.xlu0 %v480, 32
  %v483 = vpop.permute.xlu0 %482
  %v485 = vadd.f32 %v475, %v483
  %v486 = vtanh.pop %v474
  %488 = vrot.lane.b32.xlu0 %v486, 64
  %v489 = vpop.permute.xlu0 %488
  %v491 = vmul.f32 %v459, %v489
  %v492 = vtanh.pop %v485
  %494 = vrot.lane.b32.xlu0 %v492, 64
  %v495 = vpop.permute.xlu0 %494
  %v497 = vmul.f32 %v461, %v495
  %499 = vrot.lane.b32.xlu0 %v491, 32
  %v500 = vpop.permute.xlu0 %499
  %s502 = scalar_lea.vmem %s3, 16
  %503 = vst.msk [vmem:[%s502] sm:$0xff] %vm218, %v500
  %505 = vrot.lane.b32.xlu0 %v497, 32
  %v506 = vpop.permute.xlu0 %505
  %s508 = scalar_lea.vmem %s49, 40
  %509 = vst.msk [vmem:[%s508] sm:$0xff] %vm218, %v506
  %510 = vrot.lane.b32.xlu0 %v497, 64
  %v511 = vpop.permute.xlu0 %510
  %v513 = vsel %vm218, %v500, %v511
  %s514 = scalar_lea.vmem %s0, 24
  %v515 = vld [vmem:[%s514] sm:$0xff]
  %s516 = scalar_lea.vmem %s41, 32
  %v517 = vld [vmem:[%s516] sm:$0xff]
  %v519 = vsel %vm83, %v513, 0
  %521 = vmatprep.subr.mxu0 %v62
  %522 = vmatpush1.msra.mxu0 %v61
  %523 = vmatprep.subr.mxu0 %v64
  %524 = vmatpush1.msra.mxu0 %v63
  %525 = vmatprep.subr.mxu0 %v66
  %526 = vmatpush1.msra.mxu0 %v65
  %527 = vmatprep.subr.mxu0 %v68
  %528 = vmatpush1.msra.mxu0 %v67
  %529 = vmatprep.subr.mxu0 %v70
  %530 = vmatpush1.msra.mxu0 %v69
  %531 = vmatprep.subr.mxu0 %v72
  %532 = vmatpush1.msra.mxu0 %v71
  %533 = vmatprep.subr.mxu0 %v74
  %534 = vmatpush1.msra.mxu0 %v73
  %535 = vmatprep.subr.mxu0 %v76
  %536 = vmatpush1.msra.mxu0 %v75
  %537 = vmatprep.subr.mxu0 0.0
  %538 = vmatpush1.msra.mxu0 0.0
  %539 = vmatprep.subr.mxu0 0.0
  %540 = vmatpush1.msra.mxu0 0.0
  %541 = vmatprep.subr.mxu0 0.0
  %542 = vmatpush1.msra.mxu0 0.0
  %543 = vmatprep.subr.mxu0 0.0
  %544 = vmatpush1.msra.mxu0 0.0
  %545 = vmatprep.subr.mxu0 0.0
  %546 = vmatpush1.msra.mxu0 0.0
  %547 = vmatprep.subr.mxu0 0.0
  %548 = vmatpush1.msra.mxu0 0.0
  %549 = vmatprep.subr.mxu0 0.0
  %550 = vmatpush1.msra.mxu0 0.0
  %551 = vmatprep.subr.mxu0 0.0
  %552 = vmatpush1.msra.mxu0 0.0
  %553 = vmatprep.subr.mxu0 0.0
  %554 = vmatpush1.msra.mxu0 0.0
  %555 = vmatprep.subr.mxu0 0.0
  %556 = vmatpush1.msra.mxu0 0.0
  %557 = vmatprep.subr.mxu0 0.0
  %558 = vmatpush1.msra.mxu0 0.0
  %559 = vmatprep.subr.mxu0 0.0
  %560 = vmatpush1.msra.mxu0 0.0
  %561 = vmatprep.subr.mxu0 0.0
  %562 = vmatpush1.msra.mxu0 0.0
  %563 = vmatprep.subr.mxu0 0.0
  %564 = vmatpush1.msra.mxu0 0.0
  %565 = vmatprep.subr.mxu0 0.0
  %566 = vmatpush1.msra.mxu0 0.0
  %567 = vmatprep.subr.mxu0 0.0
  %568 = vmatpush1.msra.mxu0 0.0
  %569 = vmatprep.subr.mxu0 0.0
  %570 = vmatpush1.msra.mxu0 0.0
  %571 = vmatprep.subr.mxu0 0.0
  %572 = vmatpush1.msra.mxu0 0.0
  %573 = vmatprep.subr.mxu0 0.0
  %574 = vmatpush1.msra.mxu0 0.0
  %575 = vmatprep.subr.mxu0 0.0
  %576 = vmatpush1.msra.mxu0 0.0
  %577 = vmatprep.subr.mxu0 0.0
  %578 = vmatpush1.msra.mxu0 0.0
  %579 = vmatprep.subr.mxu0 0.0
  %580 = vmatpush1.msra.mxu0 0.0
  %581 = vmatprep.subr.mxu0 0.0
  %582 = vmatpush1.msra.mxu0 0.0
  %583 = vmatprep.subr.mxu0 0.0
  %584 = vmatpush1.msra.mxu0 0.0
  %585 = vmatprep.mubr.f32.mxu0 0.0
  %586 = vmatmul.mubr.f32.gmra.mrb[0].mxu0 %v519
  %v587 = vpop.f32.mrb[0].mxu0
  %v588 = vadd.f32 %v515, %v587
  %v589 = vpop.f32.mrb[0].mxu0
  %v590 = vadd.f32 %v517, %v589
  %591 = vdwg.mxu0
  %v592 = vxor.u32 %v588, 2147483648
  %v593 = vxor.u32 %v590, 2147483648
  %v594 = vmul.f32 %v592, 1.442695
  %v595 = vpow.pop %v594
  %v596 = vmul.f32 %v593, 1.442695
  %v597 = vpow.pop %v596
  %v598 = vadd.f32 %v595, 1.0
  %v599 = vadd.f32 %v597, 1.0
  %v600 = vrcp.pop %v598
  %v601 = vmul.f32 1.0, %v600
  %v602 = vrcp.pop %v599
  %v603 = vmul.f32 1.0, %v602
  %v604 = vtanh.pop %v588
  %v605 = vtanh.pop %v590
  %v606 = vmul.f32 %v601, %v474
  %608 = vrot.lane.b32.xlu0 %v604, 64
  %v609 = vpop.permute.xlu0 %608
  %v611 = vmul.f32 %v601, %v609
  %613 = vrot.lane.b32.xlu0 %v611, 32
  %v614 = vpop.permute.xlu0 %613
  %v616 = vadd.f32 %v606, %v614
  %v617 = vmul.f32 %v603, %v485
  %619 = vrot.lane.b32.xlu0 %v605, 64
  %v620 = vpop.permute.xlu0 %619
  %v622 = vmul.f32 %v603, %v620
  %624 = vrot.lane.b32.xlu0 %v622, 32
  %v625 = vpop.permute.xlu0 %624
  %v627 = vadd.f32 %v617, %v625
  %v628 = vtanh.pop %v616
  %630 = vrot.lane.b32.xlu0 %v628, 64
  %v631 = vpop.permute.xlu0 %630
  %v633 = vmul.f32 %v601, %v631
  %v634 = vtanh.pop %v627
  %636 = vrot.lane.b32.xlu0 %v634, 64
  %v637 = vpop.permute.xlu0 %636
  %v639 = vmul.f32 %v603, %v637
  %641 = vrot.lane.b32.xlu0 %v633, 32
  %v642 = vpop.permute.xlu0 %641
  %s644 = scalar_lea.vmem %s3, 24
  %645 = vst.msk [vmem:[%s644] sm:$0xff] %vm218, %v642
  %647 = vrot.lane.b32.xlu0 %v639, 32
  %v648 = vpop.permute.xlu0 %647
  %s650 = scalar_lea.vmem %s49, 32
  %651 = vst.msk [vmem:[%s650] sm:$0xff] %vm218, %v648
  %652 = vrot.lane.b32.xlu0 %v639, 64
  %v653 = vpop.permute.xlu0 %652
  %v655 = vsel %vm218, %v642, %v653
  %s656 = scalar_lea.vmem %s0, 32
  %v657 = vld [vmem:[%s656] sm:$0xff]
  %s658 = scalar_lea.vmem %s41, 24
  %v659 = vld [vmem:[%s658] sm:$0xff]
  %v661 = vsel %vm83, %v655, 0
  %663 = vmatprep.subr.mxu0 %v62
  %664 = vmatpush1.msra.mxu0 %v61
  %665 = vmatprep.subr.mxu0 %v64
  %666 = vmatpush1.msra.mxu0 %v63
  %667 = vmatprep.subr.mxu0 %v66
  %668 = vmatpush1.msra.mxu0 %v65
  %669 = vmatprep.subr.mxu0 %v68
  %670 = vmatpush1.msra.mxu0 %v67
  %671 = vmatprep.subr.mxu0 %v70
  %672 = vmatpush1.msra.mxu0 %v69
  %673 = vmatprep.subr.mxu0 %v72
  %674 = vmatpush1.msra.mxu0 %v71
  %675 = vmatprep.subr.mxu0 %v74
  %676 = vmatpush1.msra.mxu0 %v73
  %677 = vmatprep.subr.mxu0 %v76
  %678 = vmatpush1.msra.mxu0 %v75
  %679 = vmatprep.subr.mxu0 0.0
  %680 = vmatpush1.msra.mxu0 0.0
  %681 = vmatprep.subr.mxu0 0.0
  %682 = vmatpush1.msra.mxu0 0.0
  %683 = vmatprep.subr.mxu0 0.0
  %684 = vmatpush1.msra.mxu0 0.0
  %685 = vmatprep.subr.mxu0 0.0
  %686 = vmatpush1.msra.mxu0 0.0
  %687 = vmatprep.subr.mxu0 0.0
  %688 = vmatpush1.msra.mxu0 0.0
  %689 = vmatprep.subr.mxu0 0.0
  %690 = vmatpush1.msra.mxu0 0.0
  %691 = vmatprep.subr.mxu0 0.0
  %692 = vmatpush1.msra.mxu0 0.0
  %693 = vmatprep.subr.mxu0 0.0
  %694 = vmatpush1.msra.mxu0 0.0
  %695 = vmatprep.subr.mxu0 0.0
  %696 = vmatpush1.msra.mxu0 0.0
  %697 = vmatprep.subr.mxu0 0.0
  %698 = vmatpush1.msra.mxu0 0.0
  %699 = vmatprep.subr.mxu0 0.0
  %700 = vmatpush1.msra.mxu0 0.0
  %701 = vmatprep.subr.mxu0 0.0
  %702 = vmatpush1.msra.mxu0 0.0
  %703 = vmatprep.subr.mxu0 0.0
  %704 = vmatpush1.msra.mxu0 0.0
  %705 = vmatprep.subr.mxu0 0.0
  %706 = vmatpush1.msra.mxu0 0.0
  %707 = vmatprep.subr.mxu0 0.0
  %708 = vmatpush1.msra.mxu0 0.0
  %709 = vmatprep.subr.mxu0 0.0
  %710 = vmatpush1.msra.mxu0 0.0
  %711 = vmatprep.subr.mxu0 0.0
  %712 = vmatpush1.msra.mxu0 0.0
  %713 = vmatprep.subr.mxu0 0.0
  %714 = vmatpush1.msra.mxu0 0.0
  %715 = vmatprep.subr.mxu0 0.0
  %716 = vmatpush1.msra.mxu0 0.0
  %717 = vmatprep.subr.mxu0 0.0
  %718 = vmatpush1.msra.mxu0 0.0
  %719 = vmatprep.subr.mxu0 0.0
  %720 = vmatpush1.msra.mxu0 0.0
  %721 = vmatprep.subr.mxu0 0.0
  %722 = vmatpush1.msra.mxu0 0.0
  %723 = vmatprep.subr.mxu0 0.0
  %724 = vmatpush1.msra.mxu0 0.0
  %725 = vmatprep.subr.mxu0 0.0
  %726 = vmatpush1.msra.mxu0 0.0
  %727 = vmatprep.mubr.f32.mxu0 0.0
  %728 = vmatmul.mubr.f32.gmra.mrb[0].mxu0 %v661
  %v729 = vpop.f32.mrb[0].mxu0
  %v730 = vadd.f32 %v657, %v729
  %v731 = vpop.f32.mrb[0].mxu0
  %v732 = vadd.f32 %v659, %v731
  %733 = vdwg.mxu0
  %v734 = vxor.u32 %v730, 2147483648
  %v735 = vxor.u32 %v732, 2147483648
  %v736 = vmul.f32 %v734, 1.442695
  %v737 = vpow.pop %v736
  %v738 = vmul.f32 %v735, 1.442695
  %v739 = vpow.pop %v738
  %v740 = vadd.f32 %v737, 1.0
  %v741 = vadd.f32 %v739, 1.0
  %v742 = vrcp.pop %v740
  %v743 = vmul.f32 1.0, %v742
  %v744 = vrcp.pop %v741
  %v745 = vmul.f32 1.0, %v744
  %v746 = vtanh.pop %v730
  %v747 = vtanh.pop %v732
  %v748 = vmul.f32 %v743, %v616
  %750 = vrot.lane.b32.xlu0 %v746, 64
  %v751 = vpop.permute.xlu0 %750
  %v753 = vmul.f32 %v743, %v751
  %755 = vrot.lane.b32.xlu0 %v753, 32
  %v756 = vpop.permute.xlu0 %755
  %v758 = vadd.f32 %v748, %v756
  %v759 = vmul.f32 %v745, %v627
  %761 = vrot.lane.b32.xlu0 %v747, 64
  %v762 = vpop.permute.xlu0 %761
  %v764 = vmul.f32 %v745, %v762
  %766 = vrot.lane.b32.xlu0 %v764, 32
  %v767 = vpop.permute.xlu0 %766
  %v769 = vadd.f32 %v759, %v767
  %v770 = vtanh.pop %v758
  %772 = vrot.lane.b32.xlu0 %v770, 64
  %v773 = vpop.permute.xlu0 %772
  %v775 = vmul.f32 %v743, %v773
  %v776 = vtanh.pop %v769
  %778 = vrot.lane.b32.xlu0 %v776, 64
  %v779 = vpop.permute.xlu0 %778
  %v781 = vmul.f32 %v745, %v779
  %783 = vrot.lane.b32.xlu0 %v775, 32
  %v784 = vpop.permute.xlu0 %783
  %s786 = scalar_lea.vmem %s3, 32
  %787 = vst.msk [vmem:[%s786] sm:$0xff] %vm218, %v784
  %789 = vrot.lane.b32.xlu0 %v781, 32
  %v790 = vpop.permute.xlu0 %789
  %s792 = scalar_lea.vmem %s49, 24
  %793 = vst.msk [vmem:[%s792] sm:$0xff] %vm218, %v790
  %794 = vrot.lane.b32.xlu0 %v781, 64
  %v795 = vpop.permute.xlu0 %794
  %v797 = vsel %vm218, %v784, %v795
  %s798 = scalar_lea.vmem %s0, 40
  %v799 = vld [vmem:[%s798] sm:$0xff]
  %s800 = scalar_lea.vmem %s41, 16
  %v801 = vld [vmem:[%s800] sm:$0xff]
  %v803 = vsel %vm83, %v797, 0
  %805 = vmatprep.subr.mxu0 %v62
  %806 = vmatpush1.msra.mxu0 %v61
  %807 = vmatprep.subr.mxu0 %v64
  %808 = vmatpush1.msra.mxu0 %v63
  %809 = vmatprep.subr.mxu0 %v66
  %810 = vmatpush1.msra.mxu0 %v65
  %811 = vmatprep.subr.mxu0 %v68
  %812 = vmatpush1.msra.mxu0 %v67
  %813 = vmatprep.subr.mxu0 %v70
  %814 = vmatpush1.msra.mxu0 %v69
  %815 = vmatprep.subr.mxu0 %v72
  %816 = vmatpush1.msra.mxu0 %v71
  %817 = vmatprep.subr.mxu0 %v74
  %818 = vmatpush1.msra.mxu0 %v73
  %819 = vmatprep.subr.mxu0 %v76
  %820 = vmatpush1.msra.mxu0 %v75
  %821 = vmatprep.subr.mxu0 0.0
  %822 = vmatpush1.msra.mxu0 0.0
  %823 = vmatprep.subr.mxu0 0.0
  %824 = vmatpush1.msra.mxu0 0.0
  %825 = vmatprep.subr.mxu0 0.0
  %826 = vmatpush1.msra.mxu0 0.0
  %827 = vmatprep.subr.mxu0 0.0
  %828 = vmatpush1.msra.mxu0 0.0
  %829 = vmatprep.subr.mxu0 0.0
  %830 = vmatpush1.msra.mxu0 0.0
  %831 = vmatprep.subr.mxu0 0.0
  %832 = vmatpush1.msra.mxu0 0.0
  %833 = vmatprep.subr.mxu0 0.0
  %834 = vmatpush1.msra.mxu0 0.0
  %835 = vmatprep.subr.mxu0 0.0
  %836 = vmatpush1.msra.mxu0 0.0
  %837 = vmatprep.subr.mxu0 0.0
  %838 = vmatpush1.msra.mxu0 0.0
  %839 = vmatprep.subr.mxu0 0.0
  %840 = vmatpush1.msra.mxu0 0.0
  %841 = vmatprep.subr.mxu0 0.0
  %842 = vmatpush1.msra.mxu0 0.0
  %843 = vmatprep.subr.mxu0 0.0
  %844 = vmatpush1.msra.mxu0 0.0
  %845 = vmatprep.subr.mxu0 0.0
  %846 = vmatpush1.msra.mxu0 0.0
  %847 = vmatprep.subr.mxu0 0.0
  %848 = vmatpush1.msra.mxu0 0.0
  %849 = vmatprep.subr.mxu0 0.0
  %850 = vmatpush1.msra.mxu0 0.0
  %851 = vmatprep.subr.mxu0 0.0
  %852 = vmatpush1.msra.mxu0 0.0
  %853 = vmatprep.subr.mxu0 0.0
  %854 = vmatpush1.msra.mxu0 0.0
  %855 = vmatprep.subr.mxu0 0.0
  %856 = vmatpush1.msra.mxu0 0.0
  %857 = vmatprep.subr.mxu0 0.0
  %858 = vmatpush1.msra.mxu0 0.0
  %859 = vmatprep.subr.mxu0 0.0
  %860 = vmatpush1.msra.mxu0 0.0
  %861 = vmatprep.subr.mxu0 0.0
  %862 = vmatpush1.msra.mxu0 0.0
  %863 = vmatprep.subr.mxu0 0.0
  %864 = vmatpush1.msra.mxu0 0.0
  %865 = vmatprep.subr.mxu0 0.0
  %866 = vmatpush1.msra.mxu0 0.0
  %867 = vmatprep.subr.mxu0 0.0
  %868 = vmatpush1.msra.mxu0 0.0
  %869 = vmatprep.mubr.f32.mxu0 0.0
  %870 = vmatmul.mubr.f32.gmra.mrb[0].mxu0 %v803
  %v871 = vpop.f32.mrb[0].mxu0
  %v872 = vadd.f32 %v799, %v871
  %v873 = vpop.f32.mrb[0].mxu0
  %v874 = vadd.f32 %v801, %v873
  %875 = vdwg.mxu0
  %v876 = vxor.u32 %v872, 2147483648
  %v877 = vxor.u32 %v874, 2147483648
  %v878 = vmul.f32 %v876, 1.442695
  %v879 = vpow.pop %v878
  %v880 = vmul.f32 %v877, 1.442695
  %v881 = vpow.pop %v880
  %v882 = vadd.f32 %v879, 1.0
  %v883 = vadd.f32 %v881, 1.0
  %v884 = vrcp.pop %v882
  %v885 = vmul.f32 1.0, %v884
  %v886 = vrcp.pop %v883
  %v887 = vmul.f32 1.0, %v886
  %v888 = vtanh.pop %v872
  %v889 = vtanh.pop %v874
  %v890 = vmul.f32 %v885, %v758
  %892 = vrot.lane.b32.xlu0 %v888, 64
  %v893 = vpop.permute.xlu0 %892
  %v895 = vmul.f32 %v885, %v893
  %897 = vrot.lane.b32.xlu0 %v895, 32
  %v898 = vpop.permute.xlu0 %897
  %v900 = vadd.f32 %v890, %v898
  %v901 = vmul.f32 %v887, %v769
  %903 = vrot.lane.b32.xlu0 %v889, 64
  %v904 = vpop.permute.xlu0 %903
  %v906 = vmul.f32 %v887, %v904
  %908 = vrot.lane.b32.xlu0 %v906, 32
  %v909 = vpop.permute.xlu0 %908
  %v911 = vadd.f32 %v901, %v909
  %v912 = vtanh.pop %v900
  %914 = vrot.lane.b32.xlu0 %v912, 64
  %v915 = vpop.permute.xlu0 %914
  %v917 = vmul.f32 %v885, %v915
  %v918 = vtanh.pop %v911
  %920 = vrot.lane.b32.xlu0 %v918, 64
  %v921 = vpop.permute.xlu0 %920
  %v923 = vmul.f32 %v887, %v921
  %925 = vrot.lane.b32.xlu0 %v917, 32
  %v926 = vpop.permute.xlu0 %925
  %s928 = scalar_lea.vmem %s3, 40
  %929 = vst.msk [vmem:[%s928] sm:$0xff] %vm218, %v926
  %931 = vrot.lane.b32.xlu0 %v923, 32
  %v932 = vpop.permute.xlu0 %931
  %s934 = scalar_lea.vmem %s49, 16
  %935 = vst.msk [vmem:[%s934] sm:$0xff] %vm218, %v932
  %936 = vrot.lane.b32.xlu0 %v923, 64
  %v937 = vpop.permute.xlu0 %936
  %v939 = vsel %vm218, %v926, %v937
  %s940 = scalar_lea.vmem %s0, 48
  %v941 = vld [vmem:[%s940] sm:$0xff]
  %s942 = scalar_lea.vmem %s41, 8
  %v943 = vld [vmem:[%s942] sm:$0xff]
  %v945 = vsel %vm83, %v939, 0
  %947 = vmatprep.subr.mxu0 %v62
  %948 = vmatpush1.msra.mxu0 %v61
  %949 = vmatprep.subr.mxu0 %v64
  %950 = vmatpush1.msra.mxu0 %v63
  %951 = vmatprep.subr.mxu0 %v66
  %952 = vmatpush1.msra.mxu0 %v65
  %953 = vmatprep.subr.mxu0 %v68
  %954 = vmatpush1.msra.mxu0 %v67
  %955 = vmatprep.subr.mxu0 %v70
  %956 = vmatpush1.msra.mxu0 %v69
  %957 = vmatprep.subr.mxu0 %v72
  %958 = vmatpush1.msra.mxu0 %v71
  %959 = vmatprep.subr.mxu0 %v74
  %960 = vmatpush1.msra.mxu0 %v73
  %961 = vmatprep.subr.mxu0 %v76
  %962 = vmatpush1.msra.mxu0 %v75
  %963 = vmatprep.subr.mxu0 0.0
  %964 = vmatpush1.msra.mxu0 0.0
  %965 = vmatprep.subr.mxu0 0.0
  %966 = vmatpush1.msra.mxu0 0.0
  %967 = vmatprep.subr.mxu0 0.0
  %968 = vmatpush1.msra.mxu0 0.0
  %969 = vmatprep.subr.mxu0 0.0
  %970 = vmatpush1.msra.mxu0 0.0
  %971 = vmatprep.subr.mxu0 0.0
  %972 = vmatpush1.msra.mxu0 0.0
  %973 = vmatprep.subr.mxu0 0.0
  %974 = vmatpush1.msra.mxu0 0.0
  %975 = vmatprep.subr.mxu0 0.0
  %976 = vmatpush1.msra.mxu0 0.0
  %977 = vmatprep.subr.mxu0 0.0
  %978 = vmatpush1.msra.mxu0 0.0
  %979 = vmatprep.subr.mxu0 0.0
  %980 = vmatpush1.msra.mxu0 0.0
  %981 = vmatprep.subr.mxu0 0.0
  %982 = vmatpush1.msra.mxu0 0.0
  %983 = vmatprep.subr.mxu0 0.0
  %984 = vmatpush1.msra.mxu0 0.0
  %985 = vmatprep.subr.mxu0 0.0
  %986 = vmatpush1.msra.mxu0 0.0
  %987 = vmatprep.subr.mxu0 0.0
  %988 = vmatpush1.msra.mxu0 0.0
  %989 = vmatprep.subr.mxu0 0.0
  %990 = vmatpush1.msra.mxu0 0.0
  %991 = vmatprep.subr.mxu0 0.0
  %992 = vmatpush1.msra.mxu0 0.0
  %993 = vmatprep.subr.mxu0 0.0
  %994 = vmatpush1.msra.mxu0 0.0
  %995 = vmatprep.subr.mxu0 0.0
  %996 = vmatpush1.msra.mxu0 0.0
  %997 = vmatprep.subr.mxu0 0.0
  %998 = vmatpush1.msra.mxu0 0.0
  %999 = vmatprep.subr.mxu0 0.0
  %1000 = vmatpush1.msra.mxu0 0.0
  %1001 = vmatprep.subr.mxu0 0.0
  %1002 = vmatpush1.msra.mxu0 0.0
  %1003 = vmatprep.subr.mxu0 0.0
  %1004 = vmatpush1.msra.mxu0 0.0
  %1005 = vmatprep.subr.mxu0 0.0
  %1006 = vmatpush1.msra.mxu0 0.0
  %1007 = vmatprep.subr.mxu0 0.0
  %1008 = vmatpush1.msra.mxu0 0.0
  %1009 = vmatprep.subr.mxu0 0.0
  %1010 = vmatpush1.msra.mxu0 0.0
  %1011 = vmatprep.mubr.f32.mxu0 0.0
  %1012 = vmatmul.mubr.f32.gmra.mrb[0].mxu0 %v945
  %v1013 = vpop.f32.mrb[0].mxu0
  %v1014 = vadd.f32 %v941, %v1013
  %v1015 = vpop.f32.mrb[0].mxu0
  %v1016 = vadd.f32 %v943, %v1015
  %1017 = vdwg.mxu0
  %v1018 = vxor.u32 %v1014, 2147483648
  %v1019 = vxor.u32 %v1016, 2147483648
  %v1020 = vmul.f32 %v1018, 1.442695
  %v1021 = vpow.pop %v1020
  %v1022 = vmul.f32 %v1019, 1.442695
  %v1023 = vpow.pop %v1022
  %v1024 = vadd.f32 %v1021, 1.0
  %v1025 = vadd.f32 %v1023, 1.0
  %v1026 = vrcp.pop %v1024
  %v1027 = vmul.f32 1.0, %v1026
  %v1028 = vrcp.pop %v1025
  %v1029 = vmul.f32 1.0, %v1028
  %v1030 = vtanh.pop %v1014
  %v1031 = vtanh.pop %v1016
  %v1032 = vmul.f32 %v1027, %v900
  %1034 = vrot.lane.b32.xlu0 %v1030, 64
  %v1035 = vpop.permute.xlu0 %1034
  %v1037 = vmul.f32 %v1027, %v1035
  %1039 = vrot.lane.b32.xlu0 %v1037, 32
  %v1040 = vpop.permute.xlu0 %1039
  %v1042 = vadd.f32 %v1032, %v1040
  %v1043 = vmul.f32 %v1029, %v911
  %1045 = vrot.lane.b32.xlu0 %v1031, 64
  %v1046 = vpop.permute.xlu0 %1045
  %v1048 = vmul.f32 %v1029, %v1046
  %1050 = vrot.lane.b32.xlu0 %v1048, 32
  %v1051 = vpop.permute.xlu0 %1050
  %v1053 = vadd.f32 %v1043, %v1051
  %v1054 = vtanh.pop %v1042
  %1056 = vrot.lane.b32.xlu0 %v1054, 64
  %v1057 = vpop.permute.xlu0 %1056
  %v1059 = vmul.f32 %v1027, %v1057
  %v1060 = vtanh.pop %v1053
  %1062 = vrot.lane.b32.xlu0 %v1060, 64
  %v1063 = vpop.permute.xlu0 %1062
  %v1065 = vmul.f32 %v1029, %v1063
  %1067 = vrot.lane.b32.xlu0 %v1059, 32
  %v1068 = vpop.permute.xlu0 %1067
  %s1070 = scalar_lea.vmem %s3, 48
  %1071 = vst.msk [vmem:[%s1070] sm:$0xff] %vm218, %v1068
  %1073 = vrot.lane.b32.xlu0 %v1065, 32
  %v1074 = vpop.permute.xlu0 %1073
  %s1076 = scalar_lea.vmem %s49, 8
  %1077 = vst.msk [vmem:[%s1076] sm:$0xff] %vm218, %v1074
  %1078 = vrot.lane.b32.xlu0 %v1065, 64
  %v1079 = vpop.permute.xlu0 %1078
  %v1081 = vsel %vm218, %v1068, %v1079
  %s1082 = scalar_lea.vmem %s0, 56
  %v1083 = vld [vmem:[%s1082] sm:$0xff]
  %v1084 = vld [vmem:[%s41] sm:$0xff]
  %v1086 = vsel %vm83, %v1081, 0
  %1088 = vmatprep.subr.mxu0 %v62
  %1089 = vmatpush1.msra.mxu0 %v61
  %1090 = vmatprep.subr.mxu0 %v64
  %1091 = vmatpush1.msra.mxu0 %v63
  %1092 = vmatprep.subr.mxu0 %v66
  %1093 = vmatpush1.msra.mxu0 %v65
  %1094 = vmatprep.subr.mxu0 %v68
  %1095 = vmatpush1.msra.mxu0 %v67
  %1096 = vmatprep.subr.mxu0 %v70
  %1097 = vmatpush1.msra.mxu0 %v69
  %1098 = vmatprep.subr.mxu0 %v72
  %1099 = vmatpush1.msra.mxu0 %v71
  %1100 = vmatprep.subr.mxu0 %v74
  %1101 = vmatpush1.msra.mxu0 %v73
  %1102 = vmatprep.subr.mxu0 %v76
  %1103 = vmatpush1.msra.mxu0 %v75
  %1104 = vmatprep.subr.mxu0 0.0
  %1105 = vmatpush1.msra.mxu0 0.0
  %1106 = vmatprep.subr.mxu0 0.0
  %1107 = vmatpush1.msra.mxu0 0.0
  %1108 = vmatprep.subr.mxu0 0.0
  %1109 = vmatpush1.msra.mxu0 0.0
  %1110 = vmatprep.subr.mxu0 0.0
  %1111 = vmatpush1.msra.mxu0 0.0
  %1112 = vmatprep.subr.mxu0 0.0
  %1113 = vmatpush1.msra.mxu0 0.0
  %1114 = vmatprep.subr.mxu0 0.0
  %1115 = vmatpush1.msra.mxu0 0.0
  %1116 = vmatprep.subr.mxu0 0.0
  %1117 = vmatpush1.msra.mxu0 0.0
  %1118 = vmatprep.subr.mxu0 0.0
  %1119 = vmatpush1.msra.mxu0 0.0
  %1120 = vmatprep.subr.mxu0 0.0
  %1121 = vmatpush1.msra.mxu0 0.0
  %1122 = vmatprep.subr.mxu0 0.0
  %1123 = vmatpush1.msra.mxu0 0.0
  %1124 = vmatprep.subr.mxu0 0.0
  %1125 = vmatpush1.msra.mxu0 0.0
  %1126 = vmatprep.subr.mxu0 0.0
  %1127 = vmatpush1.msra.mxu0 0.0
  %1128 = vmatprep.subr.mxu0 0.0
  %1129 = vmatpush1.msra.mxu0 0.0
  %1130 = vmatprep.subr.mxu0 0.0
  %1131 = vmatpush1.msra.mxu0 0.0
  %1132 = vmatprep.subr.mxu0 0.0
  %1133 = vmatpush1.msra.mxu0 0.0
  %1134 = vmatprep.subr.mxu0 0.0
  %1135 = vmatpush1.msra.mxu0 0.0
  %1136 = vmatprep.subr.mxu0 0.0
  %1137 = vmatpush1.msra.mxu0 0.0
  %1138 = vmatprep.subr.mxu0 0.0
  %1139 = vmatpush1.msra.mxu0 0.0
  %1140 = vmatprep.subr.mxu0 0.0
  %1141 = vmatpush1.msra.mxu0 0.0
  %1142 = vmatprep.subr.mxu0 0.0
  %1143 = vmatpush1.msra.mxu0 0.0
  %1144 = vmatprep.subr.mxu0 0.0
  %1145 = vmatpush1.msra.mxu0 0.0
  %1146 = vmatprep.subr.mxu0 0.0
  %1147 = vmatpush1.msra.mxu0 0.0
  %1148 = vmatprep.subr.mxu0 0.0
  %1149 = vmatpush1.msra.mxu0 0.0
  %1150 = vmatprep.subr.mxu0 0.0
  %1151 = vmatpush1.msra.mxu0 0.0
  %1152 = vmatprep.mubr.f32.mxu0 0.0
  %1153 = vmatmul.mubr.f32.gmra.mrb[0].mxu0 %v1086
  %v1154 = vpop.f32.mrb[0].mxu0
  %v1155 = vadd.f32 %v1083, %v1154
  %v1156 = vpop.f32.mrb[0].mxu0
  %v1157 = vadd.f32 %v1084, %v1156
  %1158 = vdwg.mxu0
  %v1159 = vxor.u32 %v1155, 2147483648
  %v1160 = vxor.u32 %v1157, 2147483648
  %v1161 = vmul.f32 %v1159, 1.442695
  %v1162 = vpow.pop %v1161
  %v1163 = vmul.f32 %v1160, 1.442695
  %v1164 = vpow.pop %v1163
  %v1165 = vadd.f32 %v1162, 1.0
  %v1166 = vadd.f32 %v1164, 1.0
  %v1167 = vrcp.pop %v1165
  %v1168 = vmul.f32 1.0, %v1167
  %v1169 = vrcp.pop %v1166
  %v1170 = vmul.f32 1.0, %v1169
  %v1171 = vtanh.pop %v1155
  %v1172 = vtanh.pop %v1157
  %v1173 = vmul.f32 %v1168, %v1042
  %1175 = vrot.lane.b32.xlu0 %v1171, 64
  %v1176 = vpop.permute.xlu0 %1175
  %v1178 = vmul.f32 %v1168, %v1176
  %1180 = vrot.lane.b32.xlu0 %v1178, 32
  %v1181 = vpop.permute.xlu0 %1180
  %v1183 = vadd.f32 %v1173, %v1181
  %v1184 = vmul.f32 %v1170, %v1053
  %1186 = vrot.lane.b32.xlu0 %v1172, 64
  %v1187 = vpop.permute.xlu0 %1186
  %v1189 = vmul.f32 %v1170, %v1187
  %1191 = vrot.lane.b32.xlu0 %v1189, 32
  %v1192 = vpop.permute.xlu0 %1191
  %v1194 = vadd.f32 %v1184, %v1192
  %v1195 = vtanh.pop %v1183
  %1197 = vrot.lane.b32.xlu0 %v1195, 64
  %v1198 = vpop.permute.xlu0 %1197
  %v1200 = vmul.f32 %v1168, %v1198
  %v1201 = vtanh.pop %v1194
  %1203 = vrot.lane.b32.xlu0 %v1201, 64
  %v1204 = vpop.permute.xlu0 %1203
  %v1206 = vmul.f32 %v1170, %v1204
  %1208 = vrot.lane.b32.xlu0 %v1200, 32
  %v1209 = vpop.permute.xlu0 %1208
  %s1211 = scalar_lea.vmem %s3, 56
  %1212 = vst.msk [vmem:[%s1211] sm:$0xff] %vm218, %v1209
  %1214 = vrot.lane.b32.xlu0 %v1206, 32
  %v1215 = vpop.permute.xlu0 %1214
  %1217 = vst.msk [vmem:[%s49] sm:$0xff] %vm218, %v1215
  %1218 = vrot.lane.b32.xlu0 %v1206, 64
  %v1219 = vpop.permute.xlu0 %1218
  %v1221 = vsel %vm218, %v1209, %v1219
  %1222 = vst.msk [vmem:[#allocation2] sm:$0xff] %vm83, %v1221
  %1224 = vrot.lane.b32.xlu0 %v1183, 96
  %v1225 = vpop.permute.xlu0 %1224
  %1227 = vst.msk [vmem:[#allocation3] sm:$0xff] %vm218, %v1225
  %1229 = vrot.lane.b32.xlu0 %v1194, 96
  %v1230 = vpop.permute.xlu0 %1229
  %1232 = vst.msk [vmem:[#allocation4] sm:$0xff] %vm218, %v1230
  %s1233 = ssub.s32 0, 0
  %s1234 = smul.u32 8, %s1233
  %p1235 = scmp.lt.s32.totalorder %s1234, 7
  %s1236 = scalar_select %p1235, %s1234, 7
  %s1237 = smul.addr %s1236, 8
  %s1238 = scalar_lea.vmem %s4, %s1237
  // Predicated region
  $region18: #{block_bilstm_forward.5} parent=0 // pred_check
    _
  $region19: #{block_bilstm_forward.5} parent=0 // pred_check_branch
    %1240 = sbr.rel (0) target = $region21
  $region20: #{block_bilstm_forward.5} parent=0 // pred_region
    _
  $region21: #{block_bilstm_forward.5} parent=0 // pred_fallthru
    _
  // Predicated region
  $region22: #{block_bilstm_forward.5} parent=0 // pred_check
    _
  $region23: #{block_bilstm_forward.5} parent=0 // pred_check_branch
    %1242 = sbr.rel (0) target = $region25
  $region24: #{block_bilstm_forward.5} parent=0 // pred_region
    %s1243 = ssub.s32 0, 0
    %s1244 = smul.u32 8, %s1243
  $region25: #{block_bilstm_forward.5} parent=0 // pred_fallthru
    _
  // Predicated region
  $region26: #{block_bilstm_forward.5} parent=0 // pred_check
    _
  $region27: #{block_bilstm_forward.5} parent=0 // pred_check_branch
    %1246 = sbr.rel (0) target = $region29
  $region28: #{block_bilstm_forward.5} parent=0 // pred_region
    _
  $region29: #{block_bilstm_forward.5} parent=0 // pred_fallthru
    _
  // Predicated region
  $region30: #{block_bilstm_forward.5} parent=0 // pred_check
    _
  $region31: #{block_bilstm_forward.5} parent=0 // pred_check_branch
    %1248 = sbr.rel (0) target = $region33
  $region32: #{block_bilstm_forward.5} parent=0 // pred_region
    %s1249 = ssub.s32 0, 0
    %s1250 = smul.u32 8, %s1249
    %p1251 = scmp.lt.s32.totalorder %s1250, 7
    %s1252 = scalar_select %p1251, %s1250, 7
    %s1253 = smul.addr %s1252, 8
    %s1254 = scalar_lea.vmem %s4, %s1253
  $region33: #{block_bilstm_forward.5} parent=0 // pred_fallthru
    _

// kernel: block_bilstm_forward.7
$region0: #{block_bilstm_forward.7}
  #allocation0 [shape = 'u32[]', space=smem, size = 0x4, offset = 0x4, fixed_abs, tag = 'smem constant byte address 0x4 - core index']
  #allocation1 [shape = 'u32[144,128]{1,0:T(1,128)}', space=vmem, size = 0x12000, scoped, tag = 'internal scratch']
  #allocation2 [shape = 'f32[8,64]{1,0:T(8,128)}', space=vmem, size = 0x1000, scoped, tag = 'scratch operand']
  #allocation3 [shape = 'f32[8,32]{1,0:T(8,128)}', space=vmem, size = 0x1000, scoped, tag = 'scratch operand']
  #allocation4 [shape = 'f32[8,32]{1,0:T(8,128)}', space=vmem, size = 0x1000, scoped, tag = 'scratch operand']
  %s0 = inlined_call_operand.vmem [shape: f32[64,128], index: 0, kind: input, shape index: {}]
  %s1 = inlined_call_operand.vmem [shape: f32[64,128], index: 1, kind: input, shape index: {}]
  %s2 = inlined_call_operand.vmem [shape: f32[64,256], index: 2, kind: input, shape index: {}]
  %s3 = inlined_call_operand.vmem [shape: f32[64,32], index: 3, kind: input, shape index: {}]
  %s4 = inlined_call_operand.vmem [shape: f32[64,32], index: 4, kind: input, shape index: {}]
  %s5 = inlined_call_operand.vmem [shape: f32[64,32], index: 5, kind: output, shape index: {0}]
  %s6 = inlined_call_operand.vmem [shape: f32[64,32], index: 6, kind: output, shape index: {1}]
  %7 = xla_tuple %s5, %s6
  %s8 = sld [smem:[#allocation0]]
  $region42: #{block_bilstm_forward.7} parent=0
    _
  %s10 = ssub.s32 1, %s8
  %s11 = scalar_select 0, %s10, %s8
  // Predicated region
  $region2: #{block_bilstm_forward.7} parent=0 // pred_check
    _
  $region3: #{block_bilstm_forward.7} parent=0 // pred_check_branch
    %13 = sbr.rel (0) target = $region5
  $region4: #{block_bilstm_forward.7} parent=0 // pred_region
    _
  $region5: #{block_bilstm_forward.7} parent=0 // pred_fallthru
    _
  // Predicated region
  $region6: #{block_bilstm_forward.7} parent=0 // pred_check
    _
  $region7: #{block_bilstm_forward.7} parent=0 // pred_check_branch
    %15 = sbr.rel (0) target = $region9
  $region8: #{block_bilstm_forward.7} parent=0 // pred_region
    %s16 = ssub.s32 0, 0
    %s17 = smul.u32 8, %s16
    %p18 = scmp.lt.s32.totalorder %s17, 7
    %s19 = scalar_select %p18, %s17, 7
    %s20 = smul.addr %s19, 8
    %s21 = scalar_lea.vmem %s1, %s20
    %s22 = ssub.s32 0, 0
    %s23 = smul.u32 8, %s22
  $region9: #{block_bilstm_forward.7} parent=0 // pred_fallthru
    _
  // Predicated region
  $region10: #{block_bilstm_forward.7} parent=0 // pred_check
    _
  $region11: #{block_bilstm_forward.7} parent=0 // pred_check_branch
    %25 = sbr.rel (0) target = $region13
  $region12: #{block_bilstm_forward.7} parent=0 // pred_region
    _
  $region13: #{block_bilstm_forward.7} parent=0 // pred_fallthru
    _
  // Predicated region
  $region14: #{block_bilstm_forward.7} parent=0 // pred_check
    _
  $region15: #{block_bilstm_forward.7} parent=0 // pred_check_branch
    %27 = sbr.rel (0) target = $region17
  $region16: #{block_bilstm_forward.7} parent=0 // pred_region
    _
  $region17: #{block_bilstm_forward.7} parent=0 // pred_fallthru
    _
  // Predicated region
  $region18: #{block_bilstm_forward.7} parent=0 // pred_check
    _
  $region19: #{block_bilstm_forward.7} parent=0 // pred_check_branch
    %29 = sbr.rel (0) target = $region21
  $region20: #{block_bilstm_forward.7} parent=0 // pred_region
    %s30 = ssub.s32 0, 0
    %s31 = smul.u32 8, %s30
    %p32 = scmp.lt.s32.totalorder %s31, 7
    %s33 = scalar_select %p32, %s31, 7
    %s34 = smul.addr %s33, 8
    %s35 = scalar_lea.vmem %s4, %s34
    %s36 = ssub.s32 0, 0
    %s37 = smul.u32 8, %s36
  $region21: #{block_bilstm_forward.7} parent=0 // pred_fallthru
    _
  %s38 = ssub.s32 0, 0
  %s39 = smul.u32 8, %s38
  %p40 = scmp.lt.s32.totalorder %s39, 7
  %s41 = scalar_select %p40, %s39, 7
  %s42 = smul.addr %s41, 8
  %s43 = scalar_lea.vmem %s1, %s42
  %s44 = ssub.s32 0, 0
  %s45 = smul.u32 8, %s44
  %p46 = scmp.lt.s32.totalorder %s45, 7
  %s47 = scalar_select %p46, %s45, 7
  %s48 = smul.addr %s47, 8
  %s49 = scalar_lea.vmem %s4, %s48
  %s50 = ssub.s32 0, 0
  %s51 = smul.u32 8, %s50
  %p52 = scmp.lt.s32.totalorder %s51, 7
  %s53 = scalar_select %p52, %s51, 7
  %s54 = smul.addr %s53, 8
  %s55 = scalar_lea.vmem %s6, %s54
  %s56 = ssub.s32 0, 0
  %s57 = smul.u32 8, %s56
  %p58 = scmp.lt.s32.totalorder %s57, 7
  %s59 = scalar_select %p58, %s57, 7
  %s60 = smul.addr %s59, 8
  %s61 = scalar_lea.vmem %s1, %s60
  %s62 = ssub.s32 0, 0
  %s63 = smul.u32 8, %s62
  %s64 = ssub.s32 0, 0
  %s65 = smul.u32 8, %s64
  %p66 = scmp.lt.s32.totalorder %s65, 7
  %s67 = scalar_select %p66, %s65, 7
  %s68 = smul.addr %s67, 8
  %s69 = scalar_lea.vmem %s4, %s68
  %s70 = ssub.s32 0, 0
  %s71 = smul.u32 8, %s70
  %s72 = ssub.s32 0, 0
  %s73 = smul.u32 8, %s72
  %p74 = scmp.lt.s32.totalorder %s73, 7
  %s75 = scalar_select %p74, %s73, 7
  %s76 = smul.addr %s75, 8
  %s77 = scalar_lea.vmem %s6, %s76
  %s78 = ssub.s32 0, 0
  %s79 = smul.u32 8, %s78
  %p80 = scmp.eq.s32.totalorder 0, 0
  // Predicated region
  $region22: #{block_bilstm_forward.7} parent=0 // pred_check
    %p81 = pneg %p80
  $region23: #{block_bilstm_forward.7} parent=0 // pred_check_branch
    %83 = sbr.rel (%p81) target = $region25
  $region24: #{block_bilstm_forward.7} parent=0 // pred_region
    %vm84 = vcmask 523264
    %85 = vst.msk [vmem:[#allocation2] sm:$0xff] %vm84, 0.0
    %vm86 = vcmask 261120
    %87 = vst.msk [vmem:[#allocation3] sm:$0xff] %vm86, 0.0
    %88 = vst.msk [vmem:[#allocation4] sm:$0xff] %vm86, 0.0
  $region25: #{block_bilstm_forward.7} parent=0 // pred_fallthru
    _
  %v89 = vld [vmem:[%s2] sm:$0xff]
  %v90 = vld [vmem:[%s2 + $0x8] sm:$0xff]
  %v91 = vld [vmem:[%s2 + $0x10] sm:$0xff]
  %v92 = vld [vmem:[%s2 + $0x18] sm:$0xff]
  %v93 = vld [vmem:[%s2 + $0x20] sm:$0xff]
  %v94 = vld [vmem:[%s2 + $0x28] sm:$0xff]
  %v95 = vld [vmem:[%s2 + $0x30] sm:$0xff]
  %v96 = vld [vmem:[%s2 + $0x38] sm:$0xff]
  %v97 = vld [vmem:[%s2 + $0x40] sm:$0xff]
  %v98 = vld [vmem:[%s2 + $0x48] sm:$0xff]
  %v99 = vld [vmem:[%s2 + $0x50] sm:$0xff]
  %v100 = vld [vmem:[%s2 + $0x58] sm:$0xff]
  %v101 = vld [vmem:[%s2 + $0x60] sm:$0xff]
  %v102 = vld [vmem:[%s2 + $0x68] sm:$0xff]
  %v103 = vld [vmem:[%s2 + $0x70] sm:$0xff]
  %v104 = vld [vmem:[%s2 + $0x78] sm:$0xff]
  %v105 = vld [vmem:[#allocation2] sm:$0xff]
  %v106 = vld [vmem:[#allocation3] sm:$0xff]
  %v107 = vld [vmem:[#allocation4] sm:$0xff]
  %v108 = vld [vmem:[%s0] sm:$0xff]
  %s109 = scalar_lea.vmem %s61, 56
  %v110 = vld [vmem:[%s109] sm:$0xff]
  %vm111 = vcmask 523264
  %v113 = vsel %vm111, %v105, 0
  %115 = vmatprep.subr.mxu0 %v90
  %116 = vmatpush1.msra.mxu0 %v89
  %117 = vmatprep.subr.mxu0 %v92
  %118 = vmatpush1.msra.mxu0 %v91
  %119 = vmatprep.subr.mxu0 %v94
  %120 = vmatpush1.msra.mxu0 %v93
  %121 = vmatprep.subr.mxu0 %v96
  %122 = vmatpush1.msra.mxu0 %v95
  %123 = vmatprep.subr.mxu0 %v98
  %124 = vmatpush1.msra.mxu0 %v97
  %125 = vmatprep.subr.mxu0 %v100
  %126 = vmatpush1.msra.mxu0 %v99
  %127 = vmatprep.subr.mxu0 %v102
  %128 = vmatpush1.msra.mxu0 %v101
  %129 = vmatprep.subr.mxu0 %v104
  %130 = vmatpush1.msra.mxu0 %v103
  %131 = vmatprep.subr.mxu0 0.0
  %132 = vmatpush1.msra.mxu0 0.0
  %133 = vmatprep.subr.mxu0 0.0
  %134 = vmatpush1.msra.mxu0 0.0
  %135 = vmatprep.subr.mxu0 0.0
  %136 = vmatpush1.msra.mxu0 0.0
  %137 = vmatprep.subr.mxu0 0.0
  %138 = vmatpush1.msra.mxu0 0.0
  %139 = vmatprep.subr.mxu0 0.0
  %140 = vmatpush1.msra.mxu0 0.0
  %141 = vmatprep.subr.mxu0 0.0
  %142 = vmatpush1.msra.mxu0 0.0
  %143 = vmatprep.subr.mxu0 0.0
  %144 = vmatpush1.msra.mxu0 0.0
  %145 = vmatprep.subr.mxu0 0.0
  %146 = vmatpush1.msra.mxu0 0.0
  %147 = vmatprep.subr.mxu0 0.0
  %148 = vmatpush1.msra.mxu0 0.0
  %149 = vmatprep.subr.mxu0 0.0
  %150 = vmatpush1.msra.mxu0 0.0
  %151 = vmatprep.subr.mxu0 0.0
  %152 = vmatpush1.msra.mxu0 0.0
  %153 = vmatprep.subr.mxu0 0.0
  %154 = vmatpush1.msra.mxu0 0.0
  %155 = vmatprep.subr.mxu0 0.0
  %156 = vmatpush1.msra.mxu0 0.0
  %157 = vmatprep.subr.mxu0 0.0
  %158 = vmatpush1.msra.mxu0 0.0
  %159 = vmatprep.subr.mxu0 0.0
  %160 = vmatpush1.msra.mxu0 0.0
  %161 = vmatprep.subr.mxu0 0.0
  %162 = vmatpush1.msra.mxu0 0.0
  %163 = vmatprep.subr.mxu0 0.0
  %164 = vmatpush1.msra.mxu0 0.0
  %165 = vmatprep.subr.mxu0 0.0
  %166 = vmatpush1.msra.mxu0 0.0
  %167 = vmatprep.subr.mxu0 0.0
  %168 = vmatpush1.msra.mxu0 0.0
  %169 = vmatprep.subr.mxu0 0.0
  %170 = vmatpush1.msra.mxu0 0.0
  %171 = vmatprep.subr.mxu0 0.0
  %172 = vmatpush1.msra.mxu0 0.0
  %173 = vmatprep.subr.mxu0 0.0
  %174 = vmatpush1.msra.mxu0 0.0
  %175 = vmatprep.subr.mxu0 0.0
  %176 = vmatpush1.msra.mxu0 0.0
  %177 = vmatprep.subr.mxu0 0.0
  %178 = vmatpush1.msra.mxu0 0.0
  %179 = vmatprep.mubr.f32.mxu0 0.0
  %180 = vmatmul.mubr.f32.gmra.mrb[0].mxu0 %v113
  %v181 = vpop.f32.mrb[0].mxu0
  %v182 = vadd.f32 %v108, %v181
  %v183 = vpop.f32.mrb[0].mxu0
  %v184 = vadd.f32 %v110, %v183
  %185 = vdwg.mxu0
  %v186 = vxor.u32 %v182, 2147483648
  %v187 = vxor.u32 %v184, 2147483648
  %v188 = vmul.f32 %v186, 1.442695
  %v189 = vpow.pop %v188
  %v190 = vmul.f32 %v187, 1.442695
  %v191 = vpow.pop %v190
  %v192 = vadd.f32 %v189, 1.0
  %v193 = vadd.f32 %v191, 1.0
  %v194 = vrcp.pop %v192
  %v195 = vmul.f32 1.0, %v194
  %v196 = vrcp.pop %v193
  %v197 = vmul.f32 1.0, %v196
  %v198 = vtanh.pop %v182
  %v199 = vtanh.pop %v184
  %201 = vrot.lane.b32.xlu0 %v106, 32
  %v202 = vpop.permute.xlu0 %201
  %v204 = vmul.f32 %v195, %v202
  %206 = vrot.lane.b32.xlu0 %v198, 64
  %v207 = vpop.permute.xlu0 %206
  %v209 = vmul.f32 %v195, %v207
  %211 = vrot.lane.b32.xlu0 %v209, 32
  %v212 = vpop.permute.xlu0 %211
  %v214 = vadd.f32 %v204, %v212
  %216 = vrot.lane.b32.xlu0 %v107, 32
  %v217 = vpop.permute.xlu0 %216
  %v219 = vmul.f32 %v197, %v217
  %221 = vrot.lane.b32.xlu0 %v199, 64
  %v222 = vpop.permute.xlu0 %221
  %v224 = vmul.f32 %v197, %v222
  %226 = vrot.lane.b32.xlu0 %v224, 32
  %v227 = vpop.permute.xlu0 %226
  %v229 = vadd.f32 %v219, %v227
  %v230 = vtanh.pop %v214
  %232 = vrot.lane.b32.xlu0 %v230, 64
  %v233 = vpop.permute.xlu0 %232
  %v235 = vmul.f32 %v195, %v233
  %v236 = vtanh.pop %v229
  %238 = vrot.lane.b32.xlu0 %v236, 64
  %v239 = vpop.permute.xlu0 %238
  %v241 = vmul.f32 %v197, %v239
  %v242 = vld [vmem:[%s3] sm:$0xff]
  %244 = vrot.lane.b32.xlu0 %v242, 96
  %v245 = vpop.permute.xlu0 %244
  %v247 = vadd.f32 %v235, %v245
  %249 = vrot.lane.b32.xlu0 %v247, 32
  %v250 = vpop.permute.xlu0 %249
  %vm252 = vcmask 261120
  %253 = vst.msk [vmem:[%s5] sm:$0xff] %vm252, %v250
  %s254 = scalar_lea.vmem %s69, 56
  %v255 = vld [vmem:[%s254] sm:$0xff]
  %257 = vrot.lane.b32.xlu0 %v255, 96
  %v258 = vpop.permute.xlu0 %257
  %v260 = vadd.f32 %v241, %v258
  %262 = vrot.lane.b32.xlu0 %v260, 32
  %v263 = vpop.permute.xlu0 %262
  %s265 = scalar_lea.vmem %s77, 56
  %266 = vst.msk [vmem:[%s265] sm:$0xff] %vm252, %v263
  %268 = vrot.lane.b32.xlu0 %v235, 32
  %v269 = vpop.permute.xlu0 %268
  %272 = vrot.lane.b32.xlu0 %v241, 64
  %v273 = vpop.permute.xlu0 %272
  %v275 = vsel %vm252, %v269, %v273
  %s276 = scalar_lea.vmem %s0, 8
  %v277 = vld [vmem:[%s276] sm:$0xff]
  %s278 = scalar_lea.vmem %s61, 48
  %v279 = vld [vmem:[%s278] sm:$0xff]
  %v281 = vsel %vm111, %v275, 0
  %283 = vmatprep.subr.mxu0 %v90
  %284 = vmatpush1.msra.mxu0 %v89
  %285 = vmatprep.subr.mxu0 %v92
  %286 = vmatpush1.msra.mxu0 %v91
  %287 = vmatprep.subr.mxu0 %v94
  %288 = vmatpush1.msra.mxu0 %v93
  %289 = vmatprep.subr.mxu0 %v96
  %290 = vmatpush1.msra.mxu0 %v95
  %291 = vmatprep.subr.mxu0 %v98
  %292 = vmatpush1.msra.mxu0 %v97
  %293 = vmatprep.subr.mxu0 %v100
  %294 = vmatpush1.msra.mxu0 %v99
  %295 = vmatprep.subr.mxu0 %v102
  %296 = vmatpush1.msra.mxu0 %v101
  %297 = vmatprep.subr.mxu0 %v104
  %298 = vmatpush1.msra.mxu0 %v103
  %299 = vmatprep.subr.mxu0 0.0
  %300 = vmatpush1.msra.mxu0 0.0
  %301 = vmatprep.subr.mxu0 0.0
  %302 = vmatpush1.msra.mxu0 0.0
  %303 = vmatprep.subr.mxu0 0.0
  %304 = vmatpush1.msra.mxu0 0.0
  %305 = vmatprep.subr.mxu0 0.0
  %306 = vmatpush1.msra.mxu0 0.0
  %307 = vmatprep.subr.mxu0 0.0
  %308 = vmatpush1.msra.mxu0 0.0
  %309 = vmatprep.subr.mxu0 0.0
  %310 = vmatpush1.msra.mxu0 0.0
  %311 = vmatprep.subr.mxu0 0.0
  %312 = vmatpush1.msra.mxu0 0.0
  %313 = vmatprep.subr.mxu0 0.0
  %314 = vmatpush1.msra.mxu0 0.0
  %315 = vmatprep.subr.mxu0 0.0
  %316 = vmatpush1.msra.mxu0 0.0
  %317 = vmatprep.subr.mxu0 0.0
  %318 = vmatpush1.msra.mxu0 0.0
  %319 = vmatprep.subr.mxu0 0.0
  %320 = vmatpush1.msra.mxu0 0.0
  %321 = vmatprep.subr.mxu0 0.0
  %322 = vmatpush1.msra.mxu0 0.0
  %323 = vmatprep.subr.mxu0 0.0
  %324 = vmatpush1.msra.mxu0 0.0
  %325 = vmatprep.subr.mxu0 0.0
  %326 = vmatpush1.msra.mxu0 0.0
  %327 = vmatprep.subr.mxu0 0.0
  %328 = vmatpush1.msra.mxu0 0.0
  %329 = vmatprep.subr.mxu0 0.0
  %330 = vmatpush1.msra.mxu0 0.0
  %331 = vmatprep.subr.mxu0 0.0
  %332 = vmatpush1.msra.mxu0 0.0
  %333 = vmatprep.subr.mxu0 0.0
  %334 = vmatpush1.msra.mxu0 0.0
  %335 = vmatprep.subr.mxu0 0.0
  %336 = vmatpush1.msra.mxu0 0.0
  %337 = vmatprep.subr.mxu0 0.0
  %338 = vmatpush1.msra.mxu0 0.0
  %339 = vmatprep.subr.mxu0 0.0
  %340 = vmatpush1.msra.mxu0 0.0
  %341 = vmatprep.subr.mxu0 0.0
  %342 = vmatpush1.msra.mxu0 0.0
  %343 = vmatprep.subr.mxu0 0.0
  %344 = vmatpush1.msra.mxu0 0.0
  %345 = vmatprep.subr.mxu0 0.0
  %346 = vmatpush1.msra.mxu0 0.0
  %347 = vmatprep.mubr.f32.mxu0 0.0
  %348 = vmatmul.mubr.f32.gmra.mrb[0].mxu0 %v281
  %v349 = vpop.f32.mrb[0].mxu0
  %v350 = vadd.f32 %v277, %v349
  %v351 = vpop.f32.mrb[0].mxu0
  %v352 = vadd.f32 %v279, %v351
  %353 = vdwg.mxu0
  %v354 = vxor.u32 %v350, 2147483648
  %v355 = vxor.u32 %v352, 2147483648
  %v356 = vmul.f32 %v354, 1.442695
  %v357 = vpow.pop %v356
  %v358 = vmul.f32 %v355, 1.442695
  %v359 = vpow.pop %v358
  %v360 = vadd.f32 %v357, 1.0
  %v361 = vadd.f32 %v359, 1.0
  %v362 = vrcp.pop %v360
  %v363 = vmul.f32 1.0, %v362
  %v364 = vrcp.pop %v361
  %v365 = vmul.f32 1.0, %v364
  %v366 = vtanh.pop %v350
  %v367 = vtanh.pop %v352
  %v368 = vmul.f32 %v363, %v214
  %370 = vrot.lane.b32.xlu0 %v366, 64
  %v371 = vpop.permute.xlu0 %370
  %v373 = vmul.f32 %v363, %v371
  %375 = vrot.lane.b32.xlu0 %v373, 32
  %v376 = vpop.permute.xlu0 %375
  %v378 = vadd.f32 %v368, %v376
  %v379 = vmul.f32 %v365, %v229
  %381 = vrot.lane.b32.xlu0 %v367, 64
  %v382 = vpop.permute.xlu0 %381
  %v384 = vmul.f32 %v365, %v382
  %386 = vrot.lane.b32.xlu0 %v384, 32
  %v387 = vpop.permute.xlu0 %386
  %v389 = vadd.f32 %v379, %v387
  %v390 = vtanh.pop %v378
  %392 = vrot.lane.b32.xlu0 %v390, 64
  %v393 = vpop.permute.xlu0 %392
  %v395 = vmul.f32 %v363, %v393
  %v396 = vtanh.pop %v389
  %398 = vrot.lane.b32.xlu0 %v396, 64
  %v399 = vpop.permute.xlu0 %398
  %v401 = vmul.f32 %v365, %v399
  %s402 = scalar_lea.vmem %s3, 8
  %v403 = vld [vmem:[%s402] sm:$0xff]
  %405 = vrot.lane.b32.xlu0 %v403, 96
  %v406 = vpop.permute.xlu0 %405
  %v408 = vadd.f32 %v395, %v406
  %410 = vrot.lane.b32.xlu0 %v408, 32
  %v411 = vpop.permute.xlu0 %410
  %s413 = scalar_lea.vmem %s5, 8
  %414 = vst.msk [vmem:[%s413] sm:$0xff] %vm252, %v411
  %s415 = scalar_lea.vmem %s69, 48
  %v416 = vld [vmem:[%s415] sm:$0xff]
  %418 = vrot.lane.b32.xlu0 %v416, 96
  %v419 = vpop.permute.xlu0 %418
  %v421 = vadd.f32 %v401, %v419
  %423 = vrot.lane.b32.xlu0 %v421, 32
  %v424 = vpop.permute.xlu0 %423
  %s426 = scalar_lea.vmem %s77, 48
  %427 = vst.msk [vmem:[%s426] sm:$0xff] %vm252, %v424
  %429 = vrot.lane.b32.xlu0 %v395, 32
  %v430 = vpop.permute.xlu0 %429
  %433 = vrot.lane.b32.xlu0 %v401, 64
  %v434 = vpop.permute.xlu0 %433
  %v436 = vsel %vm252, %v430, %v434
  %s437 = scalar_lea.vmem %s0, 16
  %v438 = vld [vmem:[%s437] sm:$0xff]
  %s439 = scalar_lea.vmem %s61, 40
  %v440 = vld [vmem:[%s439] sm:$0xff]
  %v442 = vsel %vm111, %v436, 0
  %444 = vmatprep.subr.mxu0 %v90
  %445 = vmatpush1.msra.mxu0 %v89
  %446 = vmatprep.subr.mxu0 %v92
  %447 = vmatpush1.msra.mxu0 %v91
  %448 = vmatprep.subr.mxu0 %v94
  %449 = vmatpush1.msra.mxu0 %v93
  %450 = vmatprep.subr.mxu0 %v96
  %451 = vmatpush1.msra.mxu0 %v95
  %452 = vmatprep.subr.mxu0 %v98
  %453 = vmatpush1.msra.mxu0 %v97
  %454 = vmatprep.subr.mxu0 %v100
  %455 = vmatpush1.msra.mxu0 %v99
  %456 = vmatprep.subr.mxu0 %v102
  %457 = vmatpush1.msra.mxu0 %v101
  %458 = vmatprep.subr.mxu0 %v104
  %459 = vmatpush1.msra.mxu0 %v103
  %460 = vmatprep.subr.mxu0 0.0
  %461 = vmatpush1.msra.mxu0 0.0
  %462 = vmatprep.subr.mxu0 0.0
  %463 = vmatpush1.msra.mxu0 0.0
  %464 = vmatprep.subr.mxu0 0.0
  %465 = vmatpush1.msra.mxu0 0.0
  %466 = vmatprep.subr.mxu0 0.0
  %467 = vmatpush1.msra.mxu0 0.0
  %468 = vmatprep.subr.mxu0 0.0
  %469 = vmatpush1.msra.mxu0 0.0
  %470 = vmatprep.subr.mxu0 0.0
  %471 = vmatpush1.msra.mxu0 0.0
  %472 = vmatprep.subr.mxu0 0.0
  %473 = vmatpush1.msra.mxu0 0.0
  %474 = vmatprep.subr.mxu0 0.0
  %475 = vmatpush1.msra.mxu0 0.0
  %476 = vmatprep.subr.mxu0 0.0
  %477 = vmatpush1.msra.mxu0 0.0
  %478 = vmatprep.subr.mxu0 0.0
  %479 = vmatpush1.msra.mxu0 0.0
  %480 = vmatprep.subr.mxu0 0.0
  %481 = vmatpush1.msra.mxu0 0.0
  %482 = vmatprep.subr.mxu0 0.0
  %483 = vmatpush1.msra.mxu0 0.0
  %484 = vmatprep.subr.mxu0 0.0
  %485 = vmatpush1.msra.mxu0 0.0
  %486 = vmatprep.subr.mxu0 0.0
  %487 = vmatpush1.msra.mxu0 0.0
  %488 = vmatprep.subr.mxu0 0.0
  %489 = vmatpush1.msra.mxu0 0.0
  %490 = vmatprep.subr.mxu0 0.0
  %491 = vmatpush1.msra.mxu0 0.0
  %492 = vmatprep.subr.mxu0 0.0
  %493 = vmatpush1.msra.mxu0 0.0
  %494 = vmatprep.subr.mxu0 0.0
  %495 = vmatpush1.msra.mxu0 0.0
  %496 = vmatprep.subr.mxu0 0.0
  %497 = vmatpush1.msra.mxu0 0.0
  %498 = vmatprep.subr.mxu0 0.0
  %499 = vmatpush1.msra.mxu0 0.0
  %500 = vmatprep.subr.mxu0 0.0
  %501 = vmatpush1.msra.mxu0 0.0
  %502 = vmatprep.subr.mxu0 0.0
  %503 = vmatpush1.msra.mxu0 0.0
  %504 = vmatprep.subr.mxu0 0.0
  %505 = vmatpush1.msra.mxu0 0.0
  %506 = vmatprep.subr.mxu0 0.0
  %507 = vmatpush1.msra.mxu0 0.0
  %508 = vmatprep.mubr.f32.mxu0 0.0
  %509 = vmatmul.mubr.f32.gmra.mrb[0].mxu0 %v442
  %v510 = vpop.f32.mrb[0].mxu0
  %v511 = vadd.f32 %v438, %v510
  %v512 = vpop.f32.mrb[0].mxu0
  %v513 = vadd.f32 %v440, %v512
  %514 = vdwg.mxu0
  %v515 = vxor.u32 %v511, 2147483648
  %v516 = vxor.u32 %v513, 2147483648
  %v517 = vmul.f32 %v515, 1.442695
  %v518 = vpow.pop %v517
  %v519 = vmul.f32 %v516, 1.442695
  %v520 = vpow.pop %v519
  %v521 = vadd.f32 %v518, 1.0
  %v522 = vadd.f32 %v520, 1.0
  %v523 = vrcp.pop %v521
  %v524 = vmul.f32 1.0, %v523
  %v525 = vrcp.pop %v522
  %v526 = vmul.f32 1.0, %v525
  %v527 = vtanh.pop %v511
  %v528 = vtanh.pop %v513
  %v529 = vmul.f32 %v524, %v378
  %531 = vrot.lane.b32.xlu0 %v527, 64
  %v532 = vpop.permute.xlu0 %531
  %v534 = vmul.f32 %v524, %v532
  %536 = vrot.lane.b32.xlu0 %v534, 32
  %v537 = vpop.permute.xlu0 %536
  %v539 = vadd.f32 %v529, %v537
  %v540 = vmul.f32 %v526, %v389
  %542 = vrot.lane.b32.xlu0 %v528, 64
  %v543 = vpop.permute.xlu0 %542
  %v545 = vmul.f32 %v526, %v543
  %547 = vrot.lane.b32.xlu0 %v545, 32
  %v548 = vpop.permute.xlu0 %547
  %v550 = vadd.f32 %v540, %v548
  %v551 = vtanh.pop %v539
  %553 = vrot.lane.b32.xlu0 %v551, 64
  %v554 = vpop.permute.xlu0 %553
  %v556 = vmul.f32 %v524, %v554
  %v557 = vtanh.pop %v550
  %559 = vrot.lane.b32.xlu0 %v557, 64
  %v560 = vpop.permute.xlu0 %559
  %v562 = vmul.f32 %v526, %v560
  %s563 = scalar_lea.vmem %s3, 16
  %v564 = vld [vmem:[%s563] sm:$0xff]
  %566 = vrot.lane.b32.xlu0 %v564, 96
  %v567 = vpop.permute.xlu0 %566
  %v569 = vadd.f32 %v556, %v567
  %571 = vrot.lane.b32.xlu0 %v569, 32
  %v572 = vpop.permute.xlu0 %571
  %s574 = scalar_lea.vmem %s5, 16
  %575 = vst.msk [vmem:[%s574] sm:$0xff] %vm252, %v572
  %s576 = scalar_lea.vmem %s69, 40
  %v577 = vld [vmem:[%s576] sm:$0xff]
  %579 = vrot.lane.b32.xlu0 %v577, 96
  %v580 = vpop.permute.xlu0 %579
  %v582 = vadd.f32 %v562, %v580
  %584 = vrot.lane.b32.xlu0 %v582, 32
  %v585 = vpop.permute.xlu0 %584
  %s587 = scalar_lea.vmem %s77, 40
  %588 = vst.msk [vmem:[%s587] sm:$0xff] %vm252, %v585
  %590 = vrot.lane.b32.xlu0 %v556, 32
  %v591 = vpop.permute.xlu0 %590
  %594 = vrot.lane.b32.xlu0 %v562, 64
  %v595 = vpop.permute.xlu0 %594
  %v597 = vsel %vm252, %v591, %v595
  %s598 = scalar_lea.vmem %s0, 24
  %v599 = vld [vmem:[%s598] sm:$0xff]
  %s600 = scalar_lea.vmem %s61, 32
  %v601 = vld [vmem:[%s600] sm:$0xff]
  %v603 = vsel %vm111, %v597, 0
  %605 = vmatprep.subr.mxu0 %v90
  %606 = vmatpush1.msra.mxu0 %v89
  %607 = vmatprep.subr.mxu0 %v92
  %608 = vmatpush1.msra.mxu0 %v91
  %609 = vmatprep.subr.mxu0 %v94
  %610 = vmatpush1.msra.mxu0 %v93
  %611 = vmatprep.subr.mxu0 %v96
  %612 = vmatpush1.msra.mxu0 %v95
  %613 = vmatprep.subr.mxu0 %v98
  %614 = vmatpush1.msra.mxu0 %v97
  %615 = vmatprep.subr.mxu0 %v100
  %616 = vmatpush1.msra.mxu0 %v99
  %617 = vmatprep.subr.mxu0 %v102
  %618 = vmatpush1.msra.mxu0 %v101
  %619 = vmatprep.subr.mxu0 %v104
  %620 = vmatpush1.msra.mxu0 %v103
  %621 = vmatprep.subr.mxu0 0.0
  %622 = vmatpush1.msra.mxu0 0.0
  %623 = vmatprep.subr.mxu0 0.0
  %624 = vmatpush1.msra.mxu0 0.0
  %625 = vmatprep.subr.mxu0 0.0
  %626 = vmatpush1.msra.mxu0 0.0
  %627 = vmatprep.subr.mxu0 0.0
  %628 = vmatpush1.msra.mxu0 0.0
  %629 = vmatprep.subr.mxu0 0.0
  %630 = vmatpush1.msra.mxu0 0.0
  %631 = vmatprep.subr.mxu0 0.0
  %632 = vmatpush1.msra.mxu0 0.0
  %633 = vmatprep.subr.mxu0 0.0
  %634 = vmatpush1.msra.mxu0 0.0
  %635 = vmatprep.subr.mxu0 0.0
  %636 = vmatpush1.msra.mxu0 0.0
  %637 = vmatprep.subr.mxu0 0.0
  %638 = vmatpush1.msra.mxu0 0.0
  %639 = vmatprep.subr.mxu0 0.0
  %640 = vmatpush1.msra.mxu0 0.0
  %641 = vmatprep.subr.mxu0 0.0
  %642 = vmatpush1.msra.mxu0 0.0
  %643 = vmatprep.subr.mxu0 0.0
  %644 = vmatpush1.msra.mxu0 0.0
  %645 = vmatprep.subr.mxu0 0.0
  %646 = vmatpush1.msra.mxu0 0.0
  %647 = vmatprep.subr.mxu0 0.0
  %648 = vmatpush1.msra.mxu0 0.0
  %649 = vmatprep.subr.mxu0 0.0
  %650 = vmatpush1.msra.mxu0 0.0
  %651 = vmatprep.subr.mxu0 0.0
  %652 = vmatpush1.msra.mxu0 0.0
  %653 = vmatprep.subr.mxu0 0.0
  %654 = vmatpush1.msra.mxu0 0.0
  %655 = vmatprep.subr.mxu0 0.0
  %656 = vmatpush1.msra.mxu0 0.0
  %657 = vmatprep.subr.mxu0 0.0
  %658 = vmatpush1.msra.mxu0 0.0
  %659 = vmatprep.subr.mxu0 0.0
  %660 = vmatpush1.msra.mxu0 0.0
  %661 = vmatprep.subr.mxu0 0.0
  %662 = vmatpush1.msra.mxu0 0.0
  %663 = vmatprep.subr.mxu0 0.0
  %664 = vmatpush1.msra.mxu0 0.0
  %665 = vmatprep.subr.mxu0 0.0
  %666 = vmatpush1.msra.mxu0 0.0
  %667 = vmatprep.subr.mxu0 0.0
  %668 = vmatpush1.msra.mxu0 0.0
  %669 = vmatprep.mubr.f32.mxu0 0.0
  %670 = vmatmul.mubr.f32.gmra.mrb[0].mxu0 %v603
  %v671 = vpop.f32.mrb[0].mxu0
  %v672 = vadd.f32 %v599, %v671
  %v673 = vpop.f32.mrb[0].mxu0
  %v674 = vadd.f32 %v601, %v673
  %675 = vdwg.mxu0
  %v676 = vxor.u32 %v672, 2147483648
  %v677 = vxor.u32 %v674, 2147483648
  %v678 = vmul.f32 %v676, 1.442695
  %v679 = vpow.pop %v678
  %v680 = vmul.f32 %v677, 1.442695
  %v681 = vpow.pop %v680
  %v682 = vadd.f32 %v679, 1.0
  %v683 = vadd.f32 %v681, 1.0
  %v684 = vrcp.pop %v682
  %v685 = vmul.f32 1.0, %v684
  %v686 = vrcp.pop %v683
  %v687 = vmul.f32 1.0, %v686
  %v688 = vtanh.pop %v672
  %v689 = vtanh.pop %v674
  %v690 = vmul.f32 %v685, %v539
  %692 = vrot.lane.b32.xlu0 %v688, 64
  %v693 = vpop.permute.xlu0 %692
  %v695 = vmul.f32 %v685, %v693
  %697 = vrot.lane.b32.xlu0 %v695, 32
  %v698 = vpop.permute.xlu0 %697
  %v700 = vadd.f32 %v690, %v698
  %v701 = vmul.f32 %v687, %v550
  %703 = vrot.lane.b32.xlu0 %v689, 64
  %v704 = vpop.permute.xlu0 %703
  %v706 = vmul.f32 %v687, %v704
  %708 = vrot.lane.b32.xlu0 %v706, 32
  %v709 = vpop.permute.xlu0 %708
  %v711 = vadd.f32 %v701, %v709
  %v712 = vtanh.pop %v700
  %714 = vrot.lane.b32.xlu0 %v712, 64
  %v715 = vpop.permute.xlu0 %714
  %v717 = vmul.f32 %v685, %v715
  %v718 = vtanh.pop %v711
  %720 = vrot.lane.b32.xlu0 %v718, 64
  %v721 = vpop.permute.xlu0 %720
  %v723 = vmul.f32 %v687, %v721
  %s724 = scalar_lea.vmem %s3, 24
  %v725 = vld [vmem:[%s724] sm:$0xff]
  %727 = vrot.lane.b32.xlu0 %v725, 96
  %v728 = vpop.permute.xlu0 %727
  %v730 = vadd.f32 %v717, %v728
  %732 = vrot.lane.b32.xlu0 %v730, 32
  %v733 = vpop.permute.xlu0 %732
  %s735 = scalar_lea.vmem %s5, 24
  %736 = vst.msk [vmem:[%s735] sm:$0xff] %vm252, %v733
  %s737 = scalar_lea.vmem %s69, 32
  %v738 = vld [vmem:[%s737] sm:$0xff]
  %740 = vrot.lane.b32.xlu0 %v738, 96
  %v741 = vpop.permute.xlu0 %740
  %v743 = vadd.f32 %v723, %v741
  %745 = vrot.lane.b32.xlu0 %v743, 32
  %v746 = vpop.permute.xlu0 %745
  %s748 = scalar_lea.vmem %s77, 32
  %749 = vst.msk [vmem:[%s748] sm:$0xff] %vm252, %v746
  %751 = vrot.lane.b32.xlu0 %v717, 32
  %v752 = vpop.permute.xlu0 %751
  %755 = vrot.lane.b32.xlu0 %v723, 64
  %v756 = vpop.permute.xlu0 %755
  %v758 = vsel %vm252, %v752, %v756
  %s759 = scalar_lea.vmem %s0, 32
  %v760 = vld [vmem:[%s759] sm:$0xff]
  %s761 = scalar_lea.vmem %s61, 24
  %v762 = vld [vmem:[%s761] sm:$0xff]
  %v764 = vsel %vm111, %v758, 0
  %766 = vmatprep.subr.mxu0 %v90
  %767 = vmatpush1.msra.mxu0 %v89
  %768 = vmatprep.subr.mxu0 %v92
  %769 = vmatpush1.msra.mxu0 %v91
  %770 = vmatprep.subr.mxu0 %v94
  %771 = vmatpush1.msra.mxu0 %v93
  %772 = vmatprep.subr.mxu0 %v96
  %773 = vmatpush1.msra.mxu0 %v95
  %774 = vmatprep.subr.mxu0 %v98
  %775 = vmatpush1.msra.mxu0 %v97
  %776 = vmatprep.subr.mxu0 %v100
  %777 = vmatpush1.msra.mxu0 %v99
  %778 = vmatprep.subr.mxu0 %v102
  %779 = vmatpush1.msra.mxu0 %v101
  %780 = vmatprep.subr.mxu0 %v104
  %781 = vmatpush1.msra.mxu0 %v103
  %782 = vmatprep.subr.mxu0 0.0
  %783 = vmatpush1.msra.mxu0 0.0
  %784 = vmatprep.subr.mxu0 0.0
  %785 = vmatpush1.msra.mxu0 0.0
  %786 = vmatprep.subr.mxu0 0.0
  %787 = vmatpush1.msra.mxu0 0.0
  %788 = vmatprep.subr.mxu0 0.0
  %789 = vmatpush1.msra.mxu0 0.0
  %790 = vmatprep.subr.mxu0 0.0
  %791 = vmatpush1.msra.mxu0 0.0
  %792 = vmatprep.subr.mxu0 0.0
  %793 = vmatpush1.msra.mxu0 0.0
  %794 = vmatprep.subr.mxu0 0.0
  %795 = vmatpush1.msra.mxu0 0.0
  %796 = vmatprep.subr.mxu0 0.0
  %797 = vmatpush1.msra.mxu0 0.0
  %798 = vmatprep.subr.mxu0 0.0
  %799 = vmatpush1.msra.mxu0 0.0
  %800 = vmatprep.subr.mxu0 0.0
  %801 = vmatpush1.msra.mxu0 0.0
  %802 = vmatprep.subr.mxu0 0.0
  %803 = vmatpush1.msra.mxu0 0.0
  %804 = vmatprep.subr.mxu0 0.0
  %805 = vmatpush1.msra.mxu0 0.0
  %806 = vmatprep.subr.mxu0 0.0
  %807 = vmatpush1.msra.mxu0 0.0
  %808 = vmatprep.subr.mxu0 0.0
  %809 = vmatpush1.msra.mxu0 0.0
  %810 = vmatprep.subr.mxu0 0.0
  %811 = vmatpush1.msra.mxu0 0.0
  %812 = vmatprep.subr.mxu0 0.0
  %813 = vmatpush1.msra.mxu0 0.0
  %814 = vmatprep.subr.mxu0 0.0
  %815 = vmatpush1.msra.mxu0 0.0
  %816 = vmatprep.subr.mxu0 0.0
  %817 = vmatpush1.msra.mxu0 0.0
  %818 = vmatprep.subr.mxu0 0.0
  %819 = vmatpush1.msra.mxu0 0.0
  %820 = vmatprep.subr.mxu0 0.0
  %821 = vmatpush1.msra.mxu0 0.0
  %822 = vmatprep.subr.mxu0 0.0
  %823 = vmatpush1.msra.mxu0 0.0
  %824 = vmatprep.subr.mxu0 0.0
  %825 = vmatpush1.msra.mxu0 0.0
  %826 = vmatprep.subr.mxu0 0.0
  %827 = vmatpush1.msra.mxu0 0.0
  %828 = vmatprep.subr.mxu0 0.0
  %829 = vmatpush1.msra.mxu0 0.0
  %830 = vmatprep.mubr.f32.mxu0 0.0
  %831 = vmatmul.mubr.f32.gmra.mrb[0].mxu0 %v764
  %v832 = vpop.f32.mrb[0].mxu0
  %v833 = vadd.f32 %v760, %v832
  %v834 = vpop.f32.mrb[0].mxu0
  %v835 = vadd.f32 %v762, %v834
  %836 = vdwg.mxu0
  %v837 = vxor.u32 %v833, 2147483648
  %v838 = vxor.u32 %v835, 2147483648
  %v839 = vmul.f32 %v837, 1.442695
  %v840 = vpow.pop %v839
  %v841 = vmul.f32 %v838, 1.442695
  %v842 = vpow.pop %v841
  %v843 = vadd.f32 %v840, 1.0
  %v844 = vadd.f32 %v842, 1.0
  %v845 = vrcp.pop %v843
  %v846 = vmul.f32 1.0, %v845
  %v847 = vrcp.pop %v844
  %v848 = vmul.f32 1.0, %v847
  %v849 = vtanh.pop %v833
  %v850 = vtanh.pop %v835
  %v851 = vmul.f32 %v846, %v700
  %853 = vrot.lane.b32.xlu0 %v849, 64
  %v854 = vpop.permute.xlu0 %853
  %v856 = vmul.f32 %v846, %v854
  %858 = vrot.lane.b32.xlu0 %v856, 32
  %v859 = vpop.permute.xlu0 %858
  %v861 = vadd.f32 %v851, %v859
  %v862 = vmul.f32 %v848, %v711
  %864 = vrot.lane.b32.xlu0 %v850, 64
  %v865 = vpop.permute.xlu0 %864
  %v867 = vmul.f32 %v848, %v865
  %869 = vrot.lane.b32.xlu0 %v867, 32
  %v870 = vpop.permute.xlu0 %869
  %v872 = vadd.f32 %v862, %v870
  %v873 = vtanh.pop %v861
  %875 = vrot.lane.b32.xlu0 %v873, 64
  %v876 = vpop.permute.xlu0 %875
  %v878 = vmul.f32 %v846, %v876
  %v879 = vtanh.pop %v872
  %881 = vrot.lane.b32.xlu0 %v879, 64
  %v882 = vpop.permute.xlu0 %881
  %v884 = vmul.f32 %v848, %v882
  %s885 = scalar_lea.vmem %s3, 32
  %v886 = vld [vmem:[%s885] sm:$0xff]
  %888 = vrot.lane.b32.xlu0 %v886, 96
  %v889 = vpop.permute.xlu0 %888
  %v891 = vadd.f32 %v878, %v889
  %893 = vrot.lane.b32.xlu0 %v891, 32
  %v894 = vpop.permute.xlu0 %893
  %s896 = scalar_lea.vmem %s5, 32
  %897 = vst.msk [vmem:[%s896] sm:$0xff] %vm252, %v894
  %s898 = scalar_lea.vmem %s69, 24
  %v899 = vld [vmem:[%s898] sm:$0xff]
  %901 = vrot.lane.b32.xlu0 %v899, 96
  %v902 = vpop.permute.xlu0 %901
  %v904 = vadd.f32 %v884, %v902
  %906 = vrot.lane.b32.xlu0 %v904, 32
  %v907 = vpop.permute.xlu0 %906
  %s909 = scalar_lea.vmem %s77, 24
  %910 = vst.msk [vmem:[%s909] sm:$0xff] %vm252, %v907
  %912 = vrot.lane.b32.xlu0 %v878, 32
  %v913 = vpop.permute.xlu0 %912
  %916 = vrot.lane.b32.xlu0 %v884, 64
  %v917 = vpop.permute.xlu0 %916
  %v919 = vsel %vm252, %v913, %v917
  %s920 = scalar_lea.vmem %s0, 40
  %v921 = vld [vmem:[%s920] sm:$0xff]
  %s922 = scalar_lea.vmem %s61, 16
  %v923 = vld [vmem:[%s922] sm:$0xff]
  %v925 = vsel %vm111, %v919, 0
  %927 = vmatprep.subr.mxu0 %v90
  %928 = vmatpush1.msra.mxu0 %v89
  %929 = vmatprep.subr.mxu0 %v92
  %930 = vmatpush1.msra.mxu0 %v91
  %931 = vmatprep.subr.mxu0 %v94
  %932 = vmatpush1.msra.mxu0 %v93
  %933 = vmatprep.subr.mxu0 %v96
  %934 = vmatpush1.msra.mxu0 %v95
  %935 = vmatprep.subr.mxu0 %v98
  %936 = vmatpush1.msra.mxu0 %v97
  %937 = vmatprep.subr.mxu0 %v100
  %938 = vmatpush1.msra.mxu0 %v99
  %939 = vmatprep.subr.mxu0 %v102
  %940 = vmatpush1.msra.mxu0 %v101
  %941 = vmatprep.subr.mxu0 %v104
  %942 = vmatpush1.msra.mxu0 %v103
  %943 = vmatprep.subr.mxu0 0.0
  %944 = vmatpush1.msra.mxu0 0.0
  %945 = vmatprep.subr.mxu0 0.0
  %946 = vmatpush1.msra.mxu0 0.0
  %947 = vmatprep.subr.mxu0 0.0
  %948 = vmatpush1.msra.mxu0 0.0
  %949 = vmatprep.subr.mxu0 0.0
  %950 = vmatpush1.msra.mxu0 0.0
  %951 = vmatprep.subr.mxu0 0.0
  %952 = vmatpush1.msra.mxu0 0.0
  %953 = vmatprep.subr.mxu0 0.0
  %954 = vmatpush1.msra.mxu0 0.0
  %955 = vmatprep.subr.mxu0 0.0
  %956 = vmatpush1.msra.mxu0 0.0
  %957 = vmatprep.subr.mxu0 0.0
  %958 = vmatpush1.msra.mxu0 0.0
  %959 = vmatprep.subr.mxu0 0.0
  %960 = vmatpush1.msra.mxu0 0.0
  %961 = vmatprep.subr.mxu0 0.0
  %962 = vmatpush1.msra.mxu0 0.0
  %963 = vmatprep.subr.mxu0 0.0
  %964 = vmatpush1.msra.mxu0 0.0
  %965 = vmatprep.subr.mxu0 0.0
  %966 = vmatpush1.msra.mxu0 0.0
  %967 = vmatprep.subr.mxu0 0.0
  %968 = vmatpush1.msra.mxu0 0.0
  %969 = vmatprep.subr.mxu0 0.0
  %970 = vmatpush1.msra.mxu0 0.0
  %971 = vmatprep.subr.mxu0 0.0
  %972 = vmatpush1.msra.mxu0 0.0
  %973 = vmatprep.subr.mxu0 0.0
  %974 = vmatpush1.msra.mxu0 0.0
  %975 = vmatprep.subr.mxu0 0.0
  %976 = vmatpush1.msra.mxu0 0.0
  %977 = vmatprep.subr.mxu0 0.0
  %978 = vmatpush1.msra.mxu0 0.0
  %979 = vmatprep.subr.mxu0 0.0
  %980 = vmatpush1.msra.mxu0 0.0
  %981 = vmatprep.subr.mxu0 0.0
  %982 = vmatpush1.msra.mxu0 0.0
  %983 = vmatprep.subr.mxu0 0.0
  %984 = vmatpush1.msra.mxu0 0.0
  %985 = vmatprep.subr.mxu0 0.0
  %986 = vmatpush1.msra.mxu0 0.0
  %987 = vmatprep.subr.mxu0 0.0
  %988 = vmatpush1.msra.mxu0 0.0
  %989 = vmatprep.subr.mxu0 0.0
  %990 = vmatpush1.msra.mxu0 0.0
  %991 = vmatprep.mubr.f32.mxu0 0.0
  %992 = vmatmul.mubr.f32.gmra.mrb[0].mxu0 %v925
  %v993 = vpop.f32.mrb[0].mxu0
  %v994 = vadd.f32 %v921, %v993
  %v995 = vpop.f32.mrb[0].mxu0
  %v996 = vadd.f32 %v923, %v995
  %997 = vdwg.mxu0
  %v998 = vxor.u32 %v994, 2147483648
  %v999 = vxor.u32 %v996, 2147483648
  %v1000 = vmul.f32 %v998, 1.442695
  %v1001 = vpow.pop %v1000
  %v1002 = vmul.f32 %v999, 1.442695
  %v1003 = vpow.pop %v1002
  %v1004 = vadd.f32 %v1001, 1.0
  %v1005 = vadd.f32 %v1003, 1.0
  %v1006 = vrcp.pop %v1004
  %v1007 = vmul.f32 1.0, %v1006
  %v1008 = vrcp.pop %v1005
  %v1009 = vmul.f32 1.0, %v1008
  %v1010 = vtanh.pop %v994
  %v1011 = vtanh.pop %v996
  %v1012 = vmul.f32 %v1007, %v861
  %1014 = vrot.lane.b32.xlu0 %v1010, 64
  %v1015 = vpop.permute.xlu0 %1014
  %v1017 = vmul.f32 %v1007, %v1015
  %1019 = vrot.lane.b32.xlu0 %v1017, 32
  %v1020 = vpop.permute.xlu0 %1019
  %v1022 = vadd.f32 %v1012, %v1020
  %v1023 = vmul.f32 %v1009, %v872
  %1025 = vrot.lane.b32.xlu0 %v1011, 64
  %v1026 = vpop.permute.xlu0 %1025
  %v1028 = vmul.f32 %v1009, %v1026
  %1030 = vrot.lane.b32.xlu0 %v1028, 32
  %v1031 = vpop.permute.xlu0 %1030
  %v1033 = vadd.f32 %v1023, %v1031
  %v1034 = vtanh.pop %v1022
  %1036 = vrot.lane.b32.xlu0 %v1034, 64
  %v1037 = vpop.permute.xlu0 %1036
  %v1039 = vmul.f32 %v1007, %v1037
  %v1040 = vtanh.pop %v1033
  %1042 = vrot.lane.b32.xlu0 %v1040, 64
  %v1043 = vpop.permute.xlu0 %1042
  %v1045 = vmul.f32 %v1009, %v1043
  %s1046 = scalar_lea.vmem %s3, 40
  %v1047 = vld [vmem:[%s1046] sm:$0xff]
  %1049 = vrot.lane.b32.xlu0 %v1047, 96
  %v1050 = vpop.permute.xlu0 %1049
  %v1052 = vadd.f32 %v1039, %v1050
  %1054 = vrot.lane.b32.xlu0 %v1052, 32
  %v1055 = vpop.permute.xlu0 %1054
  %s1057 = scalar_lea.vmem %s5, 40
  %1058 = vst.msk [vmem:[%s1057] sm:$0xff] %vm252, %v1055
  %s1059 = scalar_lea.vmem %s69, 16
  %v1060 = vld [vmem:[%s1059] sm:$0xff]
  %1062 = vrot.lane.b32.xlu0 %v1060, 96
  %v1063 = vpop.permute.xlu0 %1062
  %v1065 = vadd.f32 %v1045, %v1063
  %1067 = vrot.lane.b32.xlu0 %v1065, 32
  %v1068 = vpop.permute.xlu0 %1067
  %s1070 = scalar_lea.vmem %s77, 16
  %1071 = vst.msk [vmem:[%s1070] sm:$0xff] %vm252, %v1068
  %1073 = vrot.lane.b32.xlu0 %v1039, 32
  %v1074 = vpop.permute.xlu0 %1073
  %1077 = vrot.lane.b32.xlu0 %v1045, 64
  %v1078 = vpop.permute.xlu0 %1077
  %v1080 = vsel %vm252, %v1074, %v1078
  %s1081 = scalar_lea.vmem %s0, 48
  %v1082 = vld [vmem:[%s1081] sm:$0xff]
  %s1083 = scalar_lea.vmem %s61, 8
  %v1084 = vld [vmem:[%s1083] sm:$0xff]
  %v1086 = vsel %vm111, %v1080, 0
  %1088 = vmatprep.subr.mxu0 %v90
  %1089 = vmatpush1.msra.mxu0 %v89
  %1090 = vmatprep.subr.mxu0 %v92
  %1091 = vmatpush1.msra.mxu0 %v91
  %1092 = vmatprep.subr.mxu0 %v94
  %1093 = vmatpush1.msra.mxu0 %v93
  %1094 = vmatprep.subr.mxu0 %v96
  %1095 = vmatpush1.msra.mxu0 %v95
  %1096 = vmatprep.subr.mxu0 %v98
  %1097 = vmatpush1.msra.mxu0 %v97
  %1098 = vmatprep.subr.mxu0 %v100
  %1099 = vmatpush1.msra.mxu0 %v99
  %1100 = vmatprep.subr.mxu0 %v102
  %1101 = vmatpush1.msra.mxu0 %v101
  %1102 = vmatprep.subr.mxu0 %v104
  %1103 = vmatpush1.msra.mxu0 %v103
  %1104 = vmatprep.subr.mxu0 0.0
  %1105 = vmatpush1.msra.mxu0 0.0
  %1106 = vmatprep.subr.mxu0 0.0
  %1107 = vmatpush1.msra.mxu0 0.0
  %1108 = vmatprep.subr.mxu0 0.0
  %1109 = vmatpush1.msra.mxu0 0.0
  %1110 = vmatprep.subr.mxu0 0.0
  %1111 = vmatpush1.msra.mxu0 0.0
  %1112 = vmatprep.subr.mxu0 0.0
  %1113 = vmatpush1.msra.mxu0 0.0
  %1114 = vmatprep.subr.mxu0 0.0
  %1115 = vmatpush1.msra.mxu0 0.0
  %1116 = vmatprep.subr.mxu0 0.0
  %1117 = vmatpush1.msra.mxu0 0.0
  %1118 = vmatprep.subr.mxu0 0.0
  %1119 = vmatpush1.msra.mxu0 0.0
  %1120 = vmatprep.subr.mxu0 0.0
  %1121 = vmatpush1.msra.mxu0 0.0
  %1122 = vmatprep.subr.mxu0 0.0
  %1123 = vmatpush1.msra.mxu0 0.0
  %1124 = vmatprep.subr.mxu0 0.0
  %1125 = vmatpush1.msra.mxu0 0.0
  %1126 = vmatprep.subr.mxu0 0.0
  %1127 = vmatpush1.msra.mxu0 0.0
  %1128 = vmatprep.subr.mxu0 0.0
  %1129 = vmatpush1.msra.mxu0 0.0
  %1130 = vmatprep.subr.mxu0 0.0
  %1131 = vmatpush1.msra.mxu0 0.0
  %1132 = vmatprep.subr.mxu0 0.0
  %1133 = vmatpush1.msra.mxu0 0.0
  %1134 = vmatprep.subr.mxu0 0.0
  %1135 = vmatpush1.msra.mxu0 0.0
  %1136 = vmatprep.subr.mxu0 0.0
  %1137 = vmatpush1.msra.mxu0 0.0
  %1138 = vmatprep.subr.mxu0 0.0
  %1139 = vmatpush1.msra.mxu0 0.0
  %1140 = vmatprep.subr.mxu0 0.0
  %1141 = vmatpush1.msra.mxu0 0.0
  %1142 = vmatprep.subr.mxu0 0.0
  %1143 = vmatpush1.msra.mxu0 0.0
  %1144 = vmatprep.subr.mxu0 0.0
  %1145 = vmatpush1.msra.mxu0 0.0
  %1146 = vmatprep.subr.mxu0 0.0
  %1147 = vmatpush1.msra.mxu0 0.0
  %1148 = vmatprep.subr.mxu0 0.0
  %1149 = vmatpush1.msra.mxu0 0.0
  %1150 = vmatprep.subr.mxu0 0.0
  %1151 = vmatpush1.msra.mxu0 0.0
  %1152 = vmatprep.mubr.f32.mxu0 0.0
  %1153 = vmatmul.mubr.f32.gmra.mrb[0].mxu0 %v1086
  %v1154 = vpop.f32.mrb[0].mxu0
  %v1155 = vadd.f32 %v1082, %v1154
  %v1156 = vpop.f32.mrb[0].mxu0
  %v1157 = vadd.f32 %v1084, %v1156
  %1158 = vdwg.mxu0
  %v1159 = vxor.u32 %v1155, 2147483648
  %v1160 = vxor.u32 %v1157, 2147483648
  %v1161 = vmul.f32 %v1159, 1.442695
  %v1162 = vpow.pop %v1161
  %v1163 = vmul.f32 %v1160, 1.442695
  %v1164 = vpow.pop %v1163
  %v1165 = vadd.f32 %v1162, 1.0
  %v1166 = vadd.f32 %v1164, 1.0
  %v1167 = vrcp.pop %v1165
  %v1168 = vmul.f32 1.0, %v1167
  %v1169 = vrcp.pop %v1166
  %v1170 = vmul.f32 1.0, %v1169
  %v1171 = vtanh.pop %v1155
  %v1172 = vtanh.pop %v1157
  %v1173 = vmul.f32 %v1168, %v1022
  %1175 = vrot.lane.b32.xlu0 %v1171, 64
  %v1176 = vpop.permute.xlu0 %1175
  %v1178 = vmul.f32 %v1168, %v1176
  %1180 = vrot.lane.b32.xlu0 %v1178, 32
  %v1181 = vpop.permute.xlu0 %1180
  %v1183 = vadd.f32 %v1173, %v1181
  %v1184 = vmul.f32 %v1170, %v1033
  %1186 = vrot.lane.b32.xlu0 %v1172, 64
  %v1187 = vpop.permute.xlu0 %1186
  %v1189 = vmul.f32 %v1170, %v1187
  %1191 = vrot.lane.b32.xlu0 %v1189, 32
  %v1192 = vpop.permute.xlu0 %1191
  %v1194 = vadd.f32 %v1184, %v1192
  %v1195 = vtanh.pop %v1183
  %1197 = vrot.lane.b32.xlu0 %v1195, 64
  %v1198 = vpop.permute.xlu0 %1197
  %v1200 = vmul.f32 %v1168, %v1198
  %v1201 = vtanh.pop %v1194
  %1203 = vrot.lane.b32.xlu0 %v1201, 64
  %v1204 = vpop.permute.xlu0 %1203
  %v1206 = vmul.f32 %v1170, %v1204
  %s1207 = scalar_lea.vmem %s3, 48
  %v1208 = vld [vmem:[%s1207] sm:$0xff]
  %1210 = vrot.lane.b32.xlu0 %v1208, 96
  %v1211 = vpop.permute.xlu0 %1210
  %v1213 = vadd.f32 %v1200, %v1211
  %1215 = vrot.lane.b32.xlu0 %v1213, 32
  %v1216 = vpop.permute.xlu0 %1215
  %s1218 = scalar_lea.vmem %s5, 48
  %1219 = vst.msk [vmem:[%s1218] sm:$0xff] %vm252, %v1216
  %s1220 = scalar_lea.vmem %s69, 8
  %v1221 = vld [vmem:[%s1220] sm:$0xff]
  %1223 = vrot.lane.b32.xlu0 %v1221, 96
  %v1224 = vpop.permute.xlu0 %1223
  %v1226 = vadd.f32 %v1206, %v1224
  %1228 = vrot.lane.b32.xlu0 %v1226, 32
  %v1229 = vpop.permute.xlu0 %1228
  %s1231 = scalar_lea.vmem %s77, 8
  %1232 = vst.msk [vmem:[%s1231] sm:$0xff] %vm252, %v1229
  %1234 = vrot.lane.b32.xlu0 %v1200, 32
  %v1235 = vpop.permute.xlu0 %1234
  %1238 = vrot.lane.b32.xlu0 %v1206, 64
  %v1239 = vpop.permute.xlu0 %1238
  %v1241 = vsel %vm252, %v1235, %v1239
  %s1242 = scalar_lea.vmem %s0, 56
  %v1243 = vld [vmem:[%s1242] sm:$0xff]
  %v1244 = vld [vmem:[%s61] sm:$0xff]
  %v1246 = vsel %vm111, %v1241, 0
  %1248 = vmatprep.subr.mxu0 %v90
  %1249 = vmatpush1.msra.mxu0 %v89
  %1250 = vmatprep.subr.mxu0 %v92
  %1251 = vmatpush1.msra.mxu0 %v91
  %1252 = vmatprep.subr.mxu0 %v94
  %1253 = vmatpush1.msra.mxu0 %v93
  %1254 = vmatprep.subr.mxu0 %v96
  %1255 = vmatpush1.msra.mxu0 %v95
  %1256 = vmatprep.subr.mxu0 %v98
  %1257 = vmatpush1.msra.mxu0 %v97
  %1258 = vmatprep.subr.mxu0 %v100
  %1259 = vmatpush1.msra.mxu0 %v99
  %1260 = vmatprep.subr.mxu0 %v102
  %1261 = vmatpush1.msra.mxu0 %v101
  %1262 = vmatprep.subr.mxu0 %v104
  %1263 = vmatpush1.msra.mxu0 %v103
  %1264 = vmatprep.subr.mxu0 0.0
  %1265 = vmatpush1.msra.mxu0 0.0
  %1266 = vmatprep.subr.mxu0 0.0
  %1267 = vmatpush1.msra.mxu0 0.0
  %1268 = vmatprep.subr.mxu0 0.0
  %1269 = vmatpush1.msra.mxu0 0.0
  %1270 = vmatprep.subr.mxu0 0.0
  %1271 = vmatpush1.msra.mxu0 0.0
  %1272 = vmatprep.subr.mxu0 0.0
  %1273 = vmatpush1.msra.mxu0 0.0
  %1274 = vmatprep.subr.mxu0 0.0
  %1275 = vmatpush1.msra.mxu0 0.0
  %1276 = vmatprep.subr.mxu0 0.0
  %1277 = vmatpush1.msra.mxu0 0.0
  %1278 = vmatprep.subr.mxu0 0.0
  %1279 = vmatpush1.msra.mxu0 0.0
  %1280 = vmatprep.subr.mxu0 0.0
  %1281 = vmatpush1.msra.mxu0 0.0
  %1282 = vmatprep.subr.mxu0 0.0
  %1283 = vmatpush1.msra.mxu0 0.0
  %1284 = vmatprep.subr.mxu0 0.0
  %1285 = vmatpush1.msra.mxu0 0.0
  %1286 = vmatprep.subr.mxu0 0.0
  %1287 = vmatpush1.msra.mxu0 0.0
  %1288 = vmatprep.subr.mxu0 0.0
  %1289 = vmatpush1.msra.mxu0 0.0
  %1290 = vmatprep.subr.mxu0 0.0
  %1291 = vmatpush1.msra.mxu0 0.0
  %1292 = vmatprep.subr.mxu0 0.0
  %1293 = vmatpush1.msra.mxu0 0.0
  %1294 = vmatprep.subr.mxu0 0.0
  %1295 = vmatpush1.msra.mxu0 0.0
  %1296 = vmatprep.subr.mxu0 0.0
  %1297 = vmatpush1.msra.mxu0 0.0
  %1298 = vmatprep.subr.mxu0 0.0
  %1299 = vmatpush1.msra.mxu0 0.0
  %1300 = vmatprep.subr.mxu0 0.0
  %1301 = vmatpush1.msra.mxu0 0.0
  %1302 = vmatprep.subr.mxu0 0.0
  %1303 = vmatpush1.msra.mxu0 0.0
  %1304 = vmatprep.subr.mxu0 0.0
  %1305 = vmatpush1.msra.mxu0 0.0
  %1306 = vmatprep.subr.mxu0 0.0
  %1307 = vmatpush1.msra.mxu0 0.0
  %1308 = vmatprep.subr.mxu0 0.0
  %1309 = vmatpush1.msra.mxu0 0.0
  %1310 = vmatprep.subr.mxu0 0.0
  %1311 = vmatpush1.msra.mxu0 0.0
  %1312 = vmatprep.mubr.f32.mxu0 0.0
  %1313 = vmatmul.mubr.f32.gmra.mrb[0].mxu0 %v1246
  %v1314 = vpop.f32.mrb[0].mxu0
  %v1315 = vadd.f32 %v1243, %v1314
  %v1316 = vpop.f32.mrb[0].mxu0
  %v1317 = vadd.f32 %v1244, %v1316
  %1318 = vdwg.mxu0
  %v1319 = vxor.u32 %v1315, 2147483648
  %v1320 = vxor.u32 %v1317, 2147483648
  %v1321 = vmul.f32 %v1319, 1.442695
  %v1322 = vpow.pop %v1321
  %v1323 = vmul.f32 %v1320, 1.442695
  %v1324 = vpow.pop %v1323
  %v1325 = vadd.f32 %v1322, 1.0
  %v1326 = vadd.f32 %v1324, 1.0
  %v1327 = vrcp.pop %v1325
  %v1328 = vmul.f32 1.0, %v1327
  %v1329 = vrcp.pop %v1326
  %v1330 = vmul.f32 1.0, %v1329
  %v1331 = vtanh.pop %v1315
  %v1332 = vtanh.pop %v1317
  %v1333 = vmul.f32 %v1328, %v1183
  %1335 = vrot.lane.b32.xlu0 %v1331, 64
  %v1336 = vpop.permute.xlu0 %1335
  %v1338 = vmul.f32 %v1328, %v1336
  %1340 = vrot.lane.b32.xlu0 %v1338, 32
  %v1341 = vpop.permute.xlu0 %1340
  %v1343 = vadd.f32 %v1333, %v1341
  %v1344 = vmul.f32 %v1330, %v1194
  %1346 = vrot.lane.b32.xlu0 %v1332, 64
  %v1347 = vpop.permute.xlu0 %1346
  %v1349 = vmul.f32 %v1330, %v1347
  %1351 = vrot.lane.b32.xlu0 %v1349, 32
  %v1352 = vpop.permute.xlu0 %1351
  %v1354 = vadd.f32 %v1344, %v1352
  %v1355 = vtanh.pop %v1343
  %1357 = vrot.lane.b32.xlu0 %v1355, 64
  %v1358 = vpop.permute.xlu0 %1357
  %v1360 = vmul.f32 %v1328, %v1358
  %v1361 = vtanh.pop %v1354
  %1363 = vrot.lane.b32.xlu0 %v1361, 64
  %v1364 = vpop.permute.xlu0 %1363
  %v1366 = vmul.f32 %v1330, %v1364
  %s1367 = scalar_lea.vmem %s3, 56
  %v1368 = vld [vmem:[%s1367] sm:$0xff]
  %1370 = vrot.lane.b32.xlu0 %v1368, 96
  %v1371 = vpop.permute.xlu0 %1370
  %v1373 = vadd.f32 %v1360, %v1371
  %1375 = vrot.lane.b32.xlu0 %v1373, 32
  %v1376 = vpop.permute.xlu0 %1375
  %s1378 = scalar_lea.vmem %s5, 56
  %1379 = vst.msk [vmem:[%s1378] sm:$0xff] %vm252, %v1376
  %v1380 = vld [vmem:[%s69] sm:$0xff]
  %1382 = vrot.lane.b32.xlu0 %v1380, 96
  %v1383 = vpop.permute.xlu0 %1382
  %v1385 = vadd.f32 %v1366, %v1383
  %1387 = vrot.lane.b32.xlu0 %v1385, 32
  %v1388 = vpop.permute.xlu0 %1387
  %1390 = vst.msk [vmem:[%s77] sm:$0xff] %vm252, %v1388
  %1392 = vrot.lane.b32.xlu0 %v1360, 32
  %v1393 = vpop.permute.xlu0 %1392
  %1396 = vrot.lane.b32.xlu0 %v1366, 64
  %v1397 = vpop.permute.xlu0 %1396
  %v1399 = vsel %vm252, %v1393, %v1397
  %1400 = vst.msk [vmem:[#allocation2] sm:$0xff] %vm111, %v1399
  %1402 = vrot.lane.b32.xlu0 %v1343, 96
  %v1403 = vpop.permute.xlu0 %1402
  %1405 = vst.msk [vmem:[#allocation3] sm:$0xff] %vm252, %v1403
  %1407 = vrot.lane.b32.xlu0 %v1354, 96
  %v1408 = vpop.permute.xlu0 %1407
  %1410 = vst.msk [vmem:[#allocation4] sm:$0xff] %vm252, %v1408
  %s1411 = ssub.s32 0, 0
  %s1412 = smul.u32 8, %s1411
  %p1413 = scmp.lt.s32.totalorder %s1412, 7
  %s1414 = scalar_select %p1413, %s1412, 7
  %s1415 = smul.addr %s1414, 8
  %s1416 = scalar_lea.vmem %s6, %s1415
  // Predicated region
  $region26: #{block_bilstm_forward.7} parent=0 // pred_check
    _
  $region27: #{block_bilstm_forward.7} parent=0 // pred_check_branch
    %1418 = sbr.rel (0) target = $region29
  $region28: #{block_bilstm_forward.7} parent=0 // pred_region
    _
  $region29: #{block_bilstm_forward.7} parent=0 // pred_fallthru
    _
  // Predicated region
  $region30: #{block_bilstm_forward.7} parent=0 // pred_check
    _
  $region31: #{block_bilstm_forward.7} parent=0 // pred_check_branch
    %1420 = sbr.rel (0) target = $region33
  $region32: #{block_bilstm_forward.7} parent=0 // pred_region
    %s1421 = ssub.s32 0, 0
    %s1422 = smul.u32 8, %s1421
  $region33: #{block_bilstm_forward.7} parent=0 // pred_fallthru
    _
  // Predicated region
  $region34: #{block_bilstm_forward.7} parent=0 // pred_check
    _
  $region35: #{block_bilstm_forward.7} parent=0 // pred_check_branch
    %1424 = sbr.rel (0) target = $region37
  $region36: #{block_bilstm_forward.7} parent=0 // pred_region
    _
  $region37: #{block_bilstm_forward.7} parent=0 // pred_fallthru
    _
  // Predicated region
  $region38: #{block_bilstm_forward.7} parent=0 // pred_check
    _
  $region39: #{block_bilstm_forward.7} parent=0 // pred_check_branch
    %1426 = sbr.rel (0) target = $region41
  $region40: #{block_bilstm_forward.7} parent=0 // pred_region
    %s1427 = ssub.s32 0, 0
    %s1428 = smul.u32 8, %s1427
    %p1429 = scmp.lt.s32.totalorder %s1428, 7
    %s1430 = scalar_select %p1429, %s1428, 7
    %s1431 = smul.addr %s1430, 8
    %s1432 = scalar_lea.vmem %s6, %s1431
  $region41: #{block_bilstm_forward.7} parent=0 // pred_fallthru
    _

</llo_original>
